<compile_context>
chip_gen: v6e
topology: v6e:2x2x1
jax: 0.10.0
libtpu: 0.0.40
codegen_flags: <defaults>
</compile_context>

<pallas_src>
import functools

import numpy as np
import jax
import jax.numpy as jnp
from jax.experimental import pallas as pl
from jax.experimental.pallas import tpu as pltpu

KERNEL_SIZE = 11
SIGMA = 1.5
C1 = 0.01 ** 2
C2 = 0.03 ** 2

_LANE_TARGET = 128      # vreg lane width / MXU dim (256 is ideal on v6e/v7x)
_SUBLANE_TARGET = 128   # cap for the block-diagonal sublane conv matrix


def gaussian_1d(kernel_size=KERNEL_SIZE, sigma=SIGMA):
    """Deterministic 1-D heat kernel (same as heat_1d_kernel in the module)."""
    x = np.arange(kernel_size, dtype=np.float64) - (kernel_size // 2)
    g = np.exp(-(x ** 2) / (2.0 * sigma ** 2))
    return (g / g.sum()).astype(np.float32)


def banded_same_conv_matrix(n, g):
    """(n, n) banded M with M[j, i] = g[j - i + K//2] (0 outside the band).

    For a row-vector x of length n, (x @ M)[i] is the zero-padded "same"
    convolution of x with the (symmetric) g; M is symmetric, so M @ y applies
    the same convolution along the leading axis of y.
    """
    k = len(g)
    p = k // 2
    m = np.zeros((n, n), dtype=np.float32)
    for j in range(n):
        for i in range(max(0, j - p), min(n, j + p + 1)):
            m[j, i] = g[j - i + p]
    return m


def block_diag_conv_matrix(n, reps, g):
    """I_reps (x) banded_same_conv_matrix(n, g) -- per-plane conv, no bleed."""
    m = banded_same_conv_matrix(n, g)
    if reps == 1:
        return m
    return np.kron(np.eye(reps, dtype=np.float32), m)


def _divisors(n):
    return [d for d in range(1, n + 1) if n % d == 0]


def _choose_packing(n_planes, h, w):
    """Pick (P1 sublane-packing, P2 lane-packing) factors.

    P2 packs planes along lanes until the packed width reaches 128 (lane-dense
    vregs / MXU N-dim).  P1 packs super-planes along sublanes via the
    block-diagonal I_P1 (x) Gh, but only while P1*H <= 128 so the conv matrix
    stays tiny (review item #1); >= 2 grid steps are preferred so both v7x
    TensorCores get work (review item #5).
    """
    if w >= _LANE_TARGET:
        p2 = 1
    else:
        cand = [d for d in _divisors(n_planes) if d * w >= _LANE_TARGET]
        p2 = min(cand) if cand else max(_divisors(n_planes))
    m_super = n_planes // p2

    cand = [d for d in _divisors(m_super)
            if d * h <= _SUBLANE_TARGET and ((d * h) % 8 == 0 or d == m_super)]
    if not cand:
        cand = [1]
    multi = [d for d in cand if m_super // d >= 2]   # keep >= 2 grid steps
    p1 = max(multi) if multi else max(cand)
    return p1, p2


def _ssim_kernel(gw_ref, gh_ref, x1_ref, x2_ref, psum_ref, *, c1, c2,
                 use_bf16x3):
    x1 = x1_ref[...]           # (Sh, Wp) f32 slab: P1 super-planes of P2 planes
    x2 = x2_ref[...]
    gw = gw_ref[...]           # (Wp, Wp) resident: I_P2 (x) Gw
    gh = gh_ref[...]           # (Sh, Sh) resident: I_P1 (x) Gh

    if use_bf16x3:
        # Manual bf16x3 split: 3 single-pass bf16 MXU matmuls with f32
        # accumulation (~2x less MXU work than precision=HIGHEST's 6 passes).
        def split(a):
            hi = a.astype(jnp.bfloat16)
            lo = (a - hi.astype(jnp.float32)).astype(jnp.bfloat16)
            return hi, lo

        gw_hi, gw_lo = split(gw)
        gh_hi, gh_lo = split(gh)

        def mm_rhs(v, b_hi, b_lo):          # v @ B, v split on the fly
            v_hi, v_lo = split(v)
            return (jnp.dot(v_hi, b_hi, preferred_element_type=jnp.float32)
                    + jnp.dot(v_lo, b_hi, preferred_element_type=jnp.float32)
                    + jnp.dot(v_hi, b_lo, preferred_element_type=jnp.float32))

        def mm_lhs(a_hi, a_lo, v):          # A @ v, v split on the fly
            v_hi, v_lo = split(v)
            return (jnp.dot(a_hi, v_hi, preferred_element_type=jnp.float32)
                    + jnp.dot(a_hi, v_lo, preferred_element_type=jnp.float32)
                    + jnp.dot(a_lo, v_hi, preferred_element_type=jnp.float32))

        def conv2(v):
            t = mm_rhs(v, gw_hi, gw_lo)     # lane (W) pass
            return mm_lhs(gh_hi, gh_lo, t)  # sublane (H) pass
    else:
        # Exact-f32 path (6 MXU passes per matmul).
        def conv2(v):
            t = jnp.dot(v, gw, preferred_element_type=jnp.float32,
                        precision=jax.lax.Precision.HIGHEST)
            return jnp.dot(gh, t, preferred_element_type=jnp.float32,
                           precision=jax.lax.Precision.HIGHEST)

    # Five conv operands; no concatenate, the resident RHS/LHS are reused.
    mu1 = conv2(x1)
    mu2 = conv2(x2)
    e11 = conv2(x1 * x1)
    e22 = conv2(x2 * x2)
    e12 = conv2(x1 * x2)

    mu1_sq = mu1 * mu1
    mu2_sq = mu2 * mu2
    mu1_mu2 = mu1 * mu2
    sigma1_sq = e11 - mu1_sq
    sigma2_sq = e22 - mu2_sq
    sigma12 = e12 - mu1_mu2

    num = (2.0 * mu1_mu2 + c1) * (2.0 * sigma12 + c2)
    den = (mu1_sq + mu2_sq + c1) * (sigma1_sq + sigma2_sq + c2)
    ssim_map = num / den

    # Per-grid-step partial sum -> each step owns its output slot, so the grid
    # axis is "parallel" (sharded across both TCs on v7x).  Mean in wrapper.
    psum_ref[0, 0] = jnp.sum(ssim_map)


def ssim_pallas(img1, img2, kernel_size=KERNEL_SIZE, sigma=SIGMA,
                use_bf16x3=True):
    """Mean SSIM between two NCHW batches of images (float32 scalar)."""
    assert img1.shape == img2.shape
    B, C, H, W = img1.shape
    n_planes = B * C

    p1, p2 = _choose_packing(n_planes, H, W)
    m_super = n_planes // p2        # super-planes of shape (H, p2*W)
    n_steps = m_super // p1         # grid steps (>= 2 preferred, see heuristic)
    wp = p2 * W                     # packed lane width   (>= 128 when possible)
    sh = p1 * H                     # packed sublane height per grid step (<=128)

    g = gaussian_1d(kernel_size, sigma)
    gw = block_diag_conv_matrix(W, p2, g)   # (wp, wp)  lane-direction conv
    gh = block_diag_conv_matrix(H, p1, g)   # (sh, sh)  sublane-direction conv

    def pack(x):
        # Lane packing is pure layout plumbing done once in the wrapper so the
        # kernel sees a lane-dense (sh, wp) slab per grid step.
        x = x.reshape(n_planes, H, W).astype(jnp.float32)
        if p2 > 1:
            x = x.reshape(m_super, p2, H, W).transpose(0, 2, 1, 3)
        return x.reshape(m_super * H, wp)

    x1 = pack(img1)
    x2 = pack(img2)

    kern = functools.partial(_ssim_kernel, c1=float(C1), c2=float(C2),
                             use_bf16x3=use_bf16x3)

    # Explicit VMEM budget (review items #4/#6): 2 image inputs x 2 pipeline
    # buffers + double-buffered resident conv matrices + ~14 live (sh, wp)
    # f32 temporaries; clamp to a value that is legal on v5e/v6e/v7x.
    tile_bytes = 4 * sh * wp
    resident_bytes = 4 * (wp * wp + sh * sh)
    vmem_est = 2 * 2 * tile_bytes + 2 * resident_bytes + 14 * tile_bytes
    vmem_limit = int(min(48 * 2 ** 20, max(32 * 2 ** 20, 2 * vmem_est)))

    partial_sums = pl.pallas_call(
        kern,
        out_shape=jax.ShapeDtypeStruct((n_steps, 1), jnp.float32),
        grid=(n_steps,),
        in_specs=[
            pl.BlockSpec((wp, wp), lambda i: (0, 0)),   # I_P2 (x) Gw (resident)
            pl.BlockSpec((sh, sh), lambda i: (0, 0)),   # I_P1 (x) Gh (resident)
            pl.BlockSpec((sh, wp), lambda i: (i, 0)),   # img1 slab
            pl.BlockSpec((sh, wp), lambda i: (i, 0)),   # img2 slab
        ],
        out_specs=pl.BlockSpec((1, 1), lambda i: (i, 0),
                               memory_space=pltpu.MemorySpace.SMEM),
        compiler_params=pltpu.CompilerParams(
            dimension_semantics=("parallel",),
            vmem_limit_bytes=vmem_limit),
    )(jnp.asarray(gw), jnp.asarray(gh), x1, x2)

    return jnp.sum(partial_sums) / jnp.float32(n_planes * H * W)


def ssim_ref(img1, img2, kernel_size=KERNEL_SIZE):
    """Pure-JAX reference mirroring the PyTorch module."""
    B, C, H, W = img1.shape
    g = jnp.asarray(gaussian_1d(kernel_size, SIGMA))
    w2d = jnp.outer(g, g)
    kernel = jnp.broadcast_to(w2d[None, None], (C, 1, kernel_size, kernel_size))
    p = kernel_size // 2

    def conv(x):
        return jax.lax.conv_general_dilated(
            x, kernel, window_strides=(1, 1), padding=[(p, p), (p, p)],
            dimension_numbers=("NCHW", "OIHW", "NCHW"), feature_group_count=C,
            precision=jax.lax.Precision.HIGHEST)

    mu1 = conv(img1)
    mu2 = conv(img2)
    mu1_sq = mu1 ** 2
    mu2_sq = mu2 ** 2
    mu1_mu2 = mu1 * mu2
    sigma1_sq = conv(img1 * img1) - mu1_sq
    sigma2_sq = conv(img2 * img2) - mu2_sq
    sigma12 = conv(img1 * img2) - mu1_mu2
    ssim_map = ((2 * mu1_mu2 + C1) * (2 * sigma12 + C2)) / (
        (mu1_sq + mu2_sq + C1) * (sigma1_sq + sigma2_sq + C2))
    return ssim_map.mean()


if __name__ == "__main__":
    key = jax.random.PRNGKey(0)
    k1, k2 = jax.random.split(key)
    B, C, H, W = 2, 4, 16, 16
    img1 = jax.random.uniform(k1, (B, C, H, W), dtype=jnp.float32)
    img2 = jax.random.uniform(k2, (B, C, H, W), dtype=jnp.float32)

    ref = ssim_ref(img1, img2)

    # Exact-f32 path: matches the reference to 1e-5.
    out_f32 = jax.block_until_ready(ssim_pallas(img1, img2, use_bf16x3=False))
    assert jnp.allclose(out_f32, ref, atol=1e-5, rtol=1e-5), (out_f32, ref)

    # Default bf16x3 path (~2x less MXU work): the 2-way bf16 split carries a
    # ~1e-5-level absolute error on the mean SSIM, validated at 1e-4.
    out = jax.block_until_ready(ssim_pallas(img1, img2))
    assert jnp.allclose(out, ref, atol=1e-4, rtol=1e-4), (out, ref)

    print("KERNEL_OK")
</pallas_src>

<mosaic_0001>
module attributes {stable_mosaic.version = 11 : i64} {
  func.func @_ssim_kernel(%arg0: i32, %arg1: memref<128x128xf32, #tpu.memory_space<vmem>>, %arg2: memref<16x16xf32, #tpu.memory_space<vmem>>, %arg3: memref<16x128xf32, #tpu.memory_space<vmem>>, %arg4: memref<16x128xf32, #tpu.memory_space<vmem>>, %arg5: memref<1x1xf32, #tpu.memory_space<smem>>) attributes {dimension_semantics = [#tpu.dimension_semantics<parallel>], iteration_bounds = array<i64: 1>, scalar_prefetch = 0 : i64, scratch_operands = 0 : i64, tpu.core_type = #tpu.core_type<tc>, window_params = [{pipeline_mode = #tpu.pipeline_mode<synchronous>, transform_indices = @transform_0, window_bounds = array<i64: 128, 128>}, {pipeline_mode = #tpu.pipeline_mode<synchronous>, transform_indices = @transform_1, window_bounds = array<i64: 16, 16>}, {transform_indices = @transform_2, window_bounds = array<i64: 16, 128>}, {transform_indices = @transform_3, window_bounds = array<i64: 16, 128>}, {transform_indices = @transform_4, window_bounds = array<i64: 1, 1>}]} {
    %c0 = arith.constant 0 : index
    %c0_0 = arith.constant 0 : index
    %0 = vector.load %arg3[%c0, %c0_0] : memref<16x128xf32, #tpu.memory_space<vmem>>, vector<16x128xf32>
    %c0_1 = arith.constant 0 : index
    %c0_2 = arith.constant 0 : index
    %1 = vector.load %arg4[%c0_1, %c0_2] : memref<16x128xf32, #tpu.memory_space<vmem>>, vector<16x128xf32>
    %c0_3 = arith.constant 0 : index
    %c0_4 = arith.constant 0 : index
    %2 = vector.load %arg1[%c0_3, %c0_4] : memref<128x128xf32, #tpu.memory_space<vmem>>, vector<128x128xf32>
    %c0_5 = arith.constant 0 : index
    %c0_6 = arith.constant 0 : index
    %3 = vector.load %arg2[%c0_5, %c0_6] : memref<16x16xf32, #tpu.memory_space<vmem>>, vector<16x16xf32>
    %cst = arith.constant dense<0.000000e+00> : vector<16x128xf32>
    %4 = tpu.matmul %0, %2, %cst {dimension_numbers = #tpu.dot_dimension_numbers<[1], [0], [0], [1], [0, 0, 1, 1], [], []>, precision = #tpu.contract_precision<fp32>} : vector<16x128xf32>, vector<128x128xf32>, vector<16x128xf32> -> vector<16x128xf32>
    %cst_7 = arith.constant dense<0.000000e+00> : vector<16x128xf32>
    %5 = tpu.matmul %3, %4, %cst_7 {dimension_numbers = #tpu.dot_dimension_numbers<[1], [0], [0], [1], [0, 0, 1, 1], [], []>, precision = #tpu.contract_precision<fp32>} : vector<16x16xf32>, vector<16x128xf32>, vector<16x128xf32> -> vector<16x128xf32>
    %cst_8 = arith.constant dense<0.000000e+00> : vector<16x128xf32>
    %6 = tpu.matmul %1, %2, %cst_8 {dimension_numbers = #tpu.dot_dimension_numbers<[1], [0], [0], [1], [0, 0, 1, 1], [], []>, precision = #tpu.contract_precision<fp32>} : vector<16x128xf32>, vector<128x128xf32>, vector<16x128xf32> -> vector<16x128xf32>
    %cst_9 = arith.constant dense<0.000000e+00> : vector<16x128xf32>
    %7 = tpu.matmul %3, %6, %cst_9 {dimension_numbers = #tpu.dot_dimension_numbers<[1], [0], [0], [1], [0, 0, 1, 1], [], []>, precision = #tpu.contract_precision<fp32>} : vector<16x16xf32>, vector<16x128xf32>, vector<16x128xf32> -> vector<16x128xf32>
    %8 = arith.mulf %0, %0 : vector<16x128xf32>
    %cst_10 = arith.constant dense<0.000000e+00> : vector<16x128xf32>
    %9 = tpu.matmul %8, %2, %cst_10 {dimension_numbers = #tpu.dot_dimension_numbers<[1], [0], [0], [1], [0, 0, 1, 1], [], []>, precision = #tpu.contract_precision<fp32>} : vector<16x128xf32>, vector<128x128xf32>, vector<16x128xf32> -> vector<16x128xf32>
    %cst_11 = arith.constant dense<0.000000e+00> : vector<16x128xf32>
    %10 = tpu.matmul %3, %9, %cst_11 {dimension_numbers = #tpu.dot_dimension_numbers<[1], [0], [0], [1], [0, 0, 1, 1], [], []>, precision = #tpu.contract_precision<fp32>} : vector<16x16xf32>, vector<16x128xf32>, vector<16x128xf32> -> vector<16x128xf32>
    %11 = arith.mulf %1, %1 : vector<16x128xf32>
    %cst_12 = arith.constant dense<0.000000e+00> : vector<16x128xf32>
    %12 = tpu.matmul %11, %2, %cst_12 {dimension_numbers = #tpu.dot_dimension_numbers<[1], [0], [0], [1], [0, 0, 1, 1], [], []>, precision = #tpu.contract_precision<fp32>} : vector<16x128xf32>, vector<128x128xf32>, vector<16x128xf32> -> vector<16x128xf32>
    %cst_13 = arith.constant dense<0.000000e+00> : vector<16x128xf32>
    %13 = tpu.matmul %3, %12, %cst_13 {dimension_numbers = #tpu.dot_dimension_numbers<[1], [0], [0], [1], [0, 0, 1, 1], [], []>, precision = #tpu.contract_precision<fp32>} : vector<16x16xf32>, vector<16x128xf32>, vector<16x128xf32> -> vector<16x128xf32>
    %14 = arith.mulf %0, %1 : vector<16x128xf32>
    %cst_14 = arith.constant dense<0.000000e+00> : vector<16x128xf32>
    %15 = tpu.matmul %14, %2, %cst_14 {dimension_numbers = #tpu.dot_dimension_numbers<[1], [0], [0], [1], [0, 0, 1, 1], [], []>, precision = #tpu.contract_precision<fp32>} : vector<16x128xf32>, vector<128x128xf32>, vector<16x128xf32> -> vector<16x128xf32>
    %cst_15 = arith.constant dense<0.000000e+00> : vector<16x128xf32>
    %16 = tpu.matmul %3, %15, %cst_15 {dimension_numbers = #tpu.dot_dimension_numbers<[1], [0], [0], [1], [0, 0, 1, 1], [], []>, precision = #tpu.contract_precision<fp32>} : vector<16x16xf32>, vector<16x128xf32>, vector<16x128xf32> -> vector<16x128xf32>
    %17 = arith.mulf %5, %5 : vector<16x128xf32>
    %18 = arith.mulf %7, %7 : vector<16x128xf32>
    %19 = arith.mulf %5, %7 : vector<16x128xf32>
    %20 = arith.subf %10, %17 : vector<16x128xf32>
    %21 = arith.subf %13, %18 : vector<16x128xf32>
    %22 = arith.subf %16, %19 : vector<16x128xf32>
    %cst_16 = arith.constant 2.000000e+00 : f32
    %23 = vector.broadcast %cst_16 : f32 to vector<16x128xf32>
    %24 = arith.mulf %23, %19 : vector<16x128xf32>
    %cst_17 = arith.constant 9.99999974E-5 : f32
    %25 = vector.broadcast %cst_17 : f32 to vector<16x128xf32>
    %26 = arith.addf %24, %25 : vector<16x128xf32>
    %cst_18 = arith.constant 2.000000e+00 : f32
    %27 = vector.broadcast %cst_18 : f32 to vector<16x128xf32>
    %28 = arith.mulf %27, %22 : vector<16x128xf32>
    %cst_19 = arith.constant 8.99999984E-4 : f32
    %29 = vector.broadcast %cst_19 : f32 to vector<16x128xf32>
    %30 = arith.addf %28, %29 : vector<16x128xf32>
    %31 = arith.mulf %26, %30 : vector<16x128xf32>
    %32 = arith.addf %17, %18 : vector<16x128xf32>
    %cst_20 = arith.constant 9.99999974E-5 : f32
    %33 = vector.broadcast %cst_20 : f32 to vector<16x128xf32>
    %34 = arith.addf %32, %33 : vector<16x128xf32>
    %35 = arith.addf %20, %21 : vector<16x128xf32>
    %cst_21 = arith.constant 8.99999984E-4 : f32
    %36 = vector.broadcast %cst_21 : f32 to vector<16x128xf32>
    %37 = arith.addf %35, %36 : vector<16x128xf32>
    %38 = arith.mulf %34, %37 : vector<16x128xf32>
    %39 = arith.divf %31, %38 : vector<16x128xf32>
    %40 = vector.shape_cast %39 : vector<16x128xf32> to vector<1x16x128xf32>
    %cst_22 = arith.constant dense<0.000000e+00> : vector<1xf32>
    %41 = vector.multi_reduction <add>, %40, %cst_22 [1, 2] : vector<1x16x128xf32> to vector<1xf32>
    %42 = vector.shape_cast %41 : vector<1xf32> to vector<1x1x1xf32>
    %43 = vector.extract %42[0, 0, 0] : f32 from vector<1x1x1xf32>
    %c0_23 = arith.constant 0 : index
    %c0_24 = arith.constant 0 : index
    %44 = memref.load %arg5[%c0_23, %c0_24] : memref<1x1xf32, #tpu.memory_space<smem>>
    memref.store %43, %arg5[%c0_23, %c0_24] : memref<1x1xf32, #tpu.memory_space<smem>>
    return
  }
  func.func @transform_0(%arg0: i32) -> (i32, i32) {
    %c0_i32 = arith.constant 0 : i32
    %c0_i32_0 = arith.constant 0 : i32
    %c0_i32_1 = arith.constant 0 : i32
    return %c0_i32, %c0_i32_0 : i32, i32
  }
  func.func @transform_1(%arg0: i32) -> (i32, i32) {
    %c0_i32 = arith.constant 0 : i32
    %c0_i32_0 = arith.constant 0 : i32
    %c0_i32_1 = arith.constant 0 : i32
    return %c0_i32, %c0_i32_0 : i32, i32
  }
  func.func @transform_2(%arg0: i32) -> (i32, i32) {
    %c0_i32 = arith.constant 0 : i32
    %c0_i32_0 = arith.constant 0 : i32
    return %arg0, %c0_i32 : i32, i32
  }
  func.func @transform_3(%arg0: i32) -> (i32, i32) {
    %c0_i32 = arith.constant 0 : i32
    %c0_i32_0 = arith.constant 0 : i32
    return %arg0, %c0_i32 : i32, i32
  }
  func.func @transform_4(%arg0: i32) -> (i32, i32) {
    %c0_i32 = arith.constant 0 : i32
    %c0_i32_0 = arith.constant 0 : i32
    return %arg0, %c0_i32 : i32, i32
  }
}

</mosaic_0001>

<llo_original>
// kernel: tpu_custom_call.1
$region0: #{tpu_custom_call.1}
  #allocation0 [shape = 'u32[]', space=smem, size = 0x4, offset = 0x4, fixed_abs, tag = 'smem constant byte address 0x4 - core index']
  #allocation1 [shape = 'u32[144,128]{1,0:T(1,128)}', space=vmem, size = 0x12000, scoped, tag = 'internal scratch']
  %s0 = inlined_call_operand.hbm [shape: f32[128,128], index: 0, kind: input, shape index: {}]
  %s1 = inlined_call_operand.hbm [shape: f32[16,16], index: 1, kind: input, shape index: {}]
  %s2 = inlined_call_operand.hbm [shape: f32[16,128], index: 2, kind: input, shape index: {}]
  %s3 = inlined_call_operand.hbm [shape: f32[16,128], index: 3, kind: input, shape index: {}]
  %s4 = inlined_call_operand.hbm [shape: f32[1,1], index: 4, kind: output, shape index: {}]
  %s5 = sld [smem:[#allocation0]]
  $region42: #{tpu_custom_call.1} parent=0
    _
  %s7 = ssub.s32 1, %s5
  %s8 = scalar_select 0, %s7, %s5
  $region1: #{tpu_custom_call.1} parent=0
    #allocation2 [shape = 'u8[65536]{0}', space=vmem, size = 0x10000, scoped, tag = 'input window, operand 0, single buffered']
    #allocation3 [shape = 's32[1]{0}', space=sflag, size = 0x4, scoped, tag = 'scoped memory for tpu_custom_call.1']
    #allocation4 [shape = 's32[1]{0}', space=sflag, size = 0x4, scoped, tag = 'scoped memory for tpu_custom_call.1']
    #allocation5 [shape = 'u8[8192]{0}', space=vmem, size = 0x2000, scoped, tag = 'input window, operand 1, single buffered']
    #allocation6 [shape = 's32[1]{0}', space=sflag, size = 0x4, scoped, tag = 'scoped memory for tpu_custom_call.1']
    #allocation7 [shape = 'u8[8192]{0}', space=vmem, size = 0x2000, scoped, tag = 'input window, operand 2, single buffered']
    #allocation8 [shape = 'u8[8192]{0}', space=vmem, size = 0x2000, scoped, tag = 'input window, operand 3, single buffered']
    #allocation9 [shape = 's32[1]{0}', space=sflag, size = 0x4, scoped, tag = 'scoped memory for tpu_custom_call.1']
    #allocation10 [shape = 'u8[512]{0}', space=smem, size = 0x200, scoped, tag = 'output window, operand 0, single buffered']
    %9 = vsyncpa [#allocation3], 0
    %10 = vsyncpa [#allocation6], 0
    %11 = vsyncpa [#allocation9], 0
    %12 = vsyncpa [#allocation4], 0
    // Predicated region
    $region2: #{tpu_custom_call.1} parent=1 // pred_check
      _
    $region3: #{tpu_custom_call.1} parent=1 // pred_check_branch
      %14 = sbr.rel (0) target = $region5
    $region4: #{tpu_custom_call.1} parent=1 // pred_region
      %s16 = ssub.s32 2048, 2048
      %17 = vsyncadd [#allocation3], %s16
      %s18 = sshll.u32 [#allocation2], 4
      %s19 = int_to_ptr.vmem [resolvable:$true] %s18
      %24 = dma.hbm_to_vmem [thread:$0]  %s0, 2048, %s19, [#allocation3], 128, 128, 8
    $region5: #{tpu_custom_call.1} parent=1 // pred_fallthru
      _
    // Predicated region
    $region6: #{tpu_custom_call.1} parent=1 // pred_check
      _
    $region7: #{tpu_custom_call.1} parent=1 // pred_check_branch
      %26 = sbr.rel (0) target = $region9
    $region8: #{tpu_custom_call.1} parent=1 // pred_region
      %s28 = ssub.s32 256, 256
      %29 = vsyncadd [#allocation6], %s28
      %s30 = sshll.u32 [#allocation5], 4
      %s31 = int_to_ptr.vmem [resolvable:$true] %s30
      %36 = dma.hbm_to_vmem [thread:$0]  %s1, 256, %s31, [#allocation6], 128, 128, 8
    $region9: #{tpu_custom_call.1} parent=1 // pred_fallthru
      _
    // Predicated region
    $region10: #{tpu_custom_call.1} parent=1 // pred_check
      _
    $region11: #{tpu_custom_call.1} parent=1 // pred_check_branch
      %38 = sbr.rel (0) target = $region13
    $region12: #{tpu_custom_call.1} parent=1 // pred_region
      %s40 = ssub.s32 256, 256
      %41 = vsyncadd [#allocation6], %s40
      %s42 = sshll.u32 [#allocation7], 4
      %s43 = int_to_ptr.vmem [resolvable:$true] %s42
      %48 = dma.hbm_to_vmem [thread:$0]  %s2, 256, %s43, [#allocation6], 128, 128, 8
    $region13: #{tpu_custom_call.1} parent=1 // pred_fallthru
      _
    // Predicated region
    $region14: #{tpu_custom_call.1} parent=1 // pred_check
      _
    $region15: #{tpu_custom_call.1} parent=1 // pred_check_branch
      %50 = sbr.rel (0) target = $region17
    $region16: #{tpu_custom_call.1} parent=1 // pred_region
      %s52 = ssub.s32 256, 256
      %53 = vsyncadd [#allocation9], %s52
      %s54 = sshll.u32 [#allocation8], 4
      %s55 = int_to_ptr.vmem [resolvable:$true] %s54
      %60 = dma.hbm_to_vmem [thread:$0]  %s3, 256, %s55, [#allocation9], 128, 128, 8
    $region17: #{tpu_custom_call.1} parent=1 // pred_fallthru
      _
    // Predicated region
    $region18: #{tpu_custom_call.1} parent=1 // pred_check
      _
    $region19: #{tpu_custom_call.1} parent=1 // pred_check_branch
      %62 = sbr.rel (0) target = $region21
    $region20: #{tpu_custom_call.1} parent=1 // pred_region
      %63 = dma.done [#allocation3], 2048
    $region21: #{tpu_custom_call.1} parent=1 // pred_fallthru
      _
    // Predicated region
    $region22: #{tpu_custom_call.1} parent=1 // pred_check
      _
    $region23: #{tpu_custom_call.1} parent=1 // pred_check_branch
      %65 = sbr.rel (0) target = $region25
    $region24: #{tpu_custom_call.1} parent=1 // pred_region
      %66 = dma.done [#allocation6], 256
    $region25: #{tpu_custom_call.1} parent=1 // pred_fallthru
      _
    // Predicated region
    $region26: #{tpu_custom_call.1} parent=1 // pred_check
      _
    $region27: #{tpu_custom_call.1} parent=1 // pred_check_branch
      %68 = sbr.rel (0) target = $region29
    $region28: #{tpu_custom_call.1} parent=1 // pred_region
      %69 = dma.done [#allocation6], 256
    $region29: #{tpu_custom_call.1} parent=1 // pred_fallthru
      _
    // Predicated region
    $region30: #{tpu_custom_call.1} parent=1 // pred_check
      _
    $region31: #{tpu_custom_call.1} parent=1 // pred_check_branch
      %71 = sbr.rel (0) target = $region33
    $region32: #{tpu_custom_call.1} parent=1 // pred_region
      %72 = dma.done [#allocation9], 256
    $region33: #{tpu_custom_call.1} parent=1 // pred_fallthru
      _
    %v73 = vld [vmem:[#allocation7] sm:$0xff]
    %v74 = vld [vmem:[#allocation7 + $0x8] sm:$0xff]
    %v75 = vld [vmem:[#allocation8] sm:$0xff]
    %v76 = vld [vmem:[#allocation8 + $0x8] sm:$0xff]
    %v77 = vld [vmem:[#allocation2] sm:$0xff]
    %v78 = vld [vmem:[#allocation2 + $0x8] sm:$0xff]
    %v79 = vld [vmem:[#allocation2 + $0x10] sm:$0xff]
    %v80 = vld [vmem:[#allocation2 + $0x18] sm:$0xff]
    %v81 = vld [vmem:[#allocation2 + $0x20] sm:$0xff]
    %v82 = vld [vmem:[#allocation2 + $0x28] sm:$0xff]
    %v83 = vld [vmem:[#allocation2 + $0x30] sm:$0xff]
    %v84 = vld [vmem:[#allocation2 + $0x38] sm:$0xff]
    %v85 = vld [vmem:[#allocation2 + $0x40] sm:$0xff]
    %v86 = vld [vmem:[#allocation2 + $0x48] sm:$0xff]
    %v87 = vld [vmem:[#allocation2 + $0x50] sm:$0xff]
    %v88 = vld [vmem:[#allocation2 + $0x58] sm:$0xff]
    %v89 = vld [vmem:[#allocation2 + $0x60] sm:$0xff]
    %v90 = vld [vmem:[#allocation2 + $0x68] sm:$0xff]
    %v91 = vld [vmem:[#allocation2 + $0x70] sm:$0xff]
    %v92 = vld [vmem:[#allocation2 + $0x78] sm:$0xff]
    %v93 = vld [vmem:[#allocation5] sm:$0xff]
    %v94 = vld [vmem:[#allocation5 + $0x8] sm:$0xff]
    %95 = vmatprep.subr.mxu0 0.0
    %v96 = vand.u32 %v92, 4294901760
    %97 = vmatpush1.msra.mxu0 %v96
    %98 = vmatprep.subr.mxu0 0.0
    %v99 = vand.u32 %v91, 4294901760
    %100 = vmatpush1.msra.mxu0 %v99
    %101 = vmatprep.subr.mxu0 0.0
    %v102 = vand.u32 %v90, 4294901760
    %103 = vmatpush1.msra.mxu0 %v102
    %104 = vmatprep.subr.mxu0 0.0
    %v105 = vand.u32 %v89, 4294901760
    %106 = vmatpush1.msra.mxu0 %v105
    %107 = vmatprep.subr.mxu0 0.0
    %v108 = vand.u32 %v88, 4294901760
    %109 = vmatpush1.msra.mxu0 %v108
    %110 = vmatprep.subr.mxu0 0.0
    %v111 = vand.u32 %v87, 4294901760
    %112 = vmatpush1.msra.mxu0 %v111
    %113 = vmatprep.subr.mxu0 0.0
    %v114 = vand.u32 %v86, 4294901760
    %115 = vmatpush1.msra.mxu0 %v114
    %116 = vmatprep.subr.mxu0 0.0
    %v117 = vand.u32 %v85, 4294901760
    %118 = vmatpush1.msra.mxu0 %v117
    %119 = vmatprep.subr.mxu0 0.0
    %v120 = vand.u32 %v84, 4294901760
    %121 = vmatpush1.msra.mxu0 %v120
    %122 = vmatprep.subr.mxu0 0.0
    %v123 = vand.u32 %v83, 4294901760
    %124 = vmatpush1.msra.mxu0 %v123
    %125 = vmatprep.subr.mxu0 0.0
    %v126 = vand.u32 %v82, 4294901760
    %127 = vmatpush1.msra.mxu0 %v126
    %128 = vmatprep.subr.mxu0 0.0
    %v129 = vand.u32 %v81, 4294901760
    %130 = vmatpush1.msra.mxu0 %v129
    %131 = vmatprep.subr.mxu0 0.0
    %v132 = vand.u32 %v80, 4294901760
    %133 = vmatpush1.msra.mxu0 %v132
    %134 = vmatprep.subr.mxu0 0.0
    %v135 = vand.u32 %v79, 4294901760
    %136 = vmatpush1.msra.mxu0 %v135
    %137 = vmatprep.subr.mxu0 0.0
    %v138 = vand.u32 %v78, 4294901760
    %139 = vmatpush1.msra.mxu0 %v138
    %140 = vmatprep.subr.mxu0 0.0
    %v141 = vand.u32 %v77, 4294901760
    %142 = vmatpush1.msra.mxu0 %v141
    %143 = vmatprep.subr.mxu0 0.0
    %144 = vmatpush2.msra.mxu0 0.0
    %145 = vmatprep.subr.mxu0 0.0
    %146 = vmatpush2.msra.mxu0 0.0
    %147 = vmatprep.subr.mxu0 0.0
    %148 = vmatpush2.msra.mxu0 0.0
    %149 = vmatprep.subr.mxu0 0.0
    %150 = vmatpush2.msra.mxu0 0.0
    %151 = vmatprep.subr.mxu0 0.0
    %152 = vmatpush2.msra.mxu0 0.0
    %153 = vmatprep.subr.mxu0 0.0
    %154 = vmatpush2.msra.mxu0 0.0
    %155 = vmatprep.subr.mxu0 0.0
    %156 = vmatpush2.msra.mxu0 0.0
    %157 = vmatprep.subr.mxu0 0.0
    %158 = vmatpush2.msra.mxu0 0.0
    %159 = vmatprep.subr.mxu0 0.0
    %160 = vmatpush2.msra.mxu0 0.0
    %161 = vmatprep.subr.mxu0 0.0
    %162 = vmatpush2.msra.mxu0 0.0
    %163 = vmatprep.subr.mxu0 0.0
    %164 = vmatpush2.msra.mxu0 0.0
    %165 = vmatprep.subr.mxu0 0.0
    %166 = vmatpush2.msra.mxu0 0.0
    %167 = vmatprep.subr.mxu0 0.0
    %168 = vmatpush2.msra.mxu0 0.0
    %169 = vmatprep.subr.mxu0 0.0
    %170 = vmatpush2.msra.mxu0 0.0
    %171 = vmatprep.subr.mxu0 0.0
    %172 = vmatpush2.msra.mxu0 0.0
    %173 = vmatprep.subr.mxu0 0.0
    %174 = vmatpush2.msra.mxu0 0.0
    %175 = vmatprep.mubr.f32.mxu0 0.0
    %v176 = vand.u32 %v73, 4294901760
    %v177 = vsub.f32 %v73, %v176
    %v178 = vand.u32 %v177, 4294901760
    %v179 = vsub.f32 %v177, %v178
    %v180 = vand.u32 %v179, 4294901760
    %181 = vmatmul.mubr.f32.gmra.mxu0 %v180
    %v182 = vpop.f32.mrf.mxu0
    %v183 = vadd.f32 0.0, %v182
    %v184 = vpop.f32.mrf.mxu0
    %185 = vmatprep.mubr.f32.mxu0 0.0
    %v186 = vand.u32 %v74, 4294901760
    %v187 = vsub.f32 %v74, %v186
    %v188 = vand.u32 %v187, 4294901760
    %v189 = vsub.f32 %v187, %v188
    %v190 = vand.u32 %v189, 4294901760
    %191 = vmatmul.mubr.f32.gmra.mxu0 %v190
    %v192 = vpop.f32.mrf.mxu0
    %v193 = vadd.f32 0.0, %v192
    %v194 = vpop.f32.mrf.mxu0
    %195 = vdwg.mxu0
    %196 = vmatprep.subr.mxu0 0.0
    %v197 = vand.u32 %v92, 4294901760
    %v198 = vsub.f32 %v92, %v197
    %v199 = vand.u32 %v198, 4294901760
    %v200 = vsub.f32 %v198, %v199
    %v201 = vand.u32 %v200, 4294901760
    %202 = vmatpush1.msra.mxu0 %v201
    %203 = vmatprep.subr.mxu0 0.0
    %v204 = vand.u32 %v91, 4294901760
    %v205 = vsub.f32 %v91, %v204
    %v206 = vand.u32 %v205, 4294901760
    %v207 = vsub.f32 %v205, %v206
    %v208 = vand.u32 %v207, 4294901760
    %209 = vmatpush1.msra.mxu0 %v208
    %210 = vmatprep.subr.mxu0 0.0
    %v211 = vand.u32 %v90, 4294901760
    %v212 = vsub.f32 %v90, %v211
    %v213 = vand.u32 %v212, 4294901760
    %v214 = vsub.f32 %v212, %v213
    %v215 = vand.u32 %v214, 4294901760
    %216 = vmatpush1.msra.mxu0 %v215
    %217 = vmatprep.subr.mxu0 0.0
    %v218 = vand.u32 %v89, 4294901760
    %v219 = vsub.f32 %v89, %v218
    %v220 = vand.u32 %v219, 4294901760
    %v221 = vsub.f32 %v219, %v220
    %v222 = vand.u32 %v221, 4294901760
    %223 = vmatpush1.msra.mxu0 %v222
    %224 = vmatprep.subr.mxu0 0.0
    %v225 = vand.u32 %v88, 4294901760
    %v226 = vsub.f32 %v88, %v225
    %v227 = vand.u32 %v226, 4294901760
    %v228 = vsub.f32 %v226, %v227
    %v229 = vand.u32 %v228, 4294901760
    %230 = vmatpush1.msra.mxu0 %v229
    %231 = vmatprep.subr.mxu0 0.0
    %v232 = vand.u32 %v87, 4294901760
    %v233 = vsub.f32 %v87, %v232
    %v234 = vand.u32 %v233, 4294901760
    %v235 = vsub.f32 %v233, %v234
    %v236 = vand.u32 %v235, 4294901760
    %237 = vmatpush1.msra.mxu0 %v236
    %238 = vmatprep.subr.mxu0 0.0
    %v239 = vand.u32 %v86, 4294901760
    %v240 = vsub.f32 %v86, %v239
    %v241 = vand.u32 %v240, 4294901760
    %v242 = vsub.f32 %v240, %v241
    %v243 = vand.u32 %v242, 4294901760
    %244 = vmatpush1.msra.mxu0 %v243
    %245 = vmatprep.subr.mxu0 0.0
    %v246 = vand.u32 %v85, 4294901760
    %v247 = vsub.f32 %v85, %v246
    %v248 = vand.u32 %v247, 4294901760
    %v249 = vsub.f32 %v247, %v248
    %v250 = vand.u32 %v249, 4294901760
    %251 = vmatpush1.msra.mxu0 %v250
    %252 = vmatprep.subr.mxu0 0.0
    %v253 = vand.u32 %v84, 4294901760
    %v254 = vsub.f32 %v84, %v253
    %v255 = vand.u32 %v254, 4294901760
    %v256 = vsub.f32 %v254, %v255
    %v257 = vand.u32 %v256, 4294901760
    %258 = vmatpush1.msra.mxu0 %v257
    %259 = vmatprep.subr.mxu0 0.0
    %v260 = vand.u32 %v83, 4294901760
    %v261 = vsub.f32 %v83, %v260
    %v262 = vand.u32 %v261, 4294901760
    %v263 = vsub.f32 %v261, %v262
    %v264 = vand.u32 %v263, 4294901760
    %265 = vmatpush1.msra.mxu0 %v264
    %266 = vmatprep.subr.mxu0 0.0
    %v267 = vand.u32 %v82, 4294901760
    %v268 = vsub.f32 %v82, %v267
    %v269 = vand.u32 %v268, 4294901760
    %v270 = vsub.f32 %v268, %v269
    %v271 = vand.u32 %v270, 4294901760
    %272 = vmatpush1.msra.mxu0 %v271
    %273 = vmatprep.subr.mxu0 0.0
    %v274 = vand.u32 %v81, 4294901760
    %v275 = vsub.f32 %v81, %v274
    %v276 = vand.u32 %v275, 4294901760
    %v277 = vsub.f32 %v275, %v276
    %v278 = vand.u32 %v277, 4294901760
    %279 = vmatpush1.msra.mxu0 %v278
    %280 = vmatprep.subr.mxu0 0.0
    %v281 = vand.u32 %v80, 4294901760
    %v282 = vsub.f32 %v80, %v281
    %v283 = vand.u32 %v282, 4294901760
    %v284 = vsub.f32 %v282, %v283
    %v285 = vand.u32 %v284, 4294901760
    %286 = vmatpush1.msra.mxu0 %v285
    %287 = vmatprep.subr.mxu0 0.0
    %v288 = vand.u32 %v79, 4294901760
    %v289 = vsub.f32 %v79, %v288
    %v290 = vand.u32 %v289, 4294901760
    %v291 = vsub.f32 %v289, %v290
    %v292 = vand.u32 %v291, 4294901760
    %293 = vmatpush1.msra.mxu0 %v292
    %294 = vmatprep.subr.mxu0 0.0
    %v295 = vand.u32 %v78, 4294901760
    %v296 = vsub.f32 %v78, %v295
    %v297 = vand.u32 %v296, 4294901760
    %v298 = vsub.f32 %v296, %v297
    %v299 = vand.u32 %v298, 4294901760
    %300 = vmatpush1.msra.mxu0 %v299
    %301 = vmatprep.subr.mxu0 0.0
    %v302 = vand.u32 %v77, 4294901760
    %v303 = vsub.f32 %v77, %v302
    %v304 = vand.u32 %v303, 4294901760
    %v305 = vsub.f32 %v303, %v304
    %v306 = vand.u32 %v305, 4294901760
    %307 = vmatpush1.msra.mxu0 %v306
    %308 = vmatprep.subr.mxu0 0.0
    %309 = vmatpush2.msra.mxu0 0.0
    %310 = vmatprep.subr.mxu0 0.0
    %311 = vmatpush2.msra.mxu0 0.0
    %312 = vmatprep.subr.mxu0 0.0
    %313 = vmatpush2.msra.mxu0 0.0
    %314 = vmatprep.subr.mxu0 0.0
    %315 = vmatpush2.msra.mxu0 0.0
    %316 = vmatprep.subr.mxu0 0.0
    %317 = vmatpush2.msra.mxu0 0.0
    %318 = vmatprep.subr.mxu0 0.0
    %319 = vmatpush2.msra.mxu0 0.0
    %320 = vmatprep.subr.mxu0 0.0
    %321 = vmatpush2.msra.mxu0 0.0
    %322 = vmatprep.subr.mxu0 0.0
    %323 = vmatpush2.msra.mxu0 0.0
    %324 = vmatprep.subr.mxu0 0.0
    %325 = vmatpush2.msra.mxu0 0.0
    %326 = vmatprep.subr.mxu0 0.0
    %327 = vmatpush2.msra.mxu0 0.0
    %328 = vmatprep.subr.mxu0 0.0
    %329 = vmatpush2.msra.mxu0 0.0
    %330 = vmatprep.subr.mxu0 0.0
    %331 = vmatpush2.msra.mxu0 0.0
    %332 = vmatprep.subr.mxu0 0.0
    %333 = vmatpush2.msra.mxu0 0.0
    %334 = vmatprep.subr.mxu0 0.0
    %335 = vmatpush2.msra.mxu0 0.0
    %336 = vmatprep.subr.mxu0 0.0
    %337 = vmatpush2.msra.mxu0 0.0
    %338 = vmatprep.subr.mxu0 0.0
    %339 = vmatpush2.msra.mxu0 0.0
    %340 = vmatprep.mubr.f32.mxu0 0.0
    %v341 = vand.u32 %v73, 4294901760
    %342 = vmatmul.mubr.f32.gmra.mxu0 %v341
    %v343 = vpop.f32.mrf.mxu0
    %v344 = vadd.f32 %v183, %v343
    %v345 = vpop.f32.mrf.mxu0
    %346 = vmatprep.mubr.f32.mxu0 0.0
    %v347 = vand.u32 %v74, 4294901760
    %348 = vmatmul.mubr.f32.gmra.mxu0 %v347
    %v349 = vpop.f32.mrf.mxu0
    %v350 = vadd.f32 %v193, %v349
    %v351 = vpop.f32.mrf.mxu0
    %352 = vdwg.mxu0
    %353 = vmatprep.subr.mxu0 0.0
    %v354 = vand.u32 %v92, 4294901760
    %v355 = vsub.f32 %v92, %v354
    %356 = vmatpush1.msra.mxu0 %v355
    %357 = vmatprep.subr.mxu0 0.0
    %v358 = vand.u32 %v91, 4294901760
    %v359 = vsub.f32 %v91, %v358
    %360 = vmatpush1.msra.mxu0 %v359
    %361 = vmatprep.subr.mxu0 0.0
    %v362 = vand.u32 %v90, 4294901760
    %v363 = vsub.f32 %v90, %v362
    %364 = vmatpush1.msra.mxu0 %v363
    %365 = vmatprep.subr.mxu0 0.0
    %v366 = vand.u32 %v89, 4294901760
    %v367 = vsub.f32 %v89, %v366
    %368 = vmatpush1.msra.mxu0 %v367
    %369 = vmatprep.subr.mxu0 0.0
    %v370 = vand.u32 %v88, 4294901760
    %v371 = vsub.f32 %v88, %v370
    %372 = vmatpush1.msra.mxu0 %v371
    %373 = vmatprep.subr.mxu0 0.0
    %v374 = vand.u32 %v87, 4294901760
    %v375 = vsub.f32 %v87, %v374
    %376 = vmatpush1.msra.mxu0 %v375
    %377 = vmatprep.subr.mxu0 0.0
    %v378 = vand.u32 %v86, 4294901760
    %v379 = vsub.f32 %v86, %v378
    %380 = vmatpush1.msra.mxu0 %v379
    %381 = vmatprep.subr.mxu0 0.0
    %v382 = vand.u32 %v85, 4294901760
    %v383 = vsub.f32 %v85, %v382
    %384 = vmatpush1.msra.mxu0 %v383
    %385 = vmatprep.subr.mxu0 0.0
    %v386 = vand.u32 %v84, 4294901760
    %v387 = vsub.f32 %v84, %v386
    %388 = vmatpush1.msra.mxu0 %v387
    %389 = vmatprep.subr.mxu0 0.0
    %v390 = vand.u32 %v83, 4294901760
    %v391 = vsub.f32 %v83, %v390
    %392 = vmatpush1.msra.mxu0 %v391
    %393 = vmatprep.subr.mxu0 0.0
    %v394 = vand.u32 %v82, 4294901760
    %v395 = vsub.f32 %v82, %v394
    %396 = vmatpush1.msra.mxu0 %v395
    %397 = vmatprep.subr.mxu0 0.0
    %v398 = vand.u32 %v81, 4294901760
    %v399 = vsub.f32 %v81, %v398
    %400 = vmatpush1.msra.mxu0 %v399
    %401 = vmatprep.subr.mxu0 0.0
    %v402 = vand.u32 %v80, 4294901760
    %v403 = vsub.f32 %v80, %v402
    %404 = vmatpush1.msra.mxu0 %v403
    %405 = vmatprep.subr.mxu0 0.0
    %v406 = vand.u32 %v79, 4294901760
    %v407 = vsub.f32 %v79, %v406
    %408 = vmatpush1.msra.mxu0 %v407
    %409 = vmatprep.subr.mxu0 0.0
    %v410 = vand.u32 %v78, 4294901760
    %v411 = vsub.f32 %v78, %v410
    %412 = vmatpush1.msra.mxu0 %v411
    %413 = vmatprep.subr.mxu0 0.0
    %v414 = vand.u32 %v77, 4294901760
    %v415 = vsub.f32 %v77, %v414
    %416 = vmatpush1.msra.mxu0 %v415
    %417 = vmatprep.subr.mxu0 0.0
    %418 = vmatpush2.msra.mxu0 0.0
    %419 = vmatprep.subr.mxu0 0.0
    %420 = vmatpush2.msra.mxu0 0.0
    %421 = vmatprep.subr.mxu0 0.0
    %422 = vmatpush2.msra.mxu0 0.0
    %423 = vmatprep.subr.mxu0 0.0
    %424 = vmatpush2.msra.mxu0 0.0
    %425 = vmatprep.subr.mxu0 0.0
    %426 = vmatpush2.msra.mxu0 0.0
    %427 = vmatprep.subr.mxu0 0.0
    %428 = vmatpush2.msra.mxu0 0.0
    %429 = vmatprep.subr.mxu0 0.0
    %430 = vmatpush2.msra.mxu0 0.0
    %431 = vmatprep.subr.mxu0 0.0
    %432 = vmatpush2.msra.mxu0 0.0
    %433 = vmatprep.subr.mxu0 0.0
    %434 = vmatpush2.msra.mxu0 0.0
    %435 = vmatprep.subr.mxu0 0.0
    %436 = vmatpush2.msra.mxu0 0.0
    %437 = vmatprep.subr.mxu0 0.0
    %438 = vmatpush2.msra.mxu0 0.0
    %439 = vmatprep.subr.mxu0 0.0
    %440 = vmatpush2.msra.mxu0 0.0
    %441 = vmatprep.subr.mxu0 0.0
    %442 = vmatpush2.msra.mxu0 0.0
    %443 = vmatprep.subr.mxu0 0.0
    %444 = vmatpush2.msra.mxu0 0.0
    %445 = vmatprep.subr.mxu0 0.0
    %446 = vmatpush2.msra.mxu0 0.0
    %447 = vmatprep.subr.mxu0 0.0
    %448 = vmatpush2.msra.mxu0 0.0
    %449 = vmatprep.mubr.f32.mxu0 0.0
    %v450 = vand.u32 %v73, 4294901760
    %v451 = vsub.f32 %v73, %v450
    %452 = vmatmul.mubr.f32.gmra.mxu0 %v451
    %v453 = vpop.f32.mrf.mxu0
    %v454 = vadd.f32 %v344, %v453
    %v455 = vpop.f32.mrf.mxu0
    %456 = vmatprep.mubr.f32.mxu0 0.0
    %v457 = vand.u32 %v74, 4294901760
    %v458 = vsub.f32 %v74, %v457
    %459 = vmatmul.mubr.f32.gmra.mxu0 %v458
    %v460 = vpop.f32.mrf.mxu0
    %v461 = vadd.f32 %v350, %v460
    %v462 = vpop.f32.mrf.mxu0
    %463 = vdwg.mxu0
    %464 = vmatprep.subr.mxu0 0.0
    %v465 = vand.u32 %v92, 4294901760
    %466 = vmatpush1.msra.mxu0 %v465
    %467 = vmatprep.subr.mxu0 0.0
    %v468 = vand.u32 %v91, 4294901760
    %469 = vmatpush1.msra.mxu0 %v468
    %470 = vmatprep.subr.mxu0 0.0
    %v471 = vand.u32 %v90, 4294901760
    %472 = vmatpush1.msra.mxu0 %v471
    %473 = vmatprep.subr.mxu0 0.0
    %v474 = vand.u32 %v89, 4294901760
    %475 = vmatpush1.msra.mxu0 %v474
    %476 = vmatprep.subr.mxu0 0.0
    %v477 = vand.u32 %v88, 4294901760
    %478 = vmatpush1.msra.mxu0 %v477
    %479 = vmatprep.subr.mxu0 0.0
    %v480 = vand.u32 %v87, 4294901760
    %481 = vmatpush1.msra.mxu0 %v480
    %482 = vmatprep.subr.mxu0 0.0
    %v483 = vand.u32 %v86, 4294901760
    %484 = vmatpush1.msra.mxu0 %v483
    %485 = vmatprep.subr.mxu0 0.0
    %v486 = vand.u32 %v85, 4294901760
    %487 = vmatpush1.msra.mxu0 %v486
    %488 = vmatprep.subr.mxu0 0.0
    %v489 = vand.u32 %v84, 4294901760
    %490 = vmatpush1.msra.mxu0 %v489
    %491 = vmatprep.subr.mxu0 0.0
    %v492 = vand.u32 %v83, 4294901760
    %493 = vmatpush1.msra.mxu0 %v492
    %494 = vmatprep.subr.mxu0 0.0
    %v495 = vand.u32 %v82, 4294901760
    %496 = vmatpush1.msra.mxu0 %v495
    %497 = vmatprep.subr.mxu0 0.0
    %v498 = vand.u32 %v81, 4294901760
    %499 = vmatpush1.msra.mxu0 %v498
    %500 = vmatprep.subr.mxu0 0.0
    %v501 = vand.u32 %v80, 4294901760
    %502 = vmatpush1.msra.mxu0 %v501
    %503 = vmatprep.subr.mxu0 0.0
    %v504 = vand.u32 %v79, 4294901760
    %505 = vmatpush1.msra.mxu0 %v504
    %506 = vmatprep.subr.mxu0 0.0
    %v507 = vand.u32 %v78, 4294901760
    %508 = vmatpush1.msra.mxu0 %v507
    %509 = vmatprep.subr.mxu0 0.0
    %v510 = vand.u32 %v77, 4294901760
    %511 = vmatpush1.msra.mxu0 %v510
    %512 = vmatprep.subr.mxu0 0.0
    %513 = vmatpush2.msra.mxu0 0.0
    %514 = vmatprep.subr.mxu0 0.0
    %515 = vmatpush2.msra.mxu0 0.0
    %516 = vmatprep.subr.mxu0 0.0
    %517 = vmatpush2.msra.mxu0 0.0
    %518 = vmatprep.subr.mxu0 0.0
    %519 = vmatpush2.msra.mxu0 0.0
    %520 = vmatprep.subr.mxu0 0.0
    %521 = vmatpush2.msra.mxu0 0.0
    %522 = vmatprep.subr.mxu0 0.0
    %523 = vmatpush2.msra.mxu0 0.0
    %524 = vmatprep.subr.mxu0 0.0
    %525 = vmatpush2.msra.mxu0 0.0
    %526 = vmatprep.subr.mxu0 0.0
    %527 = vmatpush2.msra.mxu0 0.0
    %528 = vmatprep.subr.mxu0 0.0
    %529 = vmatpush2.msra.mxu0 0.0
    %530 = vmatprep.subr.mxu0 0.0
    %531 = vmatpush2.msra.mxu0 0.0
    %532 = vmatprep.subr.mxu0 0.0
    %533 = vmatpush2.msra.mxu0 0.0
    %534 = vmatprep.subr.mxu0 0.0
    %535 = vmatpush2.msra.mxu0 0.0
    %536 = vmatprep.subr.mxu0 0.0
    %537 = vmatpush2.msra.mxu0 0.0
    %538 = vmatprep.subr.mxu0 0.0
    %539 = vmatpush2.msra.mxu0 0.0
    %540 = vmatprep.subr.mxu0 0.0
    %541 = vmatpush2.msra.mxu0 0.0
    %542 = vmatprep.subr.mxu0 0.0
    %543 = vmatpush2.msra.mxu0 0.0
    %544 = vmatprep.mubr.f32.mxu0 0.0
    %v545 = vand.u32 %v73, 4294901760
    %v546 = vsub.f32 %v73, %v545
    %v547 = vand.u32 %v546, 4294901760
    %548 = vmatmul.mubr.f32.gmra.mxu0 %v547
    %v549 = vpop.f32.mrf.mxu0
    %v550 = vadd.f32 %v454, %v549
    %v551 = vpop.f32.mrf.mxu0
    %552 = vmatprep.mubr.f32.mxu0 0.0
    %v553 = vand.u32 %v74, 4294901760
    %v554 = vsub.f32 %v74, %v553
    %v555 = vand.u32 %v554, 4294901760
    %556 = vmatmul.mubr.f32.gmra.mxu0 %v555
    %v557 = vpop.f32.mrf.mxu0
    %v558 = vadd.f32 %v461, %v557
    %v559 = vpop.f32.mrf.mxu0
    %560 = vdwg.mxu0
    %561 = vmatprep.subr.mxu0 0.0
    %v562 = vand.u32 %v92, 4294901760
    %v563 = vsub.f32 %v92, %v562
    %v564 = vand.u32 %v563, 4294901760
    %565 = vmatpush1.msra.mxu0 %v564
    %566 = vmatprep.subr.mxu0 0.0
    %v567 = vand.u32 %v91, 4294901760
    %v568 = vsub.f32 %v91, %v567
    %v569 = vand.u32 %v568, 4294901760
    %570 = vmatpush1.msra.mxu0 %v569
    %571 = vmatprep.subr.mxu0 0.0
    %v572 = vand.u32 %v90, 4294901760
    %v573 = vsub.f32 %v90, %v572
    %v574 = vand.u32 %v573, 4294901760
    %575 = vmatpush1.msra.mxu0 %v574
    %576 = vmatprep.subr.mxu0 0.0
    %v577 = vand.u32 %v89, 4294901760
    %v578 = vsub.f32 %v89, %v577
    %v579 = vand.u32 %v578, 4294901760
    %580 = vmatpush1.msra.mxu0 %v579
    %581 = vmatprep.subr.mxu0 0.0
    %v582 = vand.u32 %v88, 4294901760
    %v583 = vsub.f32 %v88, %v582
    %v584 = vand.u32 %v583, 4294901760
    %585 = vmatpush1.msra.mxu0 %v584
    %586 = vmatprep.subr.mxu0 0.0
    %v587 = vand.u32 %v87, 4294901760
    %v588 = vsub.f32 %v87, %v587
    %v589 = vand.u32 %v588, 4294901760
    %590 = vmatpush1.msra.mxu0 %v589
    %591 = vmatprep.subr.mxu0 0.0
    %v592 = vand.u32 %v86, 4294901760
    %v593 = vsub.f32 %v86, %v592
    %v594 = vand.u32 %v593, 4294901760
    %595 = vmatpush1.msra.mxu0 %v594
    %596 = vmatprep.subr.mxu0 0.0
    %v597 = vand.u32 %v85, 4294901760
    %v598 = vsub.f32 %v85, %v597
    %v599 = vand.u32 %v598, 4294901760
    %600 = vmatpush1.msra.mxu0 %v599
    %601 = vmatprep.subr.mxu0 0.0
    %v602 = vand.u32 %v84, 4294901760
    %v603 = vsub.f32 %v84, %v602
    %v604 = vand.u32 %v603, 4294901760
    %605 = vmatpush1.msra.mxu0 %v604
    %606 = vmatprep.subr.mxu0 0.0
    %v607 = vand.u32 %v83, 4294901760
    %v608 = vsub.f32 %v83, %v607
    %v609 = vand.u32 %v608, 4294901760
    %610 = vmatpush1.msra.mxu0 %v609
    %611 = vmatprep.subr.mxu0 0.0
    %v612 = vand.u32 %v82, 4294901760
    %v613 = vsub.f32 %v82, %v612
    %v614 = vand.u32 %v613, 4294901760
    %615 = vmatpush1.msra.mxu0 %v614
    %616 = vmatprep.subr.mxu0 0.0
    %v617 = vand.u32 %v81, 4294901760
    %v618 = vsub.f32 %v81, %v617
    %v619 = vand.u32 %v618, 4294901760
    %620 = vmatpush1.msra.mxu0 %v619
    %621 = vmatprep.subr.mxu0 0.0
    %v622 = vand.u32 %v80, 4294901760
    %v623 = vsub.f32 %v80, %v622
    %v624 = vand.u32 %v623, 4294901760
    %625 = vmatpush1.msra.mxu0 %v624
    %626 = vmatprep.subr.mxu0 0.0
    %v627 = vand.u32 %v79, 4294901760
    %v628 = vsub.f32 %v79, %v627
    %v629 = vand.u32 %v628, 4294901760
    %630 = vmatpush1.msra.mxu0 %v629
    %631 = vmatprep.subr.mxu0 0.0
    %v632 = vand.u32 %v78, 4294901760
    %v633 = vsub.f32 %v78, %v632
    %v634 = vand.u32 %v633, 4294901760
    %635 = vmatpush1.msra.mxu0 %v634
    %636 = vmatprep.subr.mxu0 0.0
    %v637 = vand.u32 %v77, 4294901760
    %v638 = vsub.f32 %v77, %v637
    %v639 = vand.u32 %v638, 4294901760
    %640 = vmatpush1.msra.mxu0 %v639
    %641 = vmatprep.subr.mxu0 0.0
    %642 = vmatpush2.msra.mxu0 0.0
    %643 = vmatprep.subr.mxu0 0.0
    %644 = vmatpush2.msra.mxu0 0.0
    %645 = vmatprep.subr.mxu0 0.0
    %646 = vmatpush2.msra.mxu0 0.0
    %647 = vmatprep.subr.mxu0 0.0
    %648 = vmatpush2.msra.mxu0 0.0
    %649 = vmatprep.subr.mxu0 0.0
    %650 = vmatpush2.msra.mxu0 0.0
    %651 = vmatprep.subr.mxu0 0.0
    %652 = vmatpush2.msra.mxu0 0.0
    %653 = vmatprep.subr.mxu0 0.0
    %654 = vmatpush2.msra.mxu0 0.0
    %655 = vmatprep.subr.mxu0 0.0
    %656 = vmatpush2.msra.mxu0 0.0
    %657 = vmatprep.subr.mxu0 0.0
    %658 = vmatpush2.msra.mxu0 0.0
    %659 = vmatprep.subr.mxu0 0.0
    %660 = vmatpush2.msra.mxu0 0.0
    %661 = vmatprep.subr.mxu0 0.0
    %662 = vmatpush2.msra.mxu0 0.0
    %663 = vmatprep.subr.mxu0 0.0
    %664 = vmatpush2.msra.mxu0 0.0
    %665 = vmatprep.subr.mxu0 0.0
    %666 = vmatpush2.msra.mxu0 0.0
    %667 = vmatprep.subr.mxu0 0.0
    %668 = vmatpush2.msra.mxu0 0.0
    %669 = vmatprep.subr.mxu0 0.0
    %670 = vmatpush2.msra.mxu0 0.0
    %671 = vmatprep.subr.mxu0 0.0
    %672 = vmatpush2.msra.mxu0 0.0
    %673 = vmatprep.mubr.f32.mxu0 0.0
    %v674 = vand.u32 %v73, 4294901760
    %675 = vmatmul.mubr.f32.gmra.mxu0 %v674
    %v676 = vpop.f32.mrf.mxu0
    %v677 = vadd.f32 %v550, %v676
    %v678 = vpop.f32.mrf.mxu0
    %679 = vmatprep.mubr.f32.mxu0 0.0
    %v680 = vand.u32 %v74, 4294901760
    %681 = vmatmul.mubr.f32.gmra.mxu0 %v680
    %v682 = vpop.f32.mrf.mxu0
    %v683 = vadd.f32 %v558, %v682
    %v684 = vpop.f32.mrf.mxu0
    %685 = vdwg.mxu0
    %686 = vmatprep.subr.mxu0 0.0
    %v687 = vand.u32 %v92, 4294901760
    %688 = vmatpush1.msra.mxu0 %v687
    %689 = vmatprep.subr.mxu0 0.0
    %v690 = vand.u32 %v91, 4294901760
    %691 = vmatpush1.msra.mxu0 %v690
    %692 = vmatprep.subr.mxu0 0.0
    %v693 = vand.u32 %v90, 4294901760
    %694 = vmatpush1.msra.mxu0 %v693
    %695 = vmatprep.subr.mxu0 0.0
    %v696 = vand.u32 %v89, 4294901760
    %697 = vmatpush1.msra.mxu0 %v696
    %698 = vmatprep.subr.mxu0 0.0
    %v699 = vand.u32 %v88, 4294901760
    %700 = vmatpush1.msra.mxu0 %v699
    %701 = vmatprep.subr.mxu0 0.0
    %v702 = vand.u32 %v87, 4294901760
    %703 = vmatpush1.msra.mxu0 %v702
    %704 = vmatprep.subr.mxu0 0.0
    %v705 = vand.u32 %v86, 4294901760
    %706 = vmatpush1.msra.mxu0 %v705
    %707 = vmatprep.subr.mxu0 0.0
    %v708 = vand.u32 %v85, 4294901760
    %709 = vmatpush1.msra.mxu0 %v708
    %710 = vmatprep.subr.mxu0 0.0
    %v711 = vand.u32 %v84, 4294901760
    %712 = vmatpush1.msra.mxu0 %v711
    %713 = vmatprep.subr.mxu0 0.0
    %v714 = vand.u32 %v83, 4294901760
    %715 = vmatpush1.msra.mxu0 %v714
    %716 = vmatprep.subr.mxu0 0.0
    %v717 = vand.u32 %v82, 4294901760
    %718 = vmatpush1.msra.mxu0 %v717
    %719 = vmatprep.subr.mxu0 0.0
    %v720 = vand.u32 %v81, 4294901760
    %721 = vmatpush1.msra.mxu0 %v720
    %722 = vmatprep.subr.mxu0 0.0
    %v723 = vand.u32 %v80, 4294901760
    %724 = vmatpush1.msra.mxu0 %v723
    %725 = vmatprep.subr.mxu0 0.0
    %v726 = vand.u32 %v79, 4294901760
    %727 = vmatpush1.msra.mxu0 %v726
    %728 = vmatprep.subr.mxu0 0.0
    %v729 = vand.u32 %v78, 4294901760
    %730 = vmatpush1.msra.mxu0 %v729
    %731 = vmatprep.subr.mxu0 0.0
    %v732 = vand.u32 %v77, 4294901760
    %733 = vmatpush1.msra.mxu0 %v732
    %734 = vmatprep.subr.mxu0 0.0
    %735 = vmatpush2.msra.mxu0 0.0
    %736 = vmatprep.subr.mxu0 0.0
    %737 = vmatpush2.msra.mxu0 0.0
    %738 = vmatprep.subr.mxu0 0.0
    %739 = vmatpush2.msra.mxu0 0.0
    %740 = vmatprep.subr.mxu0 0.0
    %741 = vmatpush2.msra.mxu0 0.0
    %742 = vmatprep.subr.mxu0 0.0
    %743 = vmatpush2.msra.mxu0 0.0
    %744 = vmatprep.subr.mxu0 0.0
    %745 = vmatpush2.msra.mxu0 0.0
    %746 = vmatprep.subr.mxu0 0.0
    %747 = vmatpush2.msra.mxu0 0.0
    %748 = vmatprep.subr.mxu0 0.0
    %749 = vmatpush2.msra.mxu0 0.0
    %750 = vmatprep.subr.mxu0 0.0
    %751 = vmatpush2.msra.mxu0 0.0
    %752 = vmatprep.subr.mxu0 0.0
    %753 = vmatpush2.msra.mxu0 0.0
    %754 = vmatprep.subr.mxu0 0.0
    %755 = vmatpush2.msra.mxu0 0.0
    %756 = vmatprep.subr.mxu0 0.0
    %757 = vmatpush2.msra.mxu0 0.0
    %758 = vmatprep.subr.mxu0 0.0
    %759 = vmatpush2.msra.mxu0 0.0
    %760 = vmatprep.subr.mxu0 0.0
    %761 = vmatpush2.msra.mxu0 0.0
    %762 = vmatprep.subr.mxu0 0.0
    %763 = vmatpush2.msra.mxu0 0.0
    %764 = vmatprep.subr.mxu0 0.0
    %765 = vmatpush2.msra.mxu0 0.0
    %766 = vmatprep.mubr.f32.mxu0 0.0
    %v767 = vand.u32 %v73, 4294901760
    %768 = vmatmul.mubr.f32.gmra.mxu0 %v767
    %v769 = vpop.f32.mrf.mxu0
    %v770 = vadd.f32 %v677, %v769
    %v771 = vpop.f32.mrf.mxu0
    %772 = vmatprep.mubr.f32.mxu0 0.0
    %v773 = vand.u32 %v74, 4294901760
    %774 = vmatmul.mubr.f32.gmra.mxu0 %v773
    %v775 = vpop.f32.mrf.mxu0
    %v776 = vadd.f32 %v683, %v775
    %v777 = vpop.f32.mrf.mxu0
    %778 = vdwg.mxu0
    %vm779 = vcmask 130048
    %v781 = vsel %vm779, %v93, 0
    %v784 = vsel %vm779, %v94, 0
    %786 = vmatprep.subr.mxu0 0.0
    %787 = vmatpush1.msra.mxu0 0.0
    %788 = vmatprep.subr.mxu0 0.0
    %789 = vmatpush1.msra.mxu0 0.0
    %790 = vmatprep.subr.mxu0 0.0
    %791 = vmatpush1.msra.mxu0 0.0
    %792 = vmatprep.subr.mxu0 0.0
    %793 = vmatpush1.msra.mxu0 0.0
    %794 = vmatprep.subr.mxu0 0.0
    %795 = vmatpush1.msra.mxu0 0.0
    %796 = vmatprep.subr.mxu0 0.0
    %797 = vmatpush1.msra.mxu0 0.0
    %798 = vmatprep.subr.mxu0 0.0
    %799 = vmatpush1.msra.mxu0 0.0
    %800 = vmatprep.subr.mxu0 0.0
    %801 = vmatpush1.msra.mxu0 0.0
    %802 = vmatprep.subr.mxu0 0.0
    %803 = vmatpush1.msra.mxu0 0.0
    %804 = vmatprep.subr.mxu0 0.0
    %805 = vmatpush1.msra.mxu0 0.0
    %806 = vmatprep.subr.mxu0 0.0
    %807 = vmatpush1.msra.mxu0 0.0
    %808 = vmatprep.subr.mxu0 0.0
    %809 = vmatpush1.msra.mxu0 0.0
    %810 = vmatprep.subr.mxu0 0.0
    %811 = vmatpush1.msra.mxu0 0.0
    %812 = vmatprep.subr.mxu0 0.0
    %813 = vmatpush1.msra.mxu0 0.0
    %814 = vmatprep.subr.mxu0 0.0
    %v815 = vand.u32 %v776, 4294901760
    %816 = vmatpush1.msra.mxu0 %v815
    %817 = vmatprep.subr.mxu0 0.0
    %v818 = vand.u32 %v770, 4294901760
    %819 = vmatpush1.msra.mxu0 %v818
    %820 = vmatprep.subr.mxu0 0.0
    %821 = vmatpush2.msra.mxu0 0.0
    %822 = vmatprep.subr.mxu0 0.0
    %823 = vmatpush2.msra.mxu0 0.0
    %824 = vmatprep.subr.mxu0 0.0
    %825 = vmatpush2.msra.mxu0 0.0
    %826 = vmatprep.subr.mxu0 0.0
    %827 = vmatpush2.msra.mxu0 0.0
    %828 = vmatprep.subr.mxu0 0.0
    %829 = vmatpush2.msra.mxu0 0.0
    %830 = vmatprep.subr.mxu0 0.0
    %831 = vmatpush2.msra.mxu0 0.0
    %832 = vmatprep.subr.mxu0 0.0
    %833 = vmatpush2.msra.mxu0 0.0
    %834 = vmatprep.subr.mxu0 0.0
    %835 = vmatpush2.msra.mxu0 0.0
    %836 = vmatprep.subr.mxu0 0.0
    %837 = vmatpush2.msra.mxu0 0.0
    %838 = vmatprep.subr.mxu0 0.0
    %839 = vmatpush2.msra.mxu0 0.0
    %840 = vmatprep.subr.mxu0 0.0
    %841 = vmatpush2.msra.mxu0 0.0
    %842 = vmatprep.subr.mxu0 0.0
    %843 = vmatpush2.msra.mxu0 0.0
    %844 = vmatprep.subr.mxu0 0.0
    %845 = vmatpush2.msra.mxu0 0.0
    %846 = vmatprep.subr.mxu0 0.0
    %847 = vmatpush2.msra.mxu0 0.0
    %848 = vmatprep.subr.mxu0 0.0
    %849 = vmatpush2.msra.mxu0 0.0
    %850 = vmatprep.subr.mxu0 0.0
    %851 = vmatpush2.msra.mxu0 0.0
    %852 = vmatprep.mubr.f32.mxu0 0.0
    %v853 = vand.u32 %v781, 4294901760
    %v854 = vsub.f32 %v781, %v853
    %v855 = vand.u32 %v854, 4294901760
    %v856 = vsub.f32 %v854, %v855
    %v857 = vand.u32 %v856, 4294901760
    %858 = vmatmul.mubr.f32.gmra.mxu0 %v857
    %v859 = vpop.f32.mrf.mxu0
    %v860 = vadd.f32 0.0, %v859
    %v861 = vpop.f32.mrf.mxu0
    %862 = vmatprep.mubr.f32.mxu0 0.0
    %v863 = vand.u32 %v784, 4294901760
    %v864 = vsub.f32 %v784, %v863
    %v865 = vand.u32 %v864, 4294901760
    %v866 = vsub.f32 %v864, %v865
    %v867 = vand.u32 %v866, 4294901760
    %868 = vmatmul.mubr.f32.gmra.mxu0 %v867
    %v869 = vpop.f32.mrf.mxu0
    %v870 = vadd.f32 0.0, %v869
    %v871 = vpop.f32.mrf.mxu0
    %872 = vdwg.mxu0
    %873 = vmatprep.subr.mxu0 0.0
    %874 = vmatpush1.msra.mxu0 0.0
    %875 = vmatprep.subr.mxu0 0.0
    %876 = vmatpush1.msra.mxu0 0.0
    %877 = vmatprep.subr.mxu0 0.0
    %878 = vmatpush1.msra.mxu0 0.0
    %879 = vmatprep.subr.mxu0 0.0
    %880 = vmatpush1.msra.mxu0 0.0
    %881 = vmatprep.subr.mxu0 0.0
    %882 = vmatpush1.msra.mxu0 0.0
    %883 = vmatprep.subr.mxu0 0.0
    %884 = vmatpush1.msra.mxu0 0.0
    %885 = vmatprep.subr.mxu0 0.0
    %886 = vmatpush1.msra.mxu0 0.0
    %887 = vmatprep.subr.mxu0 0.0
    %888 = vmatpush1.msra.mxu0 0.0
    %889 = vmatprep.subr.mxu0 0.0
    %890 = vmatpush1.msra.mxu0 0.0
    %891 = vmatprep.subr.mxu0 0.0
    %892 = vmatpush1.msra.mxu0 0.0
    %893 = vmatprep.subr.mxu0 0.0
    %894 = vmatpush1.msra.mxu0 0.0
    %895 = vmatprep.subr.mxu0 0.0
    %896 = vmatpush1.msra.mxu0 0.0
    %897 = vmatprep.subr.mxu0 0.0
    %898 = vmatpush1.msra.mxu0 0.0
    %899 = vmatprep.subr.mxu0 0.0
    %900 = vmatpush1.msra.mxu0 0.0
    %901 = vmatprep.subr.mxu0 0.0
    %v902 = vand.u32 %v776, 4294901760
    %v903 = vsub.f32 %v776, %v902
    %v904 = vand.u32 %v903, 4294901760
    %v905 = vsub.f32 %v903, %v904
    %v906 = vand.u32 %v905, 4294901760
    %907 = vmatpush1.msra.mxu0 %v906
    %908 = vmatprep.subr.mxu0 0.0
    %v909 = vand.u32 %v770, 4294901760
    %v910 = vsub.f32 %v770, %v909
    %v911 = vand.u32 %v910, 4294901760
    %v912 = vsub.f32 %v910, %v911
    %v913 = vand.u32 %v912, 4294901760
    %914 = vmatpush1.msra.mxu0 %v913
    %915 = vmatprep.subr.mxu0 0.0
    %916 = vmatpush2.msra.mxu0 0.0
    %917 = vmatprep.subr.mxu0 0.0
    %918 = vmatpush2.msra.mxu0 0.0
    %919 = vmatprep.subr.mxu0 0.0
    %920 = vmatpush2.msra.mxu0 0.0
    %921 = vmatprep.subr.mxu0 0.0
    %922 = vmatpush2.msra.mxu0 0.0
    %923 = vmatprep.subr.mxu0 0.0
    %924 = vmatpush2.msra.mxu0 0.0
    %925 = vmatprep.subr.mxu0 0.0
    %926 = vmatpush2.msra.mxu0 0.0
    %927 = vmatprep.subr.mxu0 0.0
    %928 = vmatpush2.msra.mxu0 0.0
    %929 = vmatprep.subr.mxu0 0.0
    %930 = vmatpush2.msra.mxu0 0.0
    %931 = vmatprep.subr.mxu0 0.0
    %932 = vmatpush2.msra.mxu0 0.0
    %933 = vmatprep.subr.mxu0 0.0
    %934 = vmatpush2.msra.mxu0 0.0
    %935 = vmatprep.subr.mxu0 0.0
    %936 = vmatpush2.msra.mxu0 0.0
    %937 = vmatprep.subr.mxu0 0.0
    %938 = vmatpush2.msra.mxu0 0.0
    %939 = vmatprep.subr.mxu0 0.0
    %940 = vmatpush2.msra.mxu0 0.0
    %941 = vmatprep.subr.mxu0 0.0
    %942 = vmatpush2.msra.mxu0 0.0
    %943 = vmatprep.subr.mxu0 0.0
    %944 = vmatpush2.msra.mxu0 0.0
    %945 = vmatprep.subr.mxu0 0.0
    %946 = vmatpush2.msra.mxu0 0.0
    %947 = vmatprep.mubr.f32.mxu0 0.0
    %v948 = vand.u32 %v781, 4294901760
    %949 = vmatmul.mubr.f32.gmra.mxu0 %v948
    %v950 = vpop.f32.mrf.mxu0
    %v951 = vadd.f32 %v860, %v950
    %v952 = vpop.f32.mrf.mxu0
    %953 = vmatprep.mubr.f32.mxu0 0.0
    %v954 = vand.u32 %v784, 4294901760
    %955 = vmatmul.mubr.f32.gmra.mxu0 %v954
    %v956 = vpop.f32.mrf.mxu0
    %v957 = vadd.f32 %v870, %v956
    %v958 = vpop.f32.mrf.mxu0
    %959 = vdwg.mxu0
    %960 = vmatprep.subr.mxu0 0.0
    %961 = vmatpush1.msra.mxu0 0.0
    %962 = vmatprep.subr.mxu0 0.0
    %963 = vmatpush1.msra.mxu0 0.0
    %964 = vmatprep.subr.mxu0 0.0
    %965 = vmatpush1.msra.mxu0 0.0
    %966 = vmatprep.subr.mxu0 0.0
    %967 = vmatpush1.msra.mxu0 0.0
    %968 = vmatprep.subr.mxu0 0.0
    %969 = vmatpush1.msra.mxu0 0.0
    %970 = vmatprep.subr.mxu0 0.0
    %971 = vmatpush1.msra.mxu0 0.0
    %972 = vmatprep.subr.mxu0 0.0
    %973 = vmatpush1.msra.mxu0 0.0
    %974 = vmatprep.subr.mxu0 0.0
    %975 = vmatpush1.msra.mxu0 0.0
    %976 = vmatprep.subr.mxu0 0.0
    %977 = vmatpush1.msra.mxu0 0.0
    %978 = vmatprep.subr.mxu0 0.0
    %979 = vmatpush1.msra.mxu0 0.0
    %980 = vmatprep.subr.mxu0 0.0
    %981 = vmatpush1.msra.mxu0 0.0
    %982 = vmatprep.subr.mxu0 0.0
    %983 = vmatpush1.msra.mxu0 0.0
    %984 = vmatprep.subr.mxu0 0.0
    %985 = vmatpush1.msra.mxu0 0.0
    %986 = vmatprep.subr.mxu0 0.0
    %987 = vmatpush1.msra.mxu0 0.0
    %988 = vmatprep.subr.mxu0 0.0
    %v989 = vand.u32 %v776, 4294901760
    %v990 = vsub.f32 %v776, %v989
    %991 = vmatpush1.msra.mxu0 %v990
    %992 = vmatprep.subr.mxu0 0.0
    %v993 = vand.u32 %v770, 4294901760
    %v994 = vsub.f32 %v770, %v993
    %995 = vmatpush1.msra.mxu0 %v994
    %996 = vmatprep.subr.mxu0 0.0
    %997 = vmatpush2.msra.mxu0 0.0
    %998 = vmatprep.subr.mxu0 0.0
    %999 = vmatpush2.msra.mxu0 0.0
    %1000 = vmatprep.subr.mxu0 0.0
    %1001 = vmatpush2.msra.mxu0 0.0
    %1002 = vmatprep.subr.mxu0 0.0
    %1003 = vmatpush2.msra.mxu0 0.0
    %1004 = vmatprep.subr.mxu0 0.0
    %1005 = vmatpush2.msra.mxu0 0.0
    %1006 = vmatprep.subr.mxu0 0.0
    %1007 = vmatpush2.msra.mxu0 0.0
    %1008 = vmatprep.subr.mxu0 0.0
    %1009 = vmatpush2.msra.mxu0 0.0
    %1010 = vmatprep.subr.mxu0 0.0
    %1011 = vmatpush2.msra.mxu0 0.0
    %1012 = vmatprep.subr.mxu0 0.0
    %1013 = vmatpush2.msra.mxu0 0.0
    %1014 = vmatprep.subr.mxu0 0.0
    %1015 = vmatpush2.msra.mxu0 0.0
    %1016 = vmatprep.subr.mxu0 0.0
    %1017 = vmatpush2.msra.mxu0 0.0
    %1018 = vmatprep.subr.mxu0 0.0
    %1019 = vmatpush2.msra.mxu0 0.0
    %1020 = vmatprep.subr.mxu0 0.0
    %1021 = vmatpush2.msra.mxu0 0.0
    %1022 = vmatprep.subr.mxu0 0.0
    %1023 = vmatpush2.msra.mxu0 0.0
    %1024 = vmatprep.subr.mxu0 0.0
    %1025 = vmatpush2.msra.mxu0 0.0
    %1026 = vmatprep.subr.mxu0 0.0
    %1027 = vmatpush2.msra.mxu0 0.0
    %1028 = vmatprep.mubr.f32.mxu0 0.0
    %v1029 = vand.u32 %v781, 4294901760
    %v1030 = vsub.f32 %v781, %v1029
    %1031 = vmatmul.mubr.f32.gmra.mxu0 %v1030
    %v1032 = vpop.f32.mrf.mxu0
    %v1033 = vadd.f32 %v951, %v1032
    %v1034 = vpop.f32.mrf.mxu0
    %1035 = vmatprep.mubr.f32.mxu0 0.0
    %v1036 = vand.u32 %v784, 4294901760
    %v1037 = vsub.f32 %v784, %v1036
    %1038 = vmatmul.mubr.f32.gmra.mxu0 %v1037
    %v1039 = vpop.f32.mrf.mxu0
    %v1040 = vadd.f32 %v957, %v1039
    %v1041 = vpop.f32.mrf.mxu0
    %1042 = vdwg.mxu0
    %1043 = vmatprep.subr.mxu0 0.0
    %1044 = vmatpush1.msra.mxu0 0.0
    %1045 = vmatprep.subr.mxu0 0.0
    %1046 = vmatpush1.msra.mxu0 0.0
    %1047 = vmatprep.subr.mxu0 0.0
    %1048 = vmatpush1.msra.mxu0 0.0
    %1049 = vmatprep.subr.mxu0 0.0
    %1050 = vmatpush1.msra.mxu0 0.0
    %1051 = vmatprep.subr.mxu0 0.0
    %1052 = vmatpush1.msra.mxu0 0.0
    %1053 = vmatprep.subr.mxu0 0.0
    %1054 = vmatpush1.msra.mxu0 0.0
    %1055 = vmatprep.subr.mxu0 0.0
    %1056 = vmatpush1.msra.mxu0 0.0
    %1057 = vmatprep.subr.mxu0 0.0
    %1058 = vmatpush1.msra.mxu0 0.0
    %1059 = vmatprep.subr.mxu0 0.0
    %1060 = vmatpush1.msra.mxu0 0.0
    %1061 = vmatprep.subr.mxu0 0.0
    %1062 = vmatpush1.msra.mxu0 0.0
    %1063 = vmatprep.subr.mxu0 0.0
    %1064 = vmatpush1.msra.mxu0 0.0
    %1065 = vmatprep.subr.mxu0 0.0
    %1066 = vmatpush1.msra.mxu0 0.0
    %1067 = vmatprep.subr.mxu0 0.0
    %1068 = vmatpush1.msra.mxu0 0.0
    %1069 = vmatprep.subr.mxu0 0.0
    %1070 = vmatpush1.msra.mxu0 0.0
    %1071 = vmatprep.subr.mxu0 0.0
    %v1072 = vand.u32 %v776, 4294901760
    %1073 = vmatpush1.msra.mxu0 %v1072
    %1074 = vmatprep.subr.mxu0 0.0
    %v1075 = vand.u32 %v770, 4294901760
    %1076 = vmatpush1.msra.mxu0 %v1075
    %1077 = vmatprep.subr.mxu0 0.0
    %1078 = vmatpush2.msra.mxu0 0.0
    %1079 = vmatprep.subr.mxu0 0.0
    %1080 = vmatpush2.msra.mxu0 0.0
    %1081 = vmatprep.subr.mxu0 0.0
    %1082 = vmatpush2.msra.mxu0 0.0
    %1083 = vmatprep.subr.mxu0 0.0
    %1084 = vmatpush2.msra.mxu0 0.0
    %1085 = vmatprep.subr.mxu0 0.0
    %1086 = vmatpush2.msra.mxu0 0.0
    %1087 = vmatprep.subr.mxu0 0.0
    %1088 = vmatpush2.msra.mxu0 0.0
    %1089 = vmatprep.subr.mxu0 0.0
    %1090 = vmatpush2.msra.mxu0 0.0
    %1091 = vmatprep.subr.mxu0 0.0
    %1092 = vmatpush2.msra.mxu0 0.0
    %1093 = vmatprep.subr.mxu0 0.0
    %1094 = vmatpush2.msra.mxu0 0.0
    %1095 = vmatprep.subr.mxu0 0.0
    %1096 = vmatpush2.msra.mxu0 0.0
    %1097 = vmatprep.subr.mxu0 0.0
    %1098 = vmatpush2.msra.mxu0 0.0
    %1099 = vmatprep.subr.mxu0 0.0
    %1100 = vmatpush2.msra.mxu0 0.0
    %1101 = vmatprep.subr.mxu0 0.0
    %1102 = vmatpush2.msra.mxu0 0.0
    %1103 = vmatprep.subr.mxu0 0.0
    %1104 = vmatpush2.msra.mxu0 0.0
    %1105 = vmatprep.subr.mxu0 0.0
    %1106 = vmatpush2.msra.mxu0 0.0
    %1107 = vmatprep.subr.mxu0 0.0
    %1108 = vmatpush2.msra.mxu0 0.0
    %1109 = vmatprep.mubr.f32.mxu0 0.0
    %v1110 = vand.u32 %v781, 4294901760
    %v1111 = vsub.f32 %v781, %v1110
    %v1112 = vand.u32 %v1111, 4294901760
    %1113 = vmatmul.mubr.f32.gmra.mxu0 %v1112
    %v1114 = vpop.f32.mrf.mxu0
    %v1115 = vadd.f32 %v1033, %v1114
    %v1116 = vpop.f32.mrf.mxu0
    %1117 = vmatprep.mubr.f32.mxu0 0.0
    %v1118 = vand.u32 %v784, 4294901760
    %v1119 = vsub.f32 %v784, %v1118
    %v1120 = vand.u32 %v1119, 4294901760
    %1121 = vmatmul.mubr.f32.gmra.mxu0 %v1120
    %v1122 = vpop.f32.mrf.mxu0
    %v1123 = vadd.f32 %v1040, %v1122
    %v1124 = vpop.f32.mrf.mxu0
    %1125 = vdwg.mxu0
    %1126 = vmatprep.subr.mxu0 0.0
    %1127 = vmatpush1.msra.mxu0 0.0
    %1128 = vmatprep.subr.mxu0 0.0
    %1129 = vmatpush1.msra.mxu0 0.0
    %1130 = vmatprep.subr.mxu0 0.0
    %1131 = vmatpush1.msra.mxu0 0.0
    %1132 = vmatprep.subr.mxu0 0.0
    %1133 = vmatpush1.msra.mxu0 0.0
    %1134 = vmatprep.subr.mxu0 0.0
    %1135 = vmatpush1.msra.mxu0 0.0
    %1136 = vmatprep.subr.mxu0 0.0
    %1137 = vmatpush1.msra.mxu0 0.0
    %1138 = vmatprep.subr.mxu0 0.0
    %1139 = vmatpush1.msra.mxu0 0.0
    %1140 = vmatprep.subr.mxu0 0.0
    %1141 = vmatpush1.msra.mxu0 0.0
    %1142 = vmatprep.subr.mxu0 0.0
    %1143 = vmatpush1.msra.mxu0 0.0
    %1144 = vmatprep.subr.mxu0 0.0
    %1145 = vmatpush1.msra.mxu0 0.0
    %1146 = vmatprep.subr.mxu0 0.0
    %1147 = vmatpush1.msra.mxu0 0.0
    %1148 = vmatprep.subr.mxu0 0.0
    %1149 = vmatpush1.msra.mxu0 0.0
    %1150 = vmatprep.subr.mxu0 0.0
    %1151 = vmatpush1.msra.mxu0 0.0
    %1152 = vmatprep.subr.mxu0 0.0
    %1153 = vmatpush1.msra.mxu0 0.0
    %1154 = vmatprep.subr.mxu0 0.0
    %v1155 = vand.u32 %v776, 4294901760
    %v1156 = vsub.f32 %v776, %v1155
    %v1157 = vand.u32 %v1156, 4294901760
    %1158 = vmatpush1.msra.mxu0 %v1157
    %1159 = vmatprep.subr.mxu0 0.0
    %v1160 = vand.u32 %v770, 4294901760
    %v1161 = vsub.f32 %v770, %v1160
    %v1162 = vand.u32 %v1161, 4294901760
    %1163 = vmatpush1.msra.mxu0 %v1162
    %1164 = vmatprep.subr.mxu0 0.0
    %1165 = vmatpush2.msra.mxu0 0.0
    %1166 = vmatprep.subr.mxu0 0.0
    %1167 = vmatpush2.msra.mxu0 0.0
    %1168 = vmatprep.subr.mxu0 0.0
    %1169 = vmatpush2.msra.mxu0 0.0
    %1170 = vmatprep.subr.mxu0 0.0
    %1171 = vmatpush2.msra.mxu0 0.0
    %1172 = vmatprep.subr.mxu0 0.0
    %1173 = vmatpush2.msra.mxu0 0.0
    %1174 = vmatprep.subr.mxu0 0.0
    %1175 = vmatpush2.msra.mxu0 0.0
    %1176 = vmatprep.subr.mxu0 0.0
    %1177 = vmatpush2.msra.mxu0 0.0
    %1178 = vmatprep.subr.mxu0 0.0
    %1179 = vmatpush2.msra.mxu0 0.0
    %1180 = vmatprep.subr.mxu0 0.0
    %1181 = vmatpush2.msra.mxu0 0.0
    %1182 = vmatprep.subr.mxu0 0.0
    %1183 = vmatpush2.msra.mxu0 0.0
    %1184 = vmatprep.subr.mxu0 0.0
    %1185 = vmatpush2.msra.mxu0 0.0
    %1186 = vmatprep.subr.mxu0 0.0
    %1187 = vmatpush2.msra.mxu0 0.0
    %1188 = vmatprep.subr.mxu0 0.0
    %1189 = vmatpush2.msra.mxu0 0.0
    %1190 = vmatprep.subr.mxu0 0.0
    %1191 = vmatpush2.msra.mxu0 0.0
    %1192 = vmatprep.subr.mxu0 0.0
    %1193 = vmatpush2.msra.mxu0 0.0
    %1194 = vmatprep.subr.mxu0 0.0
    %1195 = vmatpush2.msra.mxu0 0.0
    %1196 = vmatprep.mubr.f32.mxu0 0.0
    %v1197 = vand.u32 %v781, 4294901760
    %1198 = vmatmul.mubr.f32.gmra.mxu0 %v1197
    %v1199 = vpop.f32.mrf.mxu0
    %v1200 = vadd.f32 %v1115, %v1199
    %v1201 = vpop.f32.mrf.mxu0
    %1202 = vmatprep.mubr.f32.mxu0 0.0
    %v1203 = vand.u32 %v784, 4294901760
    %1204 = vmatmul.mubr.f32.gmra.mxu0 %v1203
    %v1205 = vpop.f32.mrf.mxu0
    %v1206 = vadd.f32 %v1123, %v1205
    %v1207 = vpop.f32.mrf.mxu0
    %1208 = vdwg.mxu0
    %1209 = vmatprep.subr.mxu0 0.0
    %1210 = vmatpush1.msra.mxu0 0.0
    %1211 = vmatprep.subr.mxu0 0.0
    %1212 = vmatpush1.msra.mxu0 0.0
    %1213 = vmatprep.subr.mxu0 0.0
    %1214 = vmatpush1.msra.mxu0 0.0
    %1215 = vmatprep.subr.mxu0 0.0
    %1216 = vmatpush1.msra.mxu0 0.0
    %1217 = vmatprep.subr.mxu0 0.0
    %1218 = vmatpush1.msra.mxu0 0.0
    %1219 = vmatprep.subr.mxu0 0.0
    %1220 = vmatpush1.msra.mxu0 0.0
    %1221 = vmatprep.subr.mxu0 0.0
    %1222 = vmatpush1.msra.mxu0 0.0
    %1223 = vmatprep.subr.mxu0 0.0
    %1224 = vmatpush1.msra.mxu0 0.0
    %1225 = vmatprep.subr.mxu0 0.0
    %1226 = vmatpush1.msra.mxu0 0.0
    %1227 = vmatprep.subr.mxu0 0.0
    %1228 = vmatpush1.msra.mxu0 0.0
    %1229 = vmatprep.subr.mxu0 0.0
    %1230 = vmatpush1.msra.mxu0 0.0
    %1231 = vmatprep.subr.mxu0 0.0
    %1232 = vmatpush1.msra.mxu0 0.0
    %1233 = vmatprep.subr.mxu0 0.0
    %1234 = vmatpush1.msra.mxu0 0.0
    %1235 = vmatprep.subr.mxu0 0.0
    %1236 = vmatpush1.msra.mxu0 0.0
    %1237 = vmatprep.subr.mxu0 0.0
    %v1238 = vand.u32 %v776, 4294901760
    %1239 = vmatpush1.msra.mxu0 %v1238
    %1240 = vmatprep.subr.mxu0 0.0
    %v1241 = vand.u32 %v770, 4294901760
    %1242 = vmatpush1.msra.mxu0 %v1241
    %1243 = vmatprep.subr.mxu0 0.0
    %1244 = vmatpush2.msra.mxu0 0.0
    %1245 = vmatprep.subr.mxu0 0.0
    %1246 = vmatpush2.msra.mxu0 0.0
    %1247 = vmatprep.subr.mxu0 0.0
    %1248 = vmatpush2.msra.mxu0 0.0
    %1249 = vmatprep.subr.mxu0 0.0
    %1250 = vmatpush2.msra.mxu0 0.0
    %1251 = vmatprep.subr.mxu0 0.0
    %1252 = vmatpush2.msra.mxu0 0.0
    %1253 = vmatprep.subr.mxu0 0.0
    %1254 = vmatpush2.msra.mxu0 0.0
    %1255 = vmatprep.subr.mxu0 0.0
    %1256 = vmatpush2.msra.mxu0 0.0
    %1257 = vmatprep.subr.mxu0 0.0
    %1258 = vmatpush2.msra.mxu0 0.0
    %1259 = vmatprep.subr.mxu0 0.0
    %1260 = vmatpush2.msra.mxu0 0.0
    %1261 = vmatprep.subr.mxu0 0.0
    %1262 = vmatpush2.msra.mxu0 0.0
    %1263 = vmatprep.subr.mxu0 0.0
    %1264 = vmatpush2.msra.mxu0 0.0
    %1265 = vmatprep.subr.mxu0 0.0
    %1266 = vmatpush2.msra.mxu0 0.0
    %1267 = vmatprep.subr.mxu0 0.0
    %1268 = vmatpush2.msra.mxu0 0.0
    %1269 = vmatprep.subr.mxu0 0.0
    %1270 = vmatpush2.msra.mxu0 0.0
    %1271 = vmatprep.subr.mxu0 0.0
    %1272 = vmatpush2.msra.mxu0 0.0
    %1273 = vmatprep.subr.mxu0 0.0
    %1274 = vmatpush2.msra.mxu0 0.0
    %1275 = vmatprep.mubr.f32.mxu0 0.0
    %v1276 = vand.u32 %v781, 4294901760
    %1277 = vmatmul.mubr.f32.gmra.mxu0 %v1276
    %v1278 = vpop.f32.mrf.mxu0
    %v1279 = vadd.f32 %v1200, %v1278
    %v1280 = vpop.f32.mrf.mxu0
    %1281 = vmatprep.mubr.f32.mxu0 0.0
    %v1282 = vand.u32 %v784, 4294901760
    %1283 = vmatmul.mubr.f32.gmra.mxu0 %v1282
    %v1284 = vpop.f32.mrf.mxu0
    %v1285 = vadd.f32 %v1206, %v1284
    %v1286 = vpop.f32.mrf.mxu0
    %1287 = vdwg.mxu0
    %1288 = vmatprep.subr.mxu0 0.0
    %v1289 = vand.u32 %v92, 4294901760
    %1290 = vmatpush1.msra.mxu0 %v1289
    %1291 = vmatprep.subr.mxu0 0.0
    %v1292 = vand.u32 %v91, 4294901760
    %1293 = vmatpush1.msra.mxu0 %v1292
    %1294 = vmatprep.subr.mxu0 0.0
    %v1295 = vand.u32 %v90, 4294901760
    %1296 = vmatpush1.msra.mxu0 %v1295
    %1297 = vmatprep.subr.mxu0 0.0
    %v1298 = vand.u32 %v89, 4294901760
    %1299 = vmatpush1.msra.mxu0 %v1298
    %1300 = vmatprep.subr.mxu0 0.0
    %v1301 = vand.u32 %v88, 4294901760
    %1302 = vmatpush1.msra.mxu0 %v1301
    %1303 = vmatprep.subr.mxu0 0.0
    %v1304 = vand.u32 %v87, 4294901760
    %1305 = vmatpush1.msra.mxu0 %v1304
    %1306 = vmatprep.subr.mxu0 0.0
    %v1307 = vand.u32 %v86, 4294901760
    %1308 = vmatpush1.msra.mxu0 %v1307
    %1309 = vmatprep.subr.mxu0 0.0
    %v1310 = vand.u32 %v85, 4294901760
    %1311 = vmatpush1.msra.mxu0 %v1310
    %1312 = vmatprep.subr.mxu0 0.0
    %v1313 = vand.u32 %v84, 4294901760
    %1314 = vmatpush1.msra.mxu0 %v1313
    %1315 = vmatprep.subr.mxu0 0.0
    %v1316 = vand.u32 %v83, 4294901760
    %1317 = vmatpush1.msra.mxu0 %v1316
    %1318 = vmatprep.subr.mxu0 0.0
    %v1319 = vand.u32 %v82, 4294901760
    %1320 = vmatpush1.msra.mxu0 %v1319
    %1321 = vmatprep.subr.mxu0 0.0
    %v1322 = vand.u32 %v81, 4294901760
    %1323 = vmatpush1.msra.mxu0 %v1322
    %1324 = vmatprep.subr.mxu0 0.0
    %v1325 = vand.u32 %v80, 4294901760
    %1326 = vmatpush1.msra.mxu0 %v1325
    %1327 = vmatprep.subr.mxu0 0.0
    %v1328 = vand.u32 %v79, 4294901760
    %1329 = vmatpush1.msra.mxu0 %v1328
    %1330 = vmatprep.subr.mxu0 0.0
    %v1331 = vand.u32 %v78, 4294901760
    %1332 = vmatpush1.msra.mxu0 %v1331
    %1333 = vmatprep.subr.mxu0 0.0
    %v1334 = vand.u32 %v77, 4294901760
    %1335 = vmatpush1.msra.mxu0 %v1334
    %1336 = vmatprep.subr.mxu0 0.0
    %1337 = vmatpush2.msra.mxu0 0.0
    %1338 = vmatprep.subr.mxu0 0.0
    %1339 = vmatpush2.msra.mxu0 0.0
    %1340 = vmatprep.subr.mxu0 0.0
    %1341 = vmatpush2.msra.mxu0 0.0
    %1342 = vmatprep.subr.mxu0 0.0
    %1343 = vmatpush2.msra.mxu0 0.0
    %1344 = vmatprep.subr.mxu0 0.0
    %1345 = vmatpush2.msra.mxu0 0.0
    %1346 = vmatprep.subr.mxu0 0.0
    %1347 = vmatpush2.msra.mxu0 0.0
    %1348 = vmatprep.subr.mxu0 0.0
    %1349 = vmatpush2.msra.mxu0 0.0
    %1350 = vmatprep.subr.mxu0 0.0
    %1351 = vmatpush2.msra.mxu0 0.0
    %1352 = vmatprep.subr.mxu0 0.0
    %1353 = vmatpush2.msra.mxu0 0.0
    %1354 = vmatprep.subr.mxu0 0.0
    %1355 = vmatpush2.msra.mxu0 0.0
    %1356 = vmatprep.subr.mxu0 0.0
    %1357 = vmatpush2.msra.mxu0 0.0
    %1358 = vmatprep.subr.mxu0 0.0
    %1359 = vmatpush2.msra.mxu0 0.0
    %1360 = vmatprep.subr.mxu0 0.0
    %1361 = vmatpush2.msra.mxu0 0.0
    %1362 = vmatprep.subr.mxu0 0.0
    %1363 = vmatpush2.msra.mxu0 0.0
    %1364 = vmatprep.subr.mxu0 0.0
    %1365 = vmatpush2.msra.mxu0 0.0
    %1366 = vmatprep.subr.mxu0 0.0
    %1367 = vmatpush2.msra.mxu0 0.0
    %1368 = vmatprep.mubr.f32.mxu0 0.0
    %v1369 = vand.u32 %v75, 4294901760
    %v1370 = vsub.f32 %v75, %v1369
    %v1371 = vand.u32 %v1370, 4294901760
    %v1372 = vsub.f32 %v1370, %v1371
    %v1373 = vand.u32 %v1372, 4294901760
    %1374 = vmatmul.mubr.f32.gmra.mxu0 %v1373
    %v1375 = vpop.f32.mrf.mxu0
    %v1376 = vadd.f32 0.0, %v1375
    %v1377 = vpop.f32.mrf.mxu0
    %1378 = vmatprep.mubr.f32.mxu0 0.0
    %v1379 = vand.u32 %v76, 4294901760
    %v1380 = vsub.f32 %v76, %v1379
    %v1381 = vand.u32 %v1380, 4294901760
    %v1382 = vsub.f32 %v1380, %v1381
    %v1383 = vand.u32 %v1382, 4294901760
    %1384 = vmatmul.mubr.f32.gmra.mxu0 %v1383
    %v1385 = vpop.f32.mrf.mxu0
    %v1386 = vadd.f32 0.0, %v1385
    %v1387 = vpop.f32.mrf.mxu0
    %1388 = vdwg.mxu0
    %1389 = vmatprep.subr.mxu0 0.0
    %v1390 = vand.u32 %v92, 4294901760
    %v1391 = vsub.f32 %v92, %v1390
    %v1392 = vand.u32 %v1391, 4294901760
    %v1393 = vsub.f32 %v1391, %v1392
    %v1394 = vand.u32 %v1393, 4294901760
    %1395 = vmatpush1.msra.mxu0 %v1394
    %1396 = vmatprep.subr.mxu0 0.0
    %v1397 = vand.u32 %v91, 4294901760
    %v1398 = vsub.f32 %v91, %v1397
    %v1399 = vand.u32 %v1398, 4294901760
    %v1400 = vsub.f32 %v1398, %v1399
    %v1401 = vand.u32 %v1400, 4294901760
    %1402 = vmatpush1.msra.mxu0 %v1401
    %1403 = vmatprep.subr.mxu0 0.0
    %v1404 = vand.u32 %v90, 4294901760
    %v1405 = vsub.f32 %v90, %v1404
    %v1406 = vand.u32 %v1405, 4294901760
    %v1407 = vsub.f32 %v1405, %v1406
    %v1408 = vand.u32 %v1407, 4294901760
    %1409 = vmatpush1.msra.mxu0 %v1408
    %1410 = vmatprep.subr.mxu0 0.0
    %v1411 = vand.u32 %v89, 4294901760
    %v1412 = vsub.f32 %v89, %v1411
    %v1413 = vand.u32 %v1412, 4294901760
    %v1414 = vsub.f32 %v1412, %v1413
    %v1415 = vand.u32 %v1414, 4294901760
    %1416 = vmatpush1.msra.mxu0 %v1415
    %1417 = vmatprep.subr.mxu0 0.0
    %v1418 = vand.u32 %v88, 4294901760
    %v1419 = vsub.f32 %v88, %v1418
    %v1420 = vand.u32 %v1419, 4294901760
    %v1421 = vsub.f32 %v1419, %v1420
    %v1422 = vand.u32 %v1421, 4294901760
    %1423 = vmatpush1.msra.mxu0 %v1422
    %1424 = vmatprep.subr.mxu0 0.0
    %v1425 = vand.u32 %v87, 4294901760
    %v1426 = vsub.f32 %v87, %v1425
    %v1427 = vand.u32 %v1426, 4294901760
    %v1428 = vsub.f32 %v1426, %v1427
    %v1429 = vand.u32 %v1428, 4294901760
    %1430 = vmatpush1.msra.mxu0 %v1429
    %1431 = vmatprep.subr.mxu0 0.0
    %v1432 = vand.u32 %v86, 4294901760
    %v1433 = vsub.f32 %v86, %v1432
    %v1434 = vand.u32 %v1433, 4294901760
    %v1435 = vsub.f32 %v1433, %v1434
    %v1436 = vand.u32 %v1435, 4294901760
    %1437 = vmatpush1.msra.mxu0 %v1436
    %1438 = vmatprep.subr.mxu0 0.0
    %v1439 = vand.u32 %v85, 4294901760
    %v1440 = vsub.f32 %v85, %v1439
    %v1441 = vand.u32 %v1440, 4294901760
    %v1442 = vsub.f32 %v1440, %v1441
    %v1443 = vand.u32 %v1442, 4294901760
    %1444 = vmatpush1.msra.mxu0 %v1443
    %1445 = vmatprep.subr.mxu0 0.0
    %v1446 = vand.u32 %v84, 4294901760
    %v1447 = vsub.f32 %v84, %v1446
    %v1448 = vand.u32 %v1447, 4294901760
    %v1449 = vsub.f32 %v1447, %v1448
    %v1450 = vand.u32 %v1449, 4294901760
    %1451 = vmatpush1.msra.mxu0 %v1450
    %1452 = vmatprep.subr.mxu0 0.0
    %v1453 = vand.u32 %v83, 4294901760
    %v1454 = vsub.f32 %v83, %v1453
    %v1455 = vand.u32 %v1454, 4294901760
    %v1456 = vsub.f32 %v1454, %v1455
    %v1457 = vand.u32 %v1456, 4294901760
    %1458 = vmatpush1.msra.mxu0 %v1457
    %1459 = vmatprep.subr.mxu0 0.0
    %v1460 = vand.u32 %v82, 4294901760
    %v1461 = vsub.f32 %v82, %v1460
    %v1462 = vand.u32 %v1461, 4294901760
    %v1463 = vsub.f32 %v1461, %v1462
    %v1464 = vand.u32 %v1463, 4294901760
    %1465 = vmatpush1.msra.mxu0 %v1464
    %1466 = vmatprep.subr.mxu0 0.0
    %v1467 = vand.u32 %v81, 4294901760
    %v1468 = vsub.f32 %v81, %v1467
    %v1469 = vand.u32 %v1468, 4294901760
    %v1470 = vsub.f32 %v1468, %v1469
    %v1471 = vand.u32 %v1470, 4294901760
    %1472 = vmatpush1.msra.mxu0 %v1471
    %1473 = vmatprep.subr.mxu0 0.0
    %v1474 = vand.u32 %v80, 4294901760
    %v1475 = vsub.f32 %v80, %v1474
    %v1476 = vand.u32 %v1475, 4294901760
    %v1477 = vsub.f32 %v1475, %v1476
    %v1478 = vand.u32 %v1477, 4294901760
    %1479 = vmatpush1.msra.mxu0 %v1478
    %1480 = vmatprep.subr.mxu0 0.0
    %v1481 = vand.u32 %v79, 4294901760
    %v1482 = vsub.f32 %v79, %v1481
    %v1483 = vand.u32 %v1482, 4294901760
    %v1484 = vsub.f32 %v1482, %v1483
    %v1485 = vand.u32 %v1484, 4294901760
    %1486 = vmatpush1.msra.mxu0 %v1485
    %1487 = vmatprep.subr.mxu0 0.0
    %v1488 = vand.u32 %v78, 4294901760
    %v1489 = vsub.f32 %v78, %v1488
    %v1490 = vand.u32 %v1489, 4294901760
    %v1491 = vsub.f32 %v1489, %v1490
    %v1492 = vand.u32 %v1491, 4294901760
    %1493 = vmatpush1.msra.mxu0 %v1492
    %1494 = vmatprep.subr.mxu0 0.0
    %v1495 = vand.u32 %v77, 4294901760
    %v1496 = vsub.f32 %v77, %v1495
    %v1497 = vand.u32 %v1496, 4294901760
    %v1498 = vsub.f32 %v1496, %v1497
    %v1499 = vand.u32 %v1498, 4294901760
    %1500 = vmatpush1.msra.mxu0 %v1499
    %1501 = vmatprep.subr.mxu0 0.0
    %1502 = vmatpush2.msra.mxu0 0.0
    %1503 = vmatprep.subr.mxu0 0.0
    %1504 = vmatpush2.msra.mxu0 0.0
    %1505 = vmatprep.subr.mxu0 0.0
    %1506 = vmatpush2.msra.mxu0 0.0
    %1507 = vmatprep.subr.mxu0 0.0
    %1508 = vmatpush2.msra.mxu0 0.0
    %1509 = vmatprep.subr.mxu0 0.0
    %1510 = vmatpush2.msra.mxu0 0.0
    %1511 = vmatprep.subr.mxu0 0.0
    %1512 = vmatpush2.msra.mxu0 0.0
    %1513 = vmatprep.subr.mxu0 0.0
    %1514 = vmatpush2.msra.mxu0 0.0
    %1515 = vmatprep.subr.mxu0 0.0
    %1516 = vmatpush2.msra.mxu0 0.0
    %1517 = vmatprep.subr.mxu0 0.0
    %1518 = vmatpush2.msra.mxu0 0.0
    %1519 = vmatprep.subr.mxu0 0.0
    %1520 = vmatpush2.msra.mxu0 0.0
    %1521 = vmatprep.subr.mxu0 0.0
    %1522 = vmatpush2.msra.mxu0 0.0
    %1523 = vmatprep.subr.mxu0 0.0
    %1524 = vmatpush2.msra.mxu0 0.0
    %1525 = vmatprep.subr.mxu0 0.0
    %1526 = vmatpush2.msra.mxu0 0.0
    %1527 = vmatprep.subr.mxu0 0.0
    %1528 = vmatpush2.msra.mxu0 0.0
    %1529 = vmatprep.subr.mxu0 0.0
    %1530 = vmatpush2.msra.mxu0 0.0
    %1531 = vmatprep.subr.mxu0 0.0
    %1532 = vmatpush2.msra.mxu0 0.0
    %1533 = vmatprep.mubr.f32.mxu0 0.0
    %v1534 = vand.u32 %v75, 4294901760
    %1535 = vmatmul.mubr.f32.gmra.mxu0 %v1534
    %v1536 = vpop.f32.mrf.mxu0
    %v1537 = vadd.f32 %v1376, %v1536
    %v1538 = vpop.f32.mrf.mxu0
    %1539 = vmatprep.mubr.f32.mxu0 0.0
    %v1540 = vand.u32 %v76, 4294901760
    %1541 = vmatmul.mubr.f32.gmra.mxu0 %v1540
    %v1542 = vpop.f32.mrf.mxu0
    %v1543 = vadd.f32 %v1386, %v1542
    %v1544 = vpop.f32.mrf.mxu0
    %1545 = vdwg.mxu0
    %1546 = vmatprep.subr.mxu0 0.0
    %v1547 = vand.u32 %v92, 4294901760
    %v1548 = vsub.f32 %v92, %v1547
    %1549 = vmatpush1.msra.mxu0 %v1548
    %1550 = vmatprep.subr.mxu0 0.0
    %v1551 = vand.u32 %v91, 4294901760
    %v1552 = vsub.f32 %v91, %v1551
    %1553 = vmatpush1.msra.mxu0 %v1552
    %1554 = vmatprep.subr.mxu0 0.0
    %v1555 = vand.u32 %v90, 4294901760
    %v1556 = vsub.f32 %v90, %v1555
    %1557 = vmatpush1.msra.mxu0 %v1556
    %1558 = vmatprep.subr.mxu0 0.0
    %v1559 = vand.u32 %v89, 4294901760
    %v1560 = vsub.f32 %v89, %v1559
    %1561 = vmatpush1.msra.mxu0 %v1560
    %1562 = vmatprep.subr.mxu0 0.0
    %v1563 = vand.u32 %v88, 4294901760
    %v1564 = vsub.f32 %v88, %v1563
    %1565 = vmatpush1.msra.mxu0 %v1564
    %1566 = vmatprep.subr.mxu0 0.0
    %v1567 = vand.u32 %v87, 4294901760
    %v1568 = vsub.f32 %v87, %v1567
    %1569 = vmatpush1.msra.mxu0 %v1568
    %1570 = vmatprep.subr.mxu0 0.0
    %v1571 = vand.u32 %v86, 4294901760
    %v1572 = vsub.f32 %v86, %v1571
    %1573 = vmatpush1.msra.mxu0 %v1572
    %1574 = vmatprep.subr.mxu0 0.0
    %v1575 = vand.u32 %v85, 4294901760
    %v1576 = vsub.f32 %v85, %v1575
    %1577 = vmatpush1.msra.mxu0 %v1576
    %1578 = vmatprep.subr.mxu0 0.0
    %v1579 = vand.u32 %v84, 4294901760
    %v1580 = vsub.f32 %v84, %v1579
    %1581 = vmatpush1.msra.mxu0 %v1580
    %1582 = vmatprep.subr.mxu0 0.0
    %v1583 = vand.u32 %v83, 4294901760
    %v1584 = vsub.f32 %v83, %v1583
    %1585 = vmatpush1.msra.mxu0 %v1584
    %1586 = vmatprep.subr.mxu0 0.0
    %v1587 = vand.u32 %v82, 4294901760
    %v1588 = vsub.f32 %v82, %v1587
    %1589 = vmatpush1.msra.mxu0 %v1588
    %1590 = vmatprep.subr.mxu0 0.0
    %v1591 = vand.u32 %v81, 4294901760
    %v1592 = vsub.f32 %v81, %v1591
    %1593 = vmatpush1.msra.mxu0 %v1592
    %1594 = vmatprep.subr.mxu0 0.0
    %v1595 = vand.u32 %v80, 4294901760
    %v1596 = vsub.f32 %v80, %v1595
    %1597 = vmatpush1.msra.mxu0 %v1596
    %1598 = vmatprep.subr.mxu0 0.0
    %v1599 = vand.u32 %v79, 4294901760
    %v1600 = vsub.f32 %v79, %v1599
    %1601 = vmatpush1.msra.mxu0 %v1600
    %1602 = vmatprep.subr.mxu0 0.0
    %v1603 = vand.u32 %v78, 4294901760
    %v1604 = vsub.f32 %v78, %v1603
    %1605 = vmatpush1.msra.mxu0 %v1604
    %1606 = vmatprep.subr.mxu0 0.0
    %v1607 = vand.u32 %v77, 4294901760
    %v1608 = vsub.f32 %v77, %v1607
    %1609 = vmatpush1.msra.mxu0 %v1608
    %1610 = vmatprep.subr.mxu0 0.0
    %1611 = vmatpush2.msra.mxu0 0.0
    %1612 = vmatprep.subr.mxu0 0.0
    %1613 = vmatpush2.msra.mxu0 0.0
    %1614 = vmatprep.subr.mxu0 0.0
    %1615 = vmatpush2.msra.mxu0 0.0
    %1616 = vmatprep.subr.mxu0 0.0
    %1617 = vmatpush2.msra.mxu0 0.0
    %1618 = vmatprep.subr.mxu0 0.0
    %1619 = vmatpush2.msra.mxu0 0.0
    %1620 = vmatprep.subr.mxu0 0.0
    %1621 = vmatpush2.msra.mxu0 0.0
    %1622 = vmatprep.subr.mxu0 0.0
    %1623 = vmatpush2.msra.mxu0 0.0
    %1624 = vmatprep.subr.mxu0 0.0
    %1625 = vmatpush2.msra.mxu0 0.0
    %1626 = vmatprep.subr.mxu0 0.0
    %1627 = vmatpush2.msra.mxu0 0.0
    %1628 = vmatprep.subr.mxu0 0.0
    %1629 = vmatpush2.msra.mxu0 0.0
    %1630 = vmatprep.subr.mxu0 0.0
    %1631 = vmatpush2.msra.mxu0 0.0
    %1632 = vmatprep.subr.mxu0 0.0
    %1633 = vmatpush2.msra.mxu0 0.0
    %1634 = vmatprep.subr.mxu0 0.0
    %1635 = vmatpush2.msra.mxu0 0.0
    %1636 = vmatprep.subr.mxu0 0.0
    %1637 = vmatpush2.msra.mxu0 0.0
    %1638 = vmatprep.subr.mxu0 0.0
    %1639 = vmatpush2.msra.mxu0 0.0
    %1640 = vmatprep.subr.mxu0 0.0
    %1641 = vmatpush2.msra.mxu0 0.0
    %1642 = vmatprep.mubr.f32.mxu0 0.0
    %v1643 = vand.u32 %v75, 4294901760
    %v1644 = vsub.f32 %v75, %v1643
    %1645 = vmatmul.mubr.f32.gmra.mxu0 %v1644
    %v1646 = vpop.f32.mrf.mxu0
    %v1647 = vadd.f32 %v1537, %v1646
    %v1648 = vpop.f32.mrf.mxu0
    %1649 = vmatprep.mubr.f32.mxu0 0.0
    %v1650 = vand.u32 %v76, 4294901760
    %v1651 = vsub.f32 %v76, %v1650
    %1652 = vmatmul.mubr.f32.gmra.mxu0 %v1651
    %v1653 = vpop.f32.mrf.mxu0
    %v1654 = vadd.f32 %v1543, %v1653
    %v1655 = vpop.f32.mrf.mxu0
    %1656 = vdwg.mxu0
    %1657 = vmatprep.subr.mxu0 0.0
    %v1658 = vand.u32 %v92, 4294901760
    %1659 = vmatpush1.msra.mxu0 %v1658
    %1660 = vmatprep.subr.mxu0 0.0
    %v1661 = vand.u32 %v91, 4294901760
    %1662 = vmatpush1.msra.mxu0 %v1661
    %1663 = vmatprep.subr.mxu0 0.0
    %v1664 = vand.u32 %v90, 4294901760
    %1665 = vmatpush1.msra.mxu0 %v1664
    %1666 = vmatprep.subr.mxu0 0.0
    %v1667 = vand.u32 %v89, 4294901760
    %1668 = vmatpush1.msra.mxu0 %v1667
    %1669 = vmatprep.subr.mxu0 0.0
    %v1670 = vand.u32 %v88, 4294901760
    %1671 = vmatpush1.msra.mxu0 %v1670
    %1672 = vmatprep.subr.mxu0 0.0
    %v1673 = vand.u32 %v87, 4294901760
    %1674 = vmatpush1.msra.mxu0 %v1673
    %1675 = vmatprep.subr.mxu0 0.0
    %v1676 = vand.u32 %v86, 4294901760
    %1677 = vmatpush1.msra.mxu0 %v1676
    %1678 = vmatprep.subr.mxu0 0.0
    %v1679 = vand.u32 %v85, 4294901760
    %1680 = vmatpush1.msra.mxu0 %v1679
    %1681 = vmatprep.subr.mxu0 0.0
    %v1682 = vand.u32 %v84, 4294901760
    %1683 = vmatpush1.msra.mxu0 %v1682
    %1684 = vmatprep.subr.mxu0 0.0
    %v1685 = vand.u32 %v83, 4294901760
    %1686 = vmatpush1.msra.mxu0 %v1685
    %1687 = vmatprep.subr.mxu0 0.0
    %v1688 = vand.u32 %v82, 4294901760
    %1689 = vmatpush1.msra.mxu0 %v1688
    %1690 = vmatprep.subr.mxu0 0.0
    %v1691 = vand.u32 %v81, 4294901760
    %1692 = vmatpush1.msra.mxu0 %v1691
    %1693 = vmatprep.subr.mxu0 0.0
    %v1694 = vand.u32 %v80, 4294901760
    %1695 = vmatpush1.msra.mxu0 %v1694
    %1696 = vmatprep.subr.mxu0 0.0
    %v1697 = vand.u32 %v79, 4294901760
    %1698 = vmatpush1.msra.mxu0 %v1697
    %1699 = vmatprep.subr.mxu0 0.0
    %v1700 = vand.u32 %v78, 4294901760
    %1701 = vmatpush1.msra.mxu0 %v1700
    %1702 = vmatprep.subr.mxu0 0.0
    %v1703 = vand.u32 %v77, 4294901760
    %1704 = vmatpush1.msra.mxu0 %v1703
    %1705 = vmatprep.subr.mxu0 0.0
    %1706 = vmatpush2.msra.mxu0 0.0
    %1707 = vmatprep.subr.mxu0 0.0
    %1708 = vmatpush2.msra.mxu0 0.0
    %1709 = vmatprep.subr.mxu0 0.0
    %1710 = vmatpush2.msra.mxu0 0.0
    %1711 = vmatprep.subr.mxu0 0.0
    %1712 = vmatpush2.msra.mxu0 0.0
    %1713 = vmatprep.subr.mxu0 0.0
    %1714 = vmatpush2.msra.mxu0 0.0
    %1715 = vmatprep.subr.mxu0 0.0
    %1716 = vmatpush2.msra.mxu0 0.0
    %1717 = vmatprep.subr.mxu0 0.0
    %1718 = vmatpush2.msra.mxu0 0.0
    %1719 = vmatprep.subr.mxu0 0.0
    %1720 = vmatpush2.msra.mxu0 0.0
    %1721 = vmatprep.subr.mxu0 0.0
    %1722 = vmatpush2.msra.mxu0 0.0
    %1723 = vmatprep.subr.mxu0 0.0
    %1724 = vmatpush2.msra.mxu0 0.0
    %1725 = vmatprep.subr.mxu0 0.0
    %1726 = vmatpush2.msra.mxu0 0.0
    %1727 = vmatprep.subr.mxu0 0.0
    %1728 = vmatpush2.msra.mxu0 0.0
    %1729 = vmatprep.subr.mxu0 0.0
    %1730 = vmatpush2.msra.mxu0 0.0
    %1731 = vmatprep.subr.mxu0 0.0
    %1732 = vmatpush2.msra.mxu0 0.0
    %1733 = vmatprep.subr.mxu0 0.0
    %1734 = vmatpush2.msra.mxu0 0.0
    %1735 = vmatprep.subr.mxu0 0.0
    %1736 = vmatpush2.msra.mxu0 0.0
    %1737 = vmatprep.mubr.f32.mxu0 0.0
    %v1738 = vand.u32 %v75, 4294901760
    %v1739 = vsub.f32 %v75, %v1738
    %v1740 = vand.u32 %v1739, 4294901760
    %1741 = vmatmul.mubr.f32.gmra.mxu0 %v1740
    %v1742 = vpop.f32.mrf.mxu0
    %v1743 = vadd.f32 %v1647, %v1742
    %v1744 = vpop.f32.mrf.mxu0
    %1745 = vmatprep.mubr.f32.mxu0 0.0
    %v1746 = vand.u32 %v76, 4294901760
    %v1747 = vsub.f32 %v76, %v1746
    %v1748 = vand.u32 %v1747, 4294901760
    %1749 = vmatmul.mubr.f32.gmra.mxu0 %v1748
    %v1750 = vpop.f32.mrf.mxu0
    %v1751 = vadd.f32 %v1654, %v1750
    %v1752 = vpop.f32.mrf.mxu0
    %1753 = vdwg.mxu0
    %1754 = vmatprep.subr.mxu0 0.0
    %v1755 = vand.u32 %v92, 4294901760
    %v1756 = vsub.f32 %v92, %v1755
    %v1757 = vand.u32 %v1756, 4294901760
    %1758 = vmatpush1.msra.mxu0 %v1757
    %1759 = vmatprep.subr.mxu0 0.0
    %v1760 = vand.u32 %v91, 4294901760
    %v1761 = vsub.f32 %v91, %v1760
    %v1762 = vand.u32 %v1761, 4294901760
    %1763 = vmatpush1.msra.mxu0 %v1762
    %1764 = vmatprep.subr.mxu0 0.0
    %v1765 = vand.u32 %v90, 4294901760
    %v1766 = vsub.f32 %v90, %v1765
    %v1767 = vand.u32 %v1766, 4294901760
    %1768 = vmatpush1.msra.mxu0 %v1767
    %1769 = vmatprep.subr.mxu0 0.0
    %v1770 = vand.u32 %v89, 4294901760
    %v1771 = vsub.f32 %v89, %v1770
    %v1772 = vand.u32 %v1771, 4294901760
    %1773 = vmatpush1.msra.mxu0 %v1772
    %1774 = vmatprep.subr.mxu0 0.0
    %v1775 = vand.u32 %v88, 4294901760
    %v1776 = vsub.f32 %v88, %v1775
    %v1777 = vand.u32 %v1776, 4294901760
    %1778 = vmatpush1.msra.mxu0 %v1777
    %1779 = vmatprep.subr.mxu0 0.0
    %v1780 = vand.u32 %v87, 4294901760
    %v1781 = vsub.f32 %v87, %v1780
    %v1782 = vand.u32 %v1781, 4294901760
    %1783 = vmatpush1.msra.mxu0 %v1782
    %1784 = vmatprep.subr.mxu0 0.0
    %v1785 = vand.u32 %v86, 4294901760
    %v1786 = vsub.f32 %v86, %v1785
    %v1787 = vand.u32 %v1786, 4294901760
    %1788 = vmatpush1.msra.mxu0 %v1787
    %1789 = vmatprep.subr.mxu0 0.0
    %v1790 = vand.u32 %v85, 4294901760
    %v1791 = vsub.f32 %v85, %v1790
    %v1792 = vand.u32 %v1791, 4294901760
    %1793 = vmatpush1.msra.mxu0 %v1792
    %1794 = vmatprep.subr.mxu0 0.0
    %v1795 = vand.u32 %v84, 4294901760
    %v1796 = vsub.f32 %v84, %v1795
    %v1797 = vand.u32 %v1796, 4294901760
    %1798 = vmatpush1.msra.mxu0 %v1797
    %1799 = vmatprep.subr.mxu0 0.0
    %v1800 = vand.u32 %v83, 4294901760
    %v1801 = vsub.f32 %v83, %v1800
    %v1802 = vand.u32 %v1801, 4294901760
    %1803 = vmatpush1.msra.mxu0 %v1802
    %1804 = vmatprep.subr.mxu0 0.0
    %v1805 = vand.u32 %v82, 4294901760
    %v1806 = vsub.f32 %v82, %v1805
    %v1807 = vand.u32 %v1806, 4294901760
    %1808 = vmatpush1.msra.mxu0 %v1807
    %1809 = vmatprep.subr.mxu0 0.0
    %v1810 = vand.u32 %v81, 4294901760
    %v1811 = vsub.f32 %v81, %v1810
    %v1812 = vand.u32 %v1811, 4294901760
    %1813 = vmatpush1.msra.mxu0 %v1812
    %1814 = vmatprep.subr.mxu0 0.0
    %v1815 = vand.u32 %v80, 4294901760
    %v1816 = vsub.f32 %v80, %v1815
    %v1817 = vand.u32 %v1816, 4294901760
    %1818 = vmatpush1.msra.mxu0 %v1817
    %1819 = vmatprep.subr.mxu0 0.0
    %v1820 = vand.u32 %v79, 4294901760
    %v1821 = vsub.f32 %v79, %v1820
    %v1822 = vand.u32 %v1821, 4294901760
    %1823 = vmatpush1.msra.mxu0 %v1822
    %1824 = vmatprep.subr.mxu0 0.0
    %v1825 = vand.u32 %v78, 4294901760
    %v1826 = vsub.f32 %v78, %v1825
    %v1827 = vand.u32 %v1826, 4294901760
    %1828 = vmatpush1.msra.mxu0 %v1827
    %1829 = vmatprep.subr.mxu0 0.0
    %v1830 = vand.u32 %v77, 4294901760
    %v1831 = vsub.f32 %v77, %v1830
    %v1832 = vand.u32 %v1831, 4294901760
    %1833 = vmatpush1.msra.mxu0 %v1832
    %1834 = vmatprep.subr.mxu0 0.0
    %1835 = vmatpush2.msra.mxu0 0.0
    %1836 = vmatprep.subr.mxu0 0.0
    %1837 = vmatpush2.msra.mxu0 0.0
    %1838 = vmatprep.subr.mxu0 0.0
    %1839 = vmatpush2.msra.mxu0 0.0
    %1840 = vmatprep.subr.mxu0 0.0
    %1841 = vmatpush2.msra.mxu0 0.0
    %1842 = vmatprep.subr.mxu0 0.0
    %1843 = vmatpush2.msra.mxu0 0.0
    %1844 = vmatprep.subr.mxu0 0.0
    %1845 = vmatpush2.msra.mxu0 0.0
    %1846 = vmatprep.subr.mxu0 0.0
    %1847 = vmatpush2.msra.mxu0 0.0
    %1848 = vmatprep.subr.mxu0 0.0
    %1849 = vmatpush2.msra.mxu0 0.0
    %1850 = vmatprep.subr.mxu0 0.0
    %1851 = vmatpush2.msra.mxu0 0.0
    %1852 = vmatprep.subr.mxu0 0.0
    %1853 = vmatpush2.msra.mxu0 0.0
    %1854 = vmatprep.subr.mxu0 0.0
    %1855 = vmatpush2.msra.mxu0 0.0
    %1856 = vmatprep.subr.mxu0 0.0
    %1857 = vmatpush2.msra.mxu0 0.0
    %1858 = vmatprep.subr.mxu0 0.0
    %1859 = vmatpush2.msra.mxu0 0.0
    %1860 = vmatprep.subr.mxu0 0.0
    %1861 = vmatpush2.msra.mxu0 0.0
    %1862 = vmatprep.subr.mxu0 0.0
    %1863 = vmatpush2.msra.mxu0 0.0
    %1864 = vmatprep.subr.mxu0 0.0
    %1865 = vmatpush2.msra.mxu0 0.0
    %1866 = vmatprep.mubr.f32.mxu0 0.0
    %v1867 = vand.u32 %v75, 4294901760
    %1868 = vmatmul.mubr.f32.gmra.mxu0 %v1867
    %v1869 = vpop.f32.mrf.mxu0
    %v1870 = vadd.f32 %v1743, %v1869
    %v1871 = vpop.f32.mrf.mxu0
    %1872 = vmatprep.mubr.f32.mxu0 0.0
    %v1873 = vand.u32 %v76, 4294901760
    %1874 = vmatmul.mubr.f32.gmra.mxu0 %v1873
    %v1875 = vpop.f32.mrf.mxu0
    %v1876 = vadd.f32 %v1751, %v1875
    %v1877 = vpop.f32.mrf.mxu0
    %1878 = vdwg.mxu0
    %1879 = vmatprep.subr.mxu0 0.0
    %v1880 = vand.u32 %v92, 4294901760
    %1881 = vmatpush1.msra.mxu0 %v1880
    %1882 = vmatprep.subr.mxu0 0.0
    %v1883 = vand.u32 %v91, 4294901760
    %1884 = vmatpush1.msra.mxu0 %v1883
    %1885 = vmatprep.subr.mxu0 0.0
    %v1886 = vand.u32 %v90, 4294901760
    %1887 = vmatpush1.msra.mxu0 %v1886
    %1888 = vmatprep.subr.mxu0 0.0
    %v1889 = vand.u32 %v89, 4294901760
    %1890 = vmatpush1.msra.mxu0 %v1889
    %1891 = vmatprep.subr.mxu0 0.0
    %v1892 = vand.u32 %v88, 4294901760
    %1893 = vmatpush1.msra.mxu0 %v1892
    %1894 = vmatprep.subr.mxu0 0.0
    %v1895 = vand.u32 %v87, 4294901760
    %1896 = vmatpush1.msra.mxu0 %v1895
    %1897 = vmatprep.subr.mxu0 0.0
    %v1898 = vand.u32 %v86, 4294901760
    %1899 = vmatpush1.msra.mxu0 %v1898
    %1900 = vmatprep.subr.mxu0 0.0
    %v1901 = vand.u32 %v85, 4294901760
    %1902 = vmatpush1.msra.mxu0 %v1901
    %1903 = vmatprep.subr.mxu0 0.0
    %v1904 = vand.u32 %v84, 4294901760
    %1905 = vmatpush1.msra.mxu0 %v1904
    %1906 = vmatprep.subr.mxu0 0.0
    %v1907 = vand.u32 %v83, 4294901760
    %1908 = vmatpush1.msra.mxu0 %v1907
    %1909 = vmatprep.subr.mxu0 0.0
    %v1910 = vand.u32 %v82, 4294901760
    %1911 = vmatpush1.msra.mxu0 %v1910
    %1912 = vmatprep.subr.mxu0 0.0
    %v1913 = vand.u32 %v81, 4294901760
    %1914 = vmatpush1.msra.mxu0 %v1913
    %1915 = vmatprep.subr.mxu0 0.0
    %v1916 = vand.u32 %v80, 4294901760
    %1917 = vmatpush1.msra.mxu0 %v1916
    %1918 = vmatprep.subr.mxu0 0.0
    %v1919 = vand.u32 %v79, 4294901760
    %1920 = vmatpush1.msra.mxu0 %v1919
    %1921 = vmatprep.subr.mxu0 0.0
    %v1922 = vand.u32 %v78, 4294901760
    %1923 = vmatpush1.msra.mxu0 %v1922
    %1924 = vmatprep.subr.mxu0 0.0
    %v1925 = vand.u32 %v77, 4294901760
    %1926 = vmatpush1.msra.mxu0 %v1925
    %1927 = vmatprep.subr.mxu0 0.0
    %1928 = vmatpush2.msra.mxu0 0.0
    %1929 = vmatprep.subr.mxu0 0.0
    %1930 = vmatpush2.msra.mxu0 0.0
    %1931 = vmatprep.subr.mxu0 0.0
    %1932 = vmatpush2.msra.mxu0 0.0
    %1933 = vmatprep.subr.mxu0 0.0
    %1934 = vmatpush2.msra.mxu0 0.0
    %1935 = vmatprep.subr.mxu0 0.0
    %1936 = vmatpush2.msra.mxu0 0.0
    %1937 = vmatprep.subr.mxu0 0.0
    %1938 = vmatpush2.msra.mxu0 0.0
    %1939 = vmatprep.subr.mxu0 0.0
    %1940 = vmatpush2.msra.mxu0 0.0
    %1941 = vmatprep.subr.mxu0 0.0
    %1942 = vmatpush2.msra.mxu0 0.0
    %1943 = vmatprep.subr.mxu0 0.0
    %1944 = vmatpush2.msra.mxu0 0.0
    %1945 = vmatprep.subr.mxu0 0.0
    %1946 = vmatpush2.msra.mxu0 0.0
    %1947 = vmatprep.subr.mxu0 0.0
    %1948 = vmatpush2.msra.mxu0 0.0
    %1949 = vmatprep.subr.mxu0 0.0
    %1950 = vmatpush2.msra.mxu0 0.0
    %1951 = vmatprep.subr.mxu0 0.0
    %1952 = vmatpush2.msra.mxu0 0.0
    %1953 = vmatprep.subr.mxu0 0.0
    %1954 = vmatpush2.msra.mxu0 0.0
    %1955 = vmatprep.subr.mxu0 0.0
    %1956 = vmatpush2.msra.mxu0 0.0
    %1957 = vmatprep.subr.mxu0 0.0
    %1958 = vmatpush2.msra.mxu0 0.0
    %1959 = vmatprep.mubr.f32.mxu0 0.0
    %v1960 = vand.u32 %v75, 4294901760
    %1961 = vmatmul.mubr.f32.gmra.mxu0 %v1960
    %v1962 = vpop.f32.mrf.mxu0
    %v1963 = vadd.f32 %v1870, %v1962
    %v1964 = vpop.f32.mrf.mxu0
    %1965 = vmatprep.mubr.f32.mxu0 0.0
    %v1966 = vand.u32 %v76, 4294901760
    %1967 = vmatmul.mubr.f32.gmra.mxu0 %v1966
    %v1968 = vpop.f32.mrf.mxu0
    %v1969 = vadd.f32 %v1876, %v1968
    %v1970 = vpop.f32.mrf.mxu0
    %1971 = vdwg.mxu0
    %1972 = vmatprep.subr.mxu0 0.0
    %1973 = vmatpush1.msra.mxu0 0.0
    %1974 = vmatprep.subr.mxu0 0.0
    %1975 = vmatpush1.msra.mxu0 0.0
    %1976 = vmatprep.subr.mxu0 0.0
    %1977 = vmatpush1.msra.mxu0 0.0
    %1978 = vmatprep.subr.mxu0 0.0
    %1979 = vmatpush1.msra.mxu0 0.0
    %1980 = vmatprep.subr.mxu0 0.0
    %1981 = vmatpush1.msra.mxu0 0.0
    %1982 = vmatprep.subr.mxu0 0.0
    %1983 = vmatpush1.msra.mxu0 0.0
    %1984 = vmatprep.subr.mxu0 0.0
    %1985 = vmatpush1.msra.mxu0 0.0
    %1986 = vmatprep.subr.mxu0 0.0
    %1987 = vmatpush1.msra.mxu0 0.0
    %1988 = vmatprep.subr.mxu0 0.0
    %1989 = vmatpush1.msra.mxu0 0.0
    %1990 = vmatprep.subr.mxu0 0.0
    %1991 = vmatpush1.msra.mxu0 0.0
    %1992 = vmatprep.subr.mxu0 0.0
    %1993 = vmatpush1.msra.mxu0 0.0
    %1994 = vmatprep.subr.mxu0 0.0
    %1995 = vmatpush1.msra.mxu0 0.0
    %1996 = vmatprep.subr.mxu0 0.0
    %1997 = vmatpush1.msra.mxu0 0.0
    %1998 = vmatprep.subr.mxu0 0.0
    %1999 = vmatpush1.msra.mxu0 0.0
    %2000 = vmatprep.subr.mxu0 0.0
    %v2001 = vand.u32 %v1969, 4294901760
    %2002 = vmatpush1.msra.mxu0 %v2001
    %2003 = vmatprep.subr.mxu0 0.0
    %v2004 = vand.u32 %v1963, 4294901760
    %2005 = vmatpush1.msra.mxu0 %v2004
    %2006 = vmatprep.subr.mxu0 0.0
    %2007 = vmatpush2.msra.mxu0 0.0
    %2008 = vmatprep.subr.mxu0 0.0
    %2009 = vmatpush2.msra.mxu0 0.0
    %2010 = vmatprep.subr.mxu0 0.0
    %2011 = vmatpush2.msra.mxu0 0.0
    %2012 = vmatprep.subr.mxu0 0.0
    %2013 = vmatpush2.msra.mxu0 0.0
    %2014 = vmatprep.subr.mxu0 0.0
    %2015 = vmatpush2.msra.mxu0 0.0
    %2016 = vmatprep.subr.mxu0 0.0
    %2017 = vmatpush2.msra.mxu0 0.0
    %2018 = vmatprep.subr.mxu0 0.0
    %2019 = vmatpush2.msra.mxu0 0.0
    %2020 = vmatprep.subr.mxu0 0.0
    %2021 = vmatpush2.msra.mxu0 0.0
    %2022 = vmatprep.subr.mxu0 0.0
    %2023 = vmatpush2.msra.mxu0 0.0
    %2024 = vmatprep.subr.mxu0 0.0
    %2025 = vmatpush2.msra.mxu0 0.0
    %2026 = vmatprep.subr.mxu0 0.0
    %2027 = vmatpush2.msra.mxu0 0.0
    %2028 = vmatprep.subr.mxu0 0.0
    %2029 = vmatpush2.msra.mxu0 0.0
    %2030 = vmatprep.subr.mxu0 0.0
    %2031 = vmatpush2.msra.mxu0 0.0
    %2032 = vmatprep.subr.mxu0 0.0
    %2033 = vmatpush2.msra.mxu0 0.0
    %2034 = vmatprep.subr.mxu0 0.0
    %2035 = vmatpush2.msra.mxu0 0.0
    %2036 = vmatprep.subr.mxu0 0.0
    %2037 = vmatpush2.msra.mxu0 0.0
    %2038 = vmatprep.mubr.f32.mxu0 0.0
    %v2039 = vand.u32 %v781, 4294901760
    %v2040 = vsub.f32 %v781, %v2039
    %v2041 = vand.u32 %v2040, 4294901760
    %v2042 = vsub.f32 %v2040, %v2041
    %v2043 = vand.u32 %v2042, 4294901760
    %2044 = vmatmul.mubr.f32.gmra.mxu0 %v2043
    %v2045 = vpop.f32.mrf.mxu0
    %v2046 = vadd.f32 0.0, %v2045
    %v2047 = vpop.f32.mrf.mxu0
    %2048 = vmatprep.mubr.f32.mxu0 0.0
    %v2049 = vand.u32 %v784, 4294901760
    %v2050 = vsub.f32 %v784, %v2049
    %v2051 = vand.u32 %v2050, 4294901760
    %v2052 = vsub.f32 %v2050, %v2051
    %v2053 = vand.u32 %v2052, 4294901760
    %2054 = vmatmul.mubr.f32.gmra.mxu0 %v2053
    %v2055 = vpop.f32.mrf.mxu0
    %v2056 = vadd.f32 0.0, %v2055
    %v2057 = vpop.f32.mrf.mxu0
    %2058 = vdwg.mxu0
    %2059 = vmatprep.subr.mxu0 0.0
    %2060 = vmatpush1.msra.mxu0 0.0
    %2061 = vmatprep.subr.mxu0 0.0
    %2062 = vmatpush1.msra.mxu0 0.0
    %2063 = vmatprep.subr.mxu0 0.0
    %2064 = vmatpush1.msra.mxu0 0.0
    %2065 = vmatprep.subr.mxu0 0.0
    %2066 = vmatpush1.msra.mxu0 0.0
    %2067 = vmatprep.subr.mxu0 0.0
    %2068 = vmatpush1.msra.mxu0 0.0
    %2069 = vmatprep.subr.mxu0 0.0
    %2070 = vmatpush1.msra.mxu0 0.0
    %2071 = vmatprep.subr.mxu0 0.0
    %2072 = vmatpush1.msra.mxu0 0.0
    %2073 = vmatprep.subr.mxu0 0.0
    %2074 = vmatpush1.msra.mxu0 0.0
    %2075 = vmatprep.subr.mxu0 0.0
    %2076 = vmatpush1.msra.mxu0 0.0
    %2077 = vmatprep.subr.mxu0 0.0
    %2078 = vmatpush1.msra.mxu0 0.0
    %2079 = vmatprep.subr.mxu0 0.0
    %2080 = vmatpush1.msra.mxu0 0.0
    %2081 = vmatprep.subr.mxu0 0.0
    %2082 = vmatpush1.msra.mxu0 0.0
    %2083 = vmatprep.subr.mxu0 0.0
    %2084 = vmatpush1.msra.mxu0 0.0
    %2085 = vmatprep.subr.mxu0 0.0
    %2086 = vmatpush1.msra.mxu0 0.0
    %2087 = vmatprep.subr.mxu0 0.0
    %v2088 = vand.u32 %v1969, 4294901760
    %v2089 = vsub.f32 %v1969, %v2088
    %v2090 = vand.u32 %v2089, 4294901760
    %v2091 = vsub.f32 %v2089, %v2090
    %v2092 = vand.u32 %v2091, 4294901760
    %2093 = vmatpush1.msra.mxu0 %v2092
    %2094 = vmatprep.subr.mxu0 0.0
    %v2095 = vand.u32 %v1963, 4294901760
    %v2096 = vsub.f32 %v1963, %v2095
    %v2097 = vand.u32 %v2096, 4294901760
    %v2098 = vsub.f32 %v2096, %v2097
    %v2099 = vand.u32 %v2098, 4294901760
    %2100 = vmatpush1.msra.mxu0 %v2099
    %2101 = vmatprep.subr.mxu0 0.0
    %2102 = vmatpush2.msra.mxu0 0.0
    %2103 = vmatprep.subr.mxu0 0.0
    %2104 = vmatpush2.msra.mxu0 0.0
    %2105 = vmatprep.subr.mxu0 0.0
    %2106 = vmatpush2.msra.mxu0 0.0
    %2107 = vmatprep.subr.mxu0 0.0
    %2108 = vmatpush2.msra.mxu0 0.0
    %2109 = vmatprep.subr.mxu0 0.0
    %2110 = vmatpush2.msra.mxu0 0.0
    %2111 = vmatprep.subr.mxu0 0.0
    %2112 = vmatpush2.msra.mxu0 0.0
    %2113 = vmatprep.subr.mxu0 0.0
    %2114 = vmatpush2.msra.mxu0 0.0
    %2115 = vmatprep.subr.mxu0 0.0
    %2116 = vmatpush2.msra.mxu0 0.0
    %2117 = vmatprep.subr.mxu0 0.0
    %2118 = vmatpush2.msra.mxu0 0.0
    %2119 = vmatprep.subr.mxu0 0.0
    %2120 = vmatpush2.msra.mxu0 0.0
    %2121 = vmatprep.subr.mxu0 0.0
    %2122 = vmatpush2.msra.mxu0 0.0
    %2123 = vmatprep.subr.mxu0 0.0
    %2124 = vmatpush2.msra.mxu0 0.0
    %2125 = vmatprep.subr.mxu0 0.0
    %2126 = vmatpush2.msra.mxu0 0.0
    %2127 = vmatprep.subr.mxu0 0.0
    %2128 = vmatpush2.msra.mxu0 0.0
    %2129 = vmatprep.subr.mxu0 0.0
    %2130 = vmatpush2.msra.mxu0 0.0
    %2131 = vmatprep.subr.mxu0 0.0
    %2132 = vmatpush2.msra.mxu0 0.0
    %2133 = vmatprep.mubr.f32.mxu0 0.0
    %v2134 = vand.u32 %v781, 4294901760
    %2135 = vmatmul.mubr.f32.gmra.mxu0 %v2134
    %v2136 = vpop.f32.mrf.mxu0
    %v2137 = vadd.f32 %v2046, %v2136
    %v2138 = vpop.f32.mrf.mxu0
    %2139 = vmatprep.mubr.f32.mxu0 0.0
    %v2140 = vand.u32 %v784, 4294901760
    %2141 = vmatmul.mubr.f32.gmra.mxu0 %v2140
    %v2142 = vpop.f32.mrf.mxu0
    %v2143 = vadd.f32 %v2056, %v2142
    %v2144 = vpop.f32.mrf.mxu0
    %2145 = vdwg.mxu0
    %2146 = vmatprep.subr.mxu0 0.0
    %2147 = vmatpush1.msra.mxu0 0.0
    %2148 = vmatprep.subr.mxu0 0.0
    %2149 = vmatpush1.msra.mxu0 0.0
    %2150 = vmatprep.subr.mxu0 0.0
    %2151 = vmatpush1.msra.mxu0 0.0
    %2152 = vmatprep.subr.mxu0 0.0
    %2153 = vmatpush1.msra.mxu0 0.0
    %2154 = vmatprep.subr.mxu0 0.0
    %2155 = vmatpush1.msra.mxu0 0.0
    %2156 = vmatprep.subr.mxu0 0.0
    %2157 = vmatpush1.msra.mxu0 0.0
    %2158 = vmatprep.subr.mxu0 0.0
    %2159 = vmatpush1.msra.mxu0 0.0
    %2160 = vmatprep.subr.mxu0 0.0
    %2161 = vmatpush1.msra.mxu0 0.0
    %2162 = vmatprep.subr.mxu0 0.0
    %2163 = vmatpush1.msra.mxu0 0.0
    %2164 = vmatprep.subr.mxu0 0.0
    %2165 = vmatpush1.msra.mxu0 0.0
    %2166 = vmatprep.subr.mxu0 0.0
    %2167 = vmatpush1.msra.mxu0 0.0
    %2168 = vmatprep.subr.mxu0 0.0
    %2169 = vmatpush1.msra.mxu0 0.0
    %2170 = vmatprep.subr.mxu0 0.0
    %2171 = vmatpush1.msra.mxu0 0.0
    %2172 = vmatprep.subr.mxu0 0.0
    %2173 = vmatpush1.msra.mxu0 0.0
    %2174 = vmatprep.subr.mxu0 0.0
    %v2175 = vand.u32 %v1969, 4294901760
    %v2176 = vsub.f32 %v1969, %v2175
    %2177 = vmatpush1.msra.mxu0 %v2176
    %2178 = vmatprep.subr.mxu0 0.0
    %v2179 = vand.u32 %v1963, 4294901760
    %v2180 = vsub.f32 %v1963, %v2179
    %2181 = vmatpush1.msra.mxu0 %v2180
    %2182 = vmatprep.subr.mxu0 0.0
    %2183 = vmatpush2.msra.mxu0 0.0
    %2184 = vmatprep.subr.mxu0 0.0
    %2185 = vmatpush2.msra.mxu0 0.0
    %2186 = vmatprep.subr.mxu0 0.0
    %2187 = vmatpush2.msra.mxu0 0.0
    %2188 = vmatprep.subr.mxu0 0.0
    %2189 = vmatpush2.msra.mxu0 0.0
    %2190 = vmatprep.subr.mxu0 0.0
    %2191 = vmatpush2.msra.mxu0 0.0
    %2192 = vmatprep.subr.mxu0 0.0
    %2193 = vmatpush2.msra.mxu0 0.0
    %2194 = vmatprep.subr.mxu0 0.0
    %2195 = vmatpush2.msra.mxu0 0.0
    %2196 = vmatprep.subr.mxu0 0.0
    %2197 = vmatpush2.msra.mxu0 0.0
    %2198 = vmatprep.subr.mxu0 0.0
    %2199 = vmatpush2.msra.mxu0 0.0
    %2200 = vmatprep.subr.mxu0 0.0
    %2201 = vmatpush2.msra.mxu0 0.0
    %2202 = vmatprep.subr.mxu0 0.0
    %2203 = vmatpush2.msra.mxu0 0.0
    %2204 = vmatprep.subr.mxu0 0.0
    %2205 = vmatpush2.msra.mxu0 0.0
    %2206 = vmatprep.subr.mxu0 0.0
    %2207 = vmatpush2.msra.mxu0 0.0
    %2208 = vmatprep.subr.mxu0 0.0
    %2209 = vmatpush2.msra.mxu0 0.0
    %2210 = vmatprep.subr.mxu0 0.0
    %2211 = vmatpush2.msra.mxu0 0.0
    %2212 = vmatprep.subr.mxu0 0.0
    %2213 = vmatpush2.msra.mxu0 0.0
    %2214 = vmatprep.mubr.f32.mxu0 0.0
    %v2215 = vand.u32 %v781, 4294901760
    %v2216 = vsub.f32 %v781, %v2215
    %2217 = vmatmul.mubr.f32.gmra.mxu0 %v2216
    %v2218 = vpop.f32.mrf.mxu0
    %v2219 = vadd.f32 %v2137, %v2218
    %v2220 = vpop.f32.mrf.mxu0
    %2221 = vmatprep.mubr.f32.mxu0 0.0
    %v2222 = vand.u32 %v784, 4294901760
    %v2223 = vsub.f32 %v784, %v2222
    %2224 = vmatmul.mubr.f32.gmra.mxu0 %v2223
    %v2225 = vpop.f32.mrf.mxu0
    %v2226 = vadd.f32 %v2143, %v2225
    %v2227 = vpop.f32.mrf.mxu0
    %2228 = vdwg.mxu0
    %2229 = vmatprep.subr.mxu0 0.0
    %2230 = vmatpush1.msra.mxu0 0.0
    %2231 = vmatprep.subr.mxu0 0.0
    %2232 = vmatpush1.msra.mxu0 0.0
    %2233 = vmatprep.subr.mxu0 0.0
    %2234 = vmatpush1.msra.mxu0 0.0
    %2235 = vmatprep.subr.mxu0 0.0
    %2236 = vmatpush1.msra.mxu0 0.0
    %2237 = vmatprep.subr.mxu0 0.0
    %2238 = vmatpush1.msra.mxu0 0.0
    %2239 = vmatprep.subr.mxu0 0.0
    %2240 = vmatpush1.msra.mxu0 0.0
    %2241 = vmatprep.subr.mxu0 0.0
    %2242 = vmatpush1.msra.mxu0 0.0
    %2243 = vmatprep.subr.mxu0 0.0
    %2244 = vmatpush1.msra.mxu0 0.0
    %2245 = vmatprep.subr.mxu0 0.0
    %2246 = vmatpush1.msra.mxu0 0.0
    %2247 = vmatprep.subr.mxu0 0.0
    %2248 = vmatpush1.msra.mxu0 0.0
    %2249 = vmatprep.subr.mxu0 0.0
    %2250 = vmatpush1.msra.mxu0 0.0
    %2251 = vmatprep.subr.mxu0 0.0
    %2252 = vmatpush1.msra.mxu0 0.0
    %2253 = vmatprep.subr.mxu0 0.0
    %2254 = vmatpush1.msra.mxu0 0.0
    %2255 = vmatprep.subr.mxu0 0.0
    %2256 = vmatpush1.msra.mxu0 0.0
    %2257 = vmatprep.subr.mxu0 0.0
    %v2258 = vand.u32 %v1969, 4294901760
    %2259 = vmatpush1.msra.mxu0 %v2258
    %2260 = vmatprep.subr.mxu0 0.0
    %v2261 = vand.u32 %v1963, 4294901760
    %2262 = vmatpush1.msra.mxu0 %v2261
    %2263 = vmatprep.subr.mxu0 0.0
    %2264 = vmatpush2.msra.mxu0 0.0
    %2265 = vmatprep.subr.mxu0 0.0
    %2266 = vmatpush2.msra.mxu0 0.0
    %2267 = vmatprep.subr.mxu0 0.0
    %2268 = vmatpush2.msra.mxu0 0.0
    %2269 = vmatprep.subr.mxu0 0.0
    %2270 = vmatpush2.msra.mxu0 0.0
    %2271 = vmatprep.subr.mxu0 0.0
    %2272 = vmatpush2.msra.mxu0 0.0
    %2273 = vmatprep.subr.mxu0 0.0
    %2274 = vmatpush2.msra.mxu0 0.0
    %2275 = vmatprep.subr.mxu0 0.0
    %2276 = vmatpush2.msra.mxu0 0.0
    %2277 = vmatprep.subr.mxu0 0.0
    %2278 = vmatpush2.msra.mxu0 0.0
    %2279 = vmatprep.subr.mxu0 0.0
    %2280 = vmatpush2.msra.mxu0 0.0
    %2281 = vmatprep.subr.mxu0 0.0
    %2282 = vmatpush2.msra.mxu0 0.0
    %2283 = vmatprep.subr.mxu0 0.0
    %2284 = vmatpush2.msra.mxu0 0.0
    %2285 = vmatprep.subr.mxu0 0.0
    %2286 = vmatpush2.msra.mxu0 0.0
    %2287 = vmatprep.subr.mxu0 0.0
    %2288 = vmatpush2.msra.mxu0 0.0
    %2289 = vmatprep.subr.mxu0 0.0
    %2290 = vmatpush2.msra.mxu0 0.0
    %2291 = vmatprep.subr.mxu0 0.0
    %2292 = vmatpush2.msra.mxu0 0.0
    %2293 = vmatprep.subr.mxu0 0.0
    %2294 = vmatpush2.msra.mxu0 0.0
    %2295 = vmatprep.mubr.f32.mxu0 0.0
    %v2296 = vand.u32 %v781, 4294901760
    %v2297 = vsub.f32 %v781, %v2296
    %v2298 = vand.u32 %v2297, 4294901760
    %2299 = vmatmul.mubr.f32.gmra.mxu0 %v2298
    %v2300 = vpop.f32.mrf.mxu0
    %v2301 = vadd.f32 %v2219, %v2300
    %v2302 = vpop.f32.mrf.mxu0
    %2303 = vmatprep.mubr.f32.mxu0 0.0
    %v2304 = vand.u32 %v784, 4294901760
    %v2305 = vsub.f32 %v784, %v2304
    %v2306 = vand.u32 %v2305, 4294901760
    %2307 = vmatmul.mubr.f32.gmra.mxu0 %v2306
    %v2308 = vpop.f32.mrf.mxu0
    %v2309 = vadd.f32 %v2226, %v2308
    %v2310 = vpop.f32.mrf.mxu0
    %2311 = vdwg.mxu0
    %2312 = vmatprep.subr.mxu0 0.0
    %2313 = vmatpush1.msra.mxu0 0.0
    %2314 = vmatprep.subr.mxu0 0.0
    %2315 = vmatpush1.msra.mxu0 0.0
    %2316 = vmatprep.subr.mxu0 0.0
    %2317 = vmatpush1.msra.mxu0 0.0
    %2318 = vmatprep.subr.mxu0 0.0
    %2319 = vmatpush1.msra.mxu0 0.0
    %2320 = vmatprep.subr.mxu0 0.0
    %2321 = vmatpush1.msra.mxu0 0.0
    %2322 = vmatprep.subr.mxu0 0.0
    %2323 = vmatpush1.msra.mxu0 0.0
    %2324 = vmatprep.subr.mxu0 0.0
    %2325 = vmatpush1.msra.mxu0 0.0
    %2326 = vmatprep.subr.mxu0 0.0
    %2327 = vmatpush1.msra.mxu0 0.0
    %2328 = vmatprep.subr.mxu0 0.0
    %2329 = vmatpush1.msra.mxu0 0.0
    %2330 = vmatprep.subr.mxu0 0.0
    %2331 = vmatpush1.msra.mxu0 0.0
    %2332 = vmatprep.subr.mxu0 0.0
    %2333 = vmatpush1.msra.mxu0 0.0
    %2334 = vmatprep.subr.mxu0 0.0
    %2335 = vmatpush1.msra.mxu0 0.0
    %2336 = vmatprep.subr.mxu0 0.0
    %2337 = vmatpush1.msra.mxu0 0.0
    %2338 = vmatprep.subr.mxu0 0.0
    %2339 = vmatpush1.msra.mxu0 0.0
    %2340 = vmatprep.subr.mxu0 0.0
    %v2341 = vand.u32 %v1969, 4294901760
    %v2342 = vsub.f32 %v1969, %v2341
    %v2343 = vand.u32 %v2342, 4294901760
    %2344 = vmatpush1.msra.mxu0 %v2343
    %2345 = vmatprep.subr.mxu0 0.0
    %v2346 = vand.u32 %v1963, 4294901760
    %v2347 = vsub.f32 %v1963, %v2346
    %v2348 = vand.u32 %v2347, 4294901760
    %2349 = vmatpush1.msra.mxu0 %v2348
    %2350 = vmatprep.subr.mxu0 0.0
    %2351 = vmatpush2.msra.mxu0 0.0
    %2352 = vmatprep.subr.mxu0 0.0
    %2353 = vmatpush2.msra.mxu0 0.0
    %2354 = vmatprep.subr.mxu0 0.0
    %2355 = vmatpush2.msra.mxu0 0.0
    %2356 = vmatprep.subr.mxu0 0.0
    %2357 = vmatpush2.msra.mxu0 0.0
    %2358 = vmatprep.subr.mxu0 0.0
    %2359 = vmatpush2.msra.mxu0 0.0
    %2360 = vmatprep.subr.mxu0 0.0
    %2361 = vmatpush2.msra.mxu0 0.0
    %2362 = vmatprep.subr.mxu0 0.0
    %2363 = vmatpush2.msra.mxu0 0.0
    %2364 = vmatprep.subr.mxu0 0.0
    %2365 = vmatpush2.msra.mxu0 0.0
    %2366 = vmatprep.subr.mxu0 0.0
    %2367 = vmatpush2.msra.mxu0 0.0
    %2368 = vmatprep.subr.mxu0 0.0
    %2369 = vmatpush2.msra.mxu0 0.0
    %2370 = vmatprep.subr.mxu0 0.0
    %2371 = vmatpush2.msra.mxu0 0.0
    %2372 = vmatprep.subr.mxu0 0.0
    %2373 = vmatpush2.msra.mxu0 0.0
    %2374 = vmatprep.subr.mxu0 0.0
    %2375 = vmatpush2.msra.mxu0 0.0
    %2376 = vmatprep.subr.mxu0 0.0
    %2377 = vmatpush2.msra.mxu0 0.0
    %2378 = vmatprep.subr.mxu0 0.0
    %2379 = vmatpush2.msra.mxu0 0.0
    %2380 = vmatprep.subr.mxu0 0.0
    %2381 = vmatpush2.msra.mxu0 0.0
    %2382 = vmatprep.mubr.f32.mxu0 0.0
    %v2383 = vand.u32 %v781, 4294901760
    %2384 = vmatmul.mubr.f32.gmra.mxu0 %v2383
    %v2385 = vpop.f32.mrf.mxu0
    %v2386 = vadd.f32 %v2301, %v2385
    %v2387 = vpop.f32.mrf.mxu0
    %2388 = vmatprep.mubr.f32.mxu0 0.0
    %v2389 = vand.u32 %v784, 4294901760
    %2390 = vmatmul.mubr.f32.gmra.mxu0 %v2389
    %v2391 = vpop.f32.mrf.mxu0
    %v2392 = vadd.f32 %v2309, %v2391
    %v2393 = vpop.f32.mrf.mxu0
    %2394 = vdwg.mxu0
    %2395 = vmatprep.subr.mxu0 0.0
    %2396 = vmatpush1.msra.mxu0 0.0
    %2397 = vmatprep.subr.mxu0 0.0
    %2398 = vmatpush1.msra.mxu0 0.0
    %2399 = vmatprep.subr.mxu0 0.0
    %2400 = vmatpush1.msra.mxu0 0.0
    %2401 = vmatprep.subr.mxu0 0.0
    %2402 = vmatpush1.msra.mxu0 0.0
    %2403 = vmatprep.subr.mxu0 0.0
    %2404 = vmatpush1.msra.mxu0 0.0
    %2405 = vmatprep.subr.mxu0 0.0
    %2406 = vmatpush1.msra.mxu0 0.0
    %2407 = vmatprep.subr.mxu0 0.0
    %2408 = vmatpush1.msra.mxu0 0.0
    %2409 = vmatprep.subr.mxu0 0.0
    %2410 = vmatpush1.msra.mxu0 0.0
    %2411 = vmatprep.subr.mxu0 0.0
    %2412 = vmatpush1.msra.mxu0 0.0
    %2413 = vmatprep.subr.mxu0 0.0
    %2414 = vmatpush1.msra.mxu0 0.0
    %2415 = vmatprep.subr.mxu0 0.0
    %2416 = vmatpush1.msra.mxu0 0.0
    %2417 = vmatprep.subr.mxu0 0.0
    %2418 = vmatpush1.msra.mxu0 0.0
    %2419 = vmatprep.subr.mxu0 0.0
    %2420 = vmatpush1.msra.mxu0 0.0
    %2421 = vmatprep.subr.mxu0 0.0
    %2422 = vmatpush1.msra.mxu0 0.0
    %2423 = vmatprep.subr.mxu0 0.0
    %v2424 = vand.u32 %v1969, 4294901760
    %2425 = vmatpush1.msra.mxu0 %v2424
    %2426 = vmatprep.subr.mxu0 0.0
    %v2427 = vand.u32 %v1963, 4294901760
    %2428 = vmatpush1.msra.mxu0 %v2427
    %2429 = vmatprep.subr.mxu0 0.0
    %2430 = vmatpush2.msra.mxu0 0.0
    %2431 = vmatprep.subr.mxu0 0.0
    %2432 = vmatpush2.msra.mxu0 0.0
    %2433 = vmatprep.subr.mxu0 0.0
    %2434 = vmatpush2.msra.mxu0 0.0
    %2435 = vmatprep.subr.mxu0 0.0
    %2436 = vmatpush2.msra.mxu0 0.0
    %2437 = vmatprep.subr.mxu0 0.0
    %2438 = vmatpush2.msra.mxu0 0.0
    %2439 = vmatprep.subr.mxu0 0.0
    %2440 = vmatpush2.msra.mxu0 0.0
    %2441 = vmatprep.subr.mxu0 0.0
    %2442 = vmatpush2.msra.mxu0 0.0
    %2443 = vmatprep.subr.mxu0 0.0
    %2444 = vmatpush2.msra.mxu0 0.0
    %2445 = vmatprep.subr.mxu0 0.0
    %2446 = vmatpush2.msra.mxu0 0.0
    %2447 = vmatprep.subr.mxu0 0.0
    %2448 = vmatpush2.msra.mxu0 0.0
    %2449 = vmatprep.subr.mxu0 0.0
    %2450 = vmatpush2.msra.mxu0 0.0
    %2451 = vmatprep.subr.mxu0 0.0
    %2452 = vmatpush2.msra.mxu0 0.0
    %2453 = vmatprep.subr.mxu0 0.0
    %2454 = vmatpush2.msra.mxu0 0.0
    %2455 = vmatprep.subr.mxu0 0.0
    %2456 = vmatpush2.msra.mxu0 0.0
    %2457 = vmatprep.subr.mxu0 0.0
    %2458 = vmatpush2.msra.mxu0 0.0
    %2459 = vmatprep.subr.mxu0 0.0
    %2460 = vmatpush2.msra.mxu0 0.0
    %2461 = vmatprep.mubr.f32.mxu0 0.0
    %v2462 = vand.u32 %v781, 4294901760
    %2463 = vmatmul.mubr.f32.gmra.mxu0 %v2462
    %v2464 = vpop.f32.mrf.mxu0
    %v2465 = vadd.f32 %v2386, %v2464
    %v2466 = vpop.f32.mrf.mxu0
    %2467 = vmatprep.mubr.f32.mxu0 0.0
    %v2468 = vand.u32 %v784, 4294901760
    %2469 = vmatmul.mubr.f32.gmra.mxu0 %v2468
    %v2470 = vpop.f32.mrf.mxu0
    %v2471 = vadd.f32 %v2392, %v2470
    %v2472 = vpop.f32.mrf.mxu0
    %2473 = vdwg.mxu0
    %v2474 = vmul.f32 %v73, %v73
    %v2475 = vmul.f32 %v74, %v74
    %2476 = vmatprep.subr.mxu0 0.0
    %v2477 = vand.u32 %v92, 4294901760
    %2478 = vmatpush1.msra.mxu0 %v2477
    %2479 = vmatprep.subr.mxu0 0.0
    %v2480 = vand.u32 %v91, 4294901760
    %2481 = vmatpush1.msra.mxu0 %v2480
    %2482 = vmatprep.subr.mxu0 0.0
    %v2483 = vand.u32 %v90, 4294901760
    %2484 = vmatpush1.msra.mxu0 %v2483
    %2485 = vmatprep.subr.mxu0 0.0
    %v2486 = vand.u32 %v89, 4294901760
    %2487 = vmatpush1.msra.mxu0 %v2486
    %2488 = vmatprep.subr.mxu0 0.0
    %v2489 = vand.u32 %v88, 4294901760
    %2490 = vmatpush1.msra.mxu0 %v2489
    %2491 = vmatprep.subr.mxu0 0.0
    %v2492 = vand.u32 %v87, 4294901760
    %2493 = vmatpush1.msra.mxu0 %v2492
    %2494 = vmatprep.subr.mxu0 0.0
    %v2495 = vand.u32 %v86, 4294901760
    %2496 = vmatpush1.msra.mxu0 %v2495
    %2497 = vmatprep.subr.mxu0 0.0
    %v2498 = vand.u32 %v85, 4294901760
    %2499 = vmatpush1.msra.mxu0 %v2498
    %2500 = vmatprep.subr.mxu0 0.0
    %v2501 = vand.u32 %v84, 4294901760
    %2502 = vmatpush1.msra.mxu0 %v2501
    %2503 = vmatprep.subr.mxu0 0.0
    %v2504 = vand.u32 %v83, 4294901760
    %2505 = vmatpush1.msra.mxu0 %v2504
    %2506 = vmatprep.subr.mxu0 0.0
    %v2507 = vand.u32 %v82, 4294901760
    %2508 = vmatpush1.msra.mxu0 %v2507
    %2509 = vmatprep.subr.mxu0 0.0
    %v2510 = vand.u32 %v81, 4294901760
    %2511 = vmatpush1.msra.mxu0 %v2510
    %2512 = vmatprep.subr.mxu0 0.0
    %v2513 = vand.u32 %v80, 4294901760
    %2514 = vmatpush1.msra.mxu0 %v2513
    %2515 = vmatprep.subr.mxu0 0.0
    %v2516 = vand.u32 %v79, 4294901760
    %2517 = vmatpush1.msra.mxu0 %v2516
    %2518 = vmatprep.subr.mxu0 0.0
    %v2519 = vand.u32 %v78, 4294901760
    %2520 = vmatpush1.msra.mxu0 %v2519
    %2521 = vmatprep.subr.mxu0 0.0
    %v2522 = vand.u32 %v77, 4294901760
    %2523 = vmatpush1.msra.mxu0 %v2522
    %2524 = vmatprep.subr.mxu0 0.0
    %2525 = vmatpush2.msra.mxu0 0.0
    %2526 = vmatprep.subr.mxu0 0.0
    %2527 = vmatpush2.msra.mxu0 0.0
    %2528 = vmatprep.subr.mxu0 0.0
    %2529 = vmatpush2.msra.mxu0 0.0
    %2530 = vmatprep.subr.mxu0 0.0
    %2531 = vmatpush2.msra.mxu0 0.0
    %2532 = vmatprep.subr.mxu0 0.0
    %2533 = vmatpush2.msra.mxu0 0.0
    %2534 = vmatprep.subr.mxu0 0.0
    %2535 = vmatpush2.msra.mxu0 0.0
    %2536 = vmatprep.subr.mxu0 0.0
    %2537 = vmatpush2.msra.mxu0 0.0
    %2538 = vmatprep.subr.mxu0 0.0
    %2539 = vmatpush2.msra.mxu0 0.0
    %2540 = vmatprep.subr.mxu0 0.0
    %2541 = vmatpush2.msra.mxu0 0.0
    %2542 = vmatprep.subr.mxu0 0.0
    %2543 = vmatpush2.msra.mxu0 0.0
    %2544 = vmatprep.subr.mxu0 0.0
    %2545 = vmatpush2.msra.mxu0 0.0
    %2546 = vmatprep.subr.mxu0 0.0
    %2547 = vmatpush2.msra.mxu0 0.0
    %2548 = vmatprep.subr.mxu0 0.0
    %2549 = vmatpush2.msra.mxu0 0.0
    %2550 = vmatprep.subr.mxu0 0.0
    %2551 = vmatpush2.msra.mxu0 0.0
    %2552 = vmatprep.subr.mxu0 0.0
    %2553 = vmatpush2.msra.mxu0 0.0
    %2554 = vmatprep.subr.mxu0 0.0
    %2555 = vmatpush2.msra.mxu0 0.0
    %2556 = vmatprep.mubr.f32.mxu0 0.0
    %v2557 = vand.u32 %v2474, 4294901760
    %v2558 = vsub.f32 %v2474, %v2557
    %v2559 = vand.u32 %v2558, 4294901760
    %v2560 = vsub.f32 %v2558, %v2559
    %v2561 = vand.u32 %v2560, 4294901760
    %2562 = vmatmul.mubr.f32.gmra.mxu0 %v2561
    %v2563 = vpop.f32.mrf.mxu0
    %v2564 = vadd.f32 0.0, %v2563
    %v2565 = vpop.f32.mrf.mxu0
    %2566 = vmatprep.mubr.f32.mxu0 0.0
    %v2567 = vand.u32 %v2475, 4294901760
    %v2568 = vsub.f32 %v2475, %v2567
    %v2569 = vand.u32 %v2568, 4294901760
    %v2570 = vsub.f32 %v2568, %v2569
    %v2571 = vand.u32 %v2570, 4294901760
    %2572 = vmatmul.mubr.f32.gmra.mxu0 %v2571
    %v2573 = vpop.f32.mrf.mxu0
    %v2574 = vadd.f32 0.0, %v2573
    %v2575 = vpop.f32.mrf.mxu0
    %2576 = vdwg.mxu0
    %2577 = vmatprep.subr.mxu0 0.0
    %v2578 = vand.u32 %v92, 4294901760
    %v2579 = vsub.f32 %v92, %v2578
    %v2580 = vand.u32 %v2579, 4294901760
    %v2581 = vsub.f32 %v2579, %v2580
    %v2582 = vand.u32 %v2581, 4294901760
    %2583 = vmatpush1.msra.mxu0 %v2582
    %2584 = vmatprep.subr.mxu0 0.0
    %v2585 = vand.u32 %v91, 4294901760
    %v2586 = vsub.f32 %v91, %v2585
    %v2587 = vand.u32 %v2586, 4294901760
    %v2588 = vsub.f32 %v2586, %v2587
    %v2589 = vand.u32 %v2588, 4294901760
    %2590 = vmatpush1.msra.mxu0 %v2589
    %2591 = vmatprep.subr.mxu0 0.0
    %v2592 = vand.u32 %v90, 4294901760
    %v2593 = vsub.f32 %v90, %v2592
    %v2594 = vand.u32 %v2593, 4294901760
    %v2595 = vsub.f32 %v2593, %v2594
    %v2596 = vand.u32 %v2595, 4294901760
    %2597 = vmatpush1.msra.mxu0 %v2596
    %2598 = vmatprep.subr.mxu0 0.0
    %v2599 = vand.u32 %v89, 4294901760
    %v2600 = vsub.f32 %v89, %v2599
    %v2601 = vand.u32 %v2600, 4294901760
    %v2602 = vsub.f32 %v2600, %v2601
    %v2603 = vand.u32 %v2602, 4294901760
    %2604 = vmatpush1.msra.mxu0 %v2603
    %2605 = vmatprep.subr.mxu0 0.0
    %v2606 = vand.u32 %v88, 4294901760
    %v2607 = vsub.f32 %v88, %v2606
    %v2608 = vand.u32 %v2607, 4294901760
    %v2609 = vsub.f32 %v2607, %v2608
    %v2610 = vand.u32 %v2609, 4294901760
    %2611 = vmatpush1.msra.mxu0 %v2610
    %2612 = vmatprep.subr.mxu0 0.0
    %v2613 = vand.u32 %v87, 4294901760
    %v2614 = vsub.f32 %v87, %v2613
    %v2615 = vand.u32 %v2614, 4294901760
    %v2616 = vsub.f32 %v2614, %v2615
    %v2617 = vand.u32 %v2616, 4294901760
    %2618 = vmatpush1.msra.mxu0 %v2617
    %2619 = vmatprep.subr.mxu0 0.0
    %v2620 = vand.u32 %v86, 4294901760
    %v2621 = vsub.f32 %v86, %v2620
    %v2622 = vand.u32 %v2621, 4294901760
    %v2623 = vsub.f32 %v2621, %v2622
    %v2624 = vand.u32 %v2623, 4294901760
    %2625 = vmatpush1.msra.mxu0 %v2624
    %2626 = vmatprep.subr.mxu0 0.0
    %v2627 = vand.u32 %v85, 4294901760
    %v2628 = vsub.f32 %v85, %v2627
    %v2629 = vand.u32 %v2628, 4294901760
    %v2630 = vsub.f32 %v2628, %v2629
    %v2631 = vand.u32 %v2630, 4294901760
    %2632 = vmatpush1.msra.mxu0 %v2631
    %2633 = vmatprep.subr.mxu0 0.0
    %v2634 = vand.u32 %v84, 4294901760
    %v2635 = vsub.f32 %v84, %v2634
    %v2636 = vand.u32 %v2635, 4294901760
    %v2637 = vsub.f32 %v2635, %v2636
    %v2638 = vand.u32 %v2637, 4294901760
    %2639 = vmatpush1.msra.mxu0 %v2638
    %2640 = vmatprep.subr.mxu0 0.0
    %v2641 = vand.u32 %v83, 4294901760
    %v2642 = vsub.f32 %v83, %v2641
    %v2643 = vand.u32 %v2642, 4294901760
    %v2644 = vsub.f32 %v2642, %v2643
    %v2645 = vand.u32 %v2644, 4294901760
    %2646 = vmatpush1.msra.mxu0 %v2645
    %2647 = vmatprep.subr.mxu0 0.0
    %v2648 = vand.u32 %v82, 4294901760
    %v2649 = vsub.f32 %v82, %v2648
    %v2650 = vand.u32 %v2649, 4294901760
    %v2651 = vsub.f32 %v2649, %v2650
    %v2652 = vand.u32 %v2651, 4294901760
    %2653 = vmatpush1.msra.mxu0 %v2652
    %2654 = vmatprep.subr.mxu0 0.0
    %v2655 = vand.u32 %v81, 4294901760
    %v2656 = vsub.f32 %v81, %v2655
    %v2657 = vand.u32 %v2656, 4294901760
    %v2658 = vsub.f32 %v2656, %v2657
    %v2659 = vand.u32 %v2658, 4294901760
    %2660 = vmatpush1.msra.mxu0 %v2659
    %2661 = vmatprep.subr.mxu0 0.0
    %v2662 = vand.u32 %v80, 4294901760
    %v2663 = vsub.f32 %v80, %v2662
    %v2664 = vand.u32 %v2663, 4294901760
    %v2665 = vsub.f32 %v2663, %v2664
    %v2666 = vand.u32 %v2665, 4294901760
    %2667 = vmatpush1.msra.mxu0 %v2666
    %2668 = vmatprep.subr.mxu0 0.0
    %v2669 = vand.u32 %v79, 4294901760
    %v2670 = vsub.f32 %v79, %v2669
    %v2671 = vand.u32 %v2670, 4294901760
    %v2672 = vsub.f32 %v2670, %v2671
    %v2673 = vand.u32 %v2672, 4294901760
    %2674 = vmatpush1.msra.mxu0 %v2673
    %2675 = vmatprep.subr.mxu0 0.0
    %v2676 = vand.u32 %v78, 4294901760
    %v2677 = vsub.f32 %v78, %v2676
    %v2678 = vand.u32 %v2677, 4294901760
    %v2679 = vsub.f32 %v2677, %v2678
    %v2680 = vand.u32 %v2679, 4294901760
    %2681 = vmatpush1.msra.mxu0 %v2680
    %2682 = vmatprep.subr.mxu0 0.0
    %v2683 = vand.u32 %v77, 4294901760
    %v2684 = vsub.f32 %v77, %v2683
    %v2685 = vand.u32 %v2684, 4294901760
    %v2686 = vsub.f32 %v2684, %v2685
    %v2687 = vand.u32 %v2686, 4294901760
    %2688 = vmatpush1.msra.mxu0 %v2687
    %2689 = vmatprep.subr.mxu0 0.0
    %2690 = vmatpush2.msra.mxu0 0.0
    %2691 = vmatprep.subr.mxu0 0.0
    %2692 = vmatpush2.msra.mxu0 0.0
    %2693 = vmatprep.subr.mxu0 0.0
    %2694 = vmatpush2.msra.mxu0 0.0
    %2695 = vmatprep.subr.mxu0 0.0
    %2696 = vmatpush2.msra.mxu0 0.0
    %2697 = vmatprep.subr.mxu0 0.0
    %2698 = vmatpush2.msra.mxu0 0.0
    %2699 = vmatprep.subr.mxu0 0.0
    %2700 = vmatpush2.msra.mxu0 0.0
    %2701 = vmatprep.subr.mxu0 0.0
    %2702 = vmatpush2.msra.mxu0 0.0
    %2703 = vmatprep.subr.mxu0 0.0
    %2704 = vmatpush2.msra.mxu0 0.0
    %2705 = vmatprep.subr.mxu0 0.0
    %2706 = vmatpush2.msra.mxu0 0.0
    %2707 = vmatprep.subr.mxu0 0.0
    %2708 = vmatpush2.msra.mxu0 0.0
    %2709 = vmatprep.subr.mxu0 0.0
    %2710 = vmatpush2.msra.mxu0 0.0
    %2711 = vmatprep.subr.mxu0 0.0
    %2712 = vmatpush2.msra.mxu0 0.0
    %2713 = vmatprep.subr.mxu0 0.0
    %2714 = vmatpush2.msra.mxu0 0.0
    %2715 = vmatprep.subr.mxu0 0.0
    %2716 = vmatpush2.msra.mxu0 0.0
    %2717 = vmatprep.subr.mxu0 0.0
    %2718 = vmatpush2.msra.mxu0 0.0
    %2719 = vmatprep.subr.mxu0 0.0
    %2720 = vmatpush2.msra.mxu0 0.0
    %2721 = vmatprep.mubr.f32.mxu0 0.0
    %v2722 = vand.u32 %v2474, 4294901760
    %2723 = vmatmul.mubr.f32.gmra.mxu0 %v2722
    %v2724 = vpop.f32.mrf.mxu0
    %v2725 = vadd.f32 %v2564, %v2724
    %v2726 = vpop.f32.mrf.mxu0
    %2727 = vmatprep.mubr.f32.mxu0 0.0
    %v2728 = vand.u32 %v2475, 4294901760
    %2729 = vmatmul.mubr.f32.gmra.mxu0 %v2728
    %v2730 = vpop.f32.mrf.mxu0
    %v2731 = vadd.f32 %v2574, %v2730
    %v2732 = vpop.f32.mrf.mxu0
    %2733 = vdwg.mxu0
    %2734 = vmatprep.subr.mxu0 0.0
    %v2735 = vand.u32 %v92, 4294901760
    %v2736 = vsub.f32 %v92, %v2735
    %2737 = vmatpush1.msra.mxu0 %v2736
    %2738 = vmatprep.subr.mxu0 0.0
    %v2739 = vand.u32 %v91, 4294901760
    %v2740 = vsub.f32 %v91, %v2739
    %2741 = vmatpush1.msra.mxu0 %v2740
    %2742 = vmatprep.subr.mxu0 0.0
    %v2743 = vand.u32 %v90, 4294901760
    %v2744 = vsub.f32 %v90, %v2743
    %2745 = vmatpush1.msra.mxu0 %v2744
    %2746 = vmatprep.subr.mxu0 0.0
    %v2747 = vand.u32 %v89, 4294901760
    %v2748 = vsub.f32 %v89, %v2747
    %2749 = vmatpush1.msra.mxu0 %v2748
    %2750 = vmatprep.subr.mxu0 0.0
    %v2751 = vand.u32 %v88, 4294901760
    %v2752 = vsub.f32 %v88, %v2751
    %2753 = vmatpush1.msra.mxu0 %v2752
    %2754 = vmatprep.subr.mxu0 0.0
    %v2755 = vand.u32 %v87, 4294901760
    %v2756 = vsub.f32 %v87, %v2755
    %2757 = vmatpush1.msra.mxu0 %v2756
    %2758 = vmatprep.subr.mxu0 0.0
    %v2759 = vand.u32 %v86, 4294901760
    %v2760 = vsub.f32 %v86, %v2759
    %2761 = vmatpush1.msra.mxu0 %v2760
    %2762 = vmatprep.subr.mxu0 0.0
    %v2763 = vand.u32 %v85, 4294901760
    %v2764 = vsub.f32 %v85, %v2763
    %2765 = vmatpush1.msra.mxu0 %v2764
    %2766 = vmatprep.subr.mxu0 0.0
    %v2767 = vand.u32 %v84, 4294901760
    %v2768 = vsub.f32 %v84, %v2767
    %2769 = vmatpush1.msra.mxu0 %v2768
    %2770 = vmatprep.subr.mxu0 0.0
    %v2771 = vand.u32 %v83, 4294901760
    %v2772 = vsub.f32 %v83, %v2771
    %2773 = vmatpush1.msra.mxu0 %v2772
    %2774 = vmatprep.subr.mxu0 0.0
    %v2775 = vand.u32 %v82, 4294901760
    %v2776 = vsub.f32 %v82, %v2775
    %2777 = vmatpush1.msra.mxu0 %v2776
    %2778 = vmatprep.subr.mxu0 0.0
    %v2779 = vand.u32 %v81, 4294901760
    %v2780 = vsub.f32 %v81, %v2779
    %2781 = vmatpush1.msra.mxu0 %v2780
    %2782 = vmatprep.subr.mxu0 0.0
    %v2783 = vand.u32 %v80, 4294901760
    %v2784 = vsub.f32 %v80, %v2783
    %2785 = vmatpush1.msra.mxu0 %v2784
    %2786 = vmatprep.subr.mxu0 0.0
    %v2787 = vand.u32 %v79, 4294901760
    %v2788 = vsub.f32 %v79, %v2787
    %2789 = vmatpush1.msra.mxu0 %v2788
    %2790 = vmatprep.subr.mxu0 0.0
    %v2791 = vand.u32 %v78, 4294901760
    %v2792 = vsub.f32 %v78, %v2791
    %2793 = vmatpush1.msra.mxu0 %v2792
    %2794 = vmatprep.subr.mxu0 0.0
    %v2795 = vand.u32 %v77, 4294901760
    %v2796 = vsub.f32 %v77, %v2795
    %2797 = vmatpush1.msra.mxu0 %v2796
    %2798 = vmatprep.subr.mxu0 0.0
    %2799 = vmatpush2.msra.mxu0 0.0
    %2800 = vmatprep.subr.mxu0 0.0
    %2801 = vmatpush2.msra.mxu0 0.0
    %2802 = vmatprep.subr.mxu0 0.0
    %2803 = vmatpush2.msra.mxu0 0.0
    %2804 = vmatprep.subr.mxu0 0.0
    %2805 = vmatpush2.msra.mxu0 0.0
    %2806 = vmatprep.subr.mxu0 0.0
    %2807 = vmatpush2.msra.mxu0 0.0
    %2808 = vmatprep.subr.mxu0 0.0
    %2809 = vmatpush2.msra.mxu0 0.0
    %2810 = vmatprep.subr.mxu0 0.0
    %2811 = vmatpush2.msra.mxu0 0.0
    %2812 = vmatprep.subr.mxu0 0.0
    %2813 = vmatpush2.msra.mxu0 0.0
    %2814 = vmatprep.subr.mxu0 0.0
    %2815 = vmatpush2.msra.mxu0 0.0
    %2816 = vmatprep.subr.mxu0 0.0
    %2817 = vmatpush2.msra.mxu0 0.0
    %2818 = vmatprep.subr.mxu0 0.0
    %2819 = vmatpush2.msra.mxu0 0.0
    %2820 = vmatprep.subr.mxu0 0.0
    %2821 = vmatpush2.msra.mxu0 0.0
    %2822 = vmatprep.subr.mxu0 0.0
    %2823 = vmatpush2.msra.mxu0 0.0
    %2824 = vmatprep.subr.mxu0 0.0
    %2825 = vmatpush2.msra.mxu0 0.0
    %2826 = vmatprep.subr.mxu0 0.0
    %2827 = vmatpush2.msra.mxu0 0.0
    %2828 = vmatprep.subr.mxu0 0.0
    %2829 = vmatpush2.msra.mxu0 0.0
    %2830 = vmatprep.mubr.f32.mxu0 0.0
    %v2831 = vand.u32 %v2474, 4294901760
    %v2832 = vsub.f32 %v2474, %v2831
    %2833 = vmatmul.mubr.f32.gmra.mxu0 %v2832
    %v2834 = vpop.f32.mrf.mxu0
    %v2835 = vadd.f32 %v2725, %v2834
    %v2836 = vpop.f32.mrf.mxu0
    %2837 = vmatprep.mubr.f32.mxu0 0.0
    %v2838 = vand.u32 %v2475, 4294901760
    %v2839 = vsub.f32 %v2475, %v2838
    %2840 = vmatmul.mubr.f32.gmra.mxu0 %v2839
    %v2841 = vpop.f32.mrf.mxu0
    %v2842 = vadd.f32 %v2731, %v2841
    %v2843 = vpop.f32.mrf.mxu0
    %2844 = vdwg.mxu0
    %2845 = vmatprep.subr.mxu0 0.0
    %v2846 = vand.u32 %v92, 4294901760
    %2847 = vmatpush1.msra.mxu0 %v2846
    %2848 = vmatprep.subr.mxu0 0.0
    %v2849 = vand.u32 %v91, 4294901760
    %2850 = vmatpush1.msra.mxu0 %v2849
    %2851 = vmatprep.subr.mxu0 0.0
    %v2852 = vand.u32 %v90, 4294901760
    %2853 = vmatpush1.msra.mxu0 %v2852
    %2854 = vmatprep.subr.mxu0 0.0
    %v2855 = vand.u32 %v89, 4294901760
    %2856 = vmatpush1.msra.mxu0 %v2855
    %2857 = vmatprep.subr.mxu0 0.0
    %v2858 = vand.u32 %v88, 4294901760
    %2859 = vmatpush1.msra.mxu0 %v2858
    %2860 = vmatprep.subr.mxu0 0.0
    %v2861 = vand.u32 %v87, 4294901760
    %2862 = vmatpush1.msra.mxu0 %v2861
    %2863 = vmatprep.subr.mxu0 0.0
    %v2864 = vand.u32 %v86, 4294901760
    %2865 = vmatpush1.msra.mxu0 %v2864
    %2866 = vmatprep.subr.mxu0 0.0
    %v2867 = vand.u32 %v85, 4294901760
    %2868 = vmatpush1.msra.mxu0 %v2867
    %2869 = vmatprep.subr.mxu0 0.0
    %v2870 = vand.u32 %v84, 4294901760
    %2871 = vmatpush1.msra.mxu0 %v2870
    %2872 = vmatprep.subr.mxu0 0.0
    %v2873 = vand.u32 %v83, 4294901760
    %2874 = vmatpush1.msra.mxu0 %v2873
    %2875 = vmatprep.subr.mxu0 0.0
    %v2876 = vand.u32 %v82, 4294901760
    %2877 = vmatpush1.msra.mxu0 %v2876
    %2878 = vmatprep.subr.mxu0 0.0
    %v2879 = vand.u32 %v81, 4294901760
    %2880 = vmatpush1.msra.mxu0 %v2879
    %2881 = vmatprep.subr.mxu0 0.0
    %v2882 = vand.u32 %v80, 4294901760
    %2883 = vmatpush1.msra.mxu0 %v2882
    %2884 = vmatprep.subr.mxu0 0.0
    %v2885 = vand.u32 %v79, 4294901760
    %2886 = vmatpush1.msra.mxu0 %v2885
    %2887 = vmatprep.subr.mxu0 0.0
    %v2888 = vand.u32 %v78, 4294901760
    %2889 = vmatpush1.msra.mxu0 %v2888
    %2890 = vmatprep.subr.mxu0 0.0
    %v2891 = vand.u32 %v77, 4294901760
    %2892 = vmatpush1.msra.mxu0 %v2891
    %2893 = vmatprep.subr.mxu0 0.0
    %2894 = vmatpush2.msra.mxu0 0.0
    %2895 = vmatprep.subr.mxu0 0.0
    %2896 = vmatpush2.msra.mxu0 0.0
    %2897 = vmatprep.subr.mxu0 0.0
    %2898 = vmatpush2.msra.mxu0 0.0
    %2899 = vmatprep.subr.mxu0 0.0
    %2900 = vmatpush2.msra.mxu0 0.0
    %2901 = vmatprep.subr.mxu0 0.0
    %2902 = vmatpush2.msra.mxu0 0.0
    %2903 = vmatprep.subr.mxu0 0.0
    %2904 = vmatpush2.msra.mxu0 0.0
    %2905 = vmatprep.subr.mxu0 0.0
    %2906 = vmatpush2.msra.mxu0 0.0
    %2907 = vmatprep.subr.mxu0 0.0
    %2908 = vmatpush2.msra.mxu0 0.0
    %2909 = vmatprep.subr.mxu0 0.0
    %2910 = vmatpush2.msra.mxu0 0.0
    %2911 = vmatprep.subr.mxu0 0.0
    %2912 = vmatpush2.msra.mxu0 0.0
    %2913 = vmatprep.subr.mxu0 0.0
    %2914 = vmatpush2.msra.mxu0 0.0
    %2915 = vmatprep.subr.mxu0 0.0
    %2916 = vmatpush2.msra.mxu0 0.0
    %2917 = vmatprep.subr.mxu0 0.0
    %2918 = vmatpush2.msra.mxu0 0.0
    %2919 = vmatprep.subr.mxu0 0.0
    %2920 = vmatpush2.msra.mxu0 0.0
    %2921 = vmatprep.subr.mxu0 0.0
    %2922 = vmatpush2.msra.mxu0 0.0
    %2923 = vmatprep.subr.mxu0 0.0
    %2924 = vmatpush2.msra.mxu0 0.0
    %2925 = vmatprep.mubr.f32.mxu0 0.0
    %v2926 = vand.u32 %v2474, 4294901760
    %v2927 = vsub.f32 %v2474, %v2926
    %v2928 = vand.u32 %v2927, 4294901760
    %2929 = vmatmul.mubr.f32.gmra.mxu0 %v2928
    %v2930 = vpop.f32.mrf.mxu0
    %v2931 = vadd.f32 %v2835, %v2930
    %v2932 = vpop.f32.mrf.mxu0
    %2933 = vmatprep.mubr.f32.mxu0 0.0
    %v2934 = vand.u32 %v2475, 4294901760
    %v2935 = vsub.f32 %v2475, %v2934
    %v2936 = vand.u32 %v2935, 4294901760
    %2937 = vmatmul.mubr.f32.gmra.mxu0 %v2936
    %v2938 = vpop.f32.mrf.mxu0
    %v2939 = vadd.f32 %v2842, %v2938
    %v2940 = vpop.f32.mrf.mxu0
    %2941 = vdwg.mxu0
    %2942 = vmatprep.subr.mxu0 0.0
    %v2943 = vand.u32 %v92, 4294901760
    %v2944 = vsub.f32 %v92, %v2943
    %v2945 = vand.u32 %v2944, 4294901760
    %2946 = vmatpush1.msra.mxu0 %v2945
    %2947 = vmatprep.subr.mxu0 0.0
    %v2948 = vand.u32 %v91, 4294901760
    %v2949 = vsub.f32 %v91, %v2948
    %v2950 = vand.u32 %v2949, 4294901760
    %2951 = vmatpush1.msra.mxu0 %v2950
    %2952 = vmatprep.subr.mxu0 0.0
    %v2953 = vand.u32 %v90, 4294901760
    %v2954 = vsub.f32 %v90, %v2953
    %v2955 = vand.u32 %v2954, 4294901760
    %2956 = vmatpush1.msra.mxu0 %v2955
    %2957 = vmatprep.subr.mxu0 0.0
    %v2958 = vand.u32 %v89, 4294901760
    %v2959 = vsub.f32 %v89, %v2958
    %v2960 = vand.u32 %v2959, 4294901760
    %2961 = vmatpush1.msra.mxu0 %v2960
    %2962 = vmatprep.subr.mxu0 0.0
    %v2963 = vand.u32 %v88, 4294901760
    %v2964 = vsub.f32 %v88, %v2963
    %v2965 = vand.u32 %v2964, 4294901760
    %2966 = vmatpush1.msra.mxu0 %v2965
    %2967 = vmatprep.subr.mxu0 0.0
    %v2968 = vand.u32 %v87, 4294901760
    %v2969 = vsub.f32 %v87, %v2968
    %v2970 = vand.u32 %v2969, 4294901760
    %2971 = vmatpush1.msra.mxu0 %v2970
    %2972 = vmatprep.subr.mxu0 0.0
    %v2973 = vand.u32 %v86, 4294901760
    %v2974 = vsub.f32 %v86, %v2973
    %v2975 = vand.u32 %v2974, 4294901760
    %2976 = vmatpush1.msra.mxu0 %v2975
    %2977 = vmatprep.subr.mxu0 0.0
    %v2978 = vand.u32 %v85, 4294901760
    %v2979 = vsub.f32 %v85, %v2978
    %v2980 = vand.u32 %v2979, 4294901760
    %2981 = vmatpush1.msra.mxu0 %v2980
    %2982 = vmatprep.subr.mxu0 0.0
    %v2983 = vand.u32 %v84, 4294901760
    %v2984 = vsub.f32 %v84, %v2983
    %v2985 = vand.u32 %v2984, 4294901760
    %2986 = vmatpush1.msra.mxu0 %v2985
    %2987 = vmatprep.subr.mxu0 0.0
    %v2988 = vand.u32 %v83, 4294901760
    %v2989 = vsub.f32 %v83, %v2988
    %v2990 = vand.u32 %v2989, 4294901760
    %2991 = vmatpush1.msra.mxu0 %v2990
    %2992 = vmatprep.subr.mxu0 0.0
    %v2993 = vand.u32 %v82, 4294901760
    %v2994 = vsub.f32 %v82, %v2993
    %v2995 = vand.u32 %v2994, 4294901760
    %2996 = vmatpush1.msra.mxu0 %v2995
    %2997 = vmatprep.subr.mxu0 0.0
    %v2998 = vand.u32 %v81, 4294901760
    %v2999 = vsub.f32 %v81, %v2998
    %v3000 = vand.u32 %v2999, 4294901760
    %3001 = vmatpush1.msra.mxu0 %v3000
    %3002 = vmatprep.subr.mxu0 0.0
    %v3003 = vand.u32 %v80, 4294901760
    %v3004 = vsub.f32 %v80, %v3003
    %v3005 = vand.u32 %v3004, 4294901760
    %3006 = vmatpush1.msra.mxu0 %v3005
    %3007 = vmatprep.subr.mxu0 0.0
    %v3008 = vand.u32 %v79, 4294901760
    %v3009 = vsub.f32 %v79, %v3008
    %v3010 = vand.u32 %v3009, 4294901760
    %3011 = vmatpush1.msra.mxu0 %v3010
    %3012 = vmatprep.subr.mxu0 0.0
    %v3013 = vand.u32 %v78, 4294901760
    %v3014 = vsub.f32 %v78, %v3013
    %v3015 = vand.u32 %v3014, 4294901760
    %3016 = vmatpush1.msra.mxu0 %v3015
    %3017 = vmatprep.subr.mxu0 0.0
    %v3018 = vand.u32 %v77, 4294901760
    %v3019 = vsub.f32 %v77, %v3018
    %v3020 = vand.u32 %v3019, 4294901760
    %3021 = vmatpush1.msra.mxu0 %v3020
    %3022 = vmatprep.subr.mxu0 0.0
    %3023 = vmatpush2.msra.mxu0 0.0
    %3024 = vmatprep.subr.mxu0 0.0
    %3025 = vmatpush2.msra.mxu0 0.0
    %3026 = vmatprep.subr.mxu0 0.0
    %3027 = vmatpush2.msra.mxu0 0.0
    %3028 = vmatprep.subr.mxu0 0.0
    %3029 = vmatpush2.msra.mxu0 0.0
    %3030 = vmatprep.subr.mxu0 0.0
    %3031 = vmatpush2.msra.mxu0 0.0
    %3032 = vmatprep.subr.mxu0 0.0
    %3033 = vmatpush2.msra.mxu0 0.0
    %3034 = vmatprep.subr.mxu0 0.0
    %3035 = vmatpush2.msra.mxu0 0.0
    %3036 = vmatprep.subr.mxu0 0.0
    %3037 = vmatpush2.msra.mxu0 0.0
    %3038 = vmatprep.subr.mxu0 0.0
    %3039 = vmatpush2.msra.mxu0 0.0
    %3040 = vmatprep.subr.mxu0 0.0
    %3041 = vmatpush2.msra.mxu0 0.0
    %3042 = vmatprep.subr.mxu0 0.0
    %3043 = vmatpush2.msra.mxu0 0.0
    %3044 = vmatprep.subr.mxu0 0.0
    %3045 = vmatpush2.msra.mxu0 0.0
    %3046 = vmatprep.subr.mxu0 0.0
    %3047 = vmatpush2.msra.mxu0 0.0
    %3048 = vmatprep.subr.mxu0 0.0
    %3049 = vmatpush2.msra.mxu0 0.0
    %3050 = vmatprep.subr.mxu0 0.0
    %3051 = vmatpush2.msra.mxu0 0.0
    %3052 = vmatprep.subr.mxu0 0.0
    %3053 = vmatpush2.msra.mxu0 0.0
    %3054 = vmatprep.mubr.f32.mxu0 0.0
    %v3055 = vand.u32 %v2474, 4294901760
    %3056 = vmatmul.mubr.f32.gmra.mxu0 %v3055
    %v3057 = vpop.f32.mrf.mxu0
    %v3058 = vadd.f32 %v2931, %v3057
    %v3059 = vpop.f32.mrf.mxu0
    %3060 = vmatprep.mubr.f32.mxu0 0.0
    %v3061 = vand.u32 %v2475, 4294901760
    %3062 = vmatmul.mubr.f32.gmra.mxu0 %v3061
    %v3063 = vpop.f32.mrf.mxu0
    %v3064 = vadd.f32 %v2939, %v3063
    %v3065 = vpop.f32.mrf.mxu0
    %3066 = vdwg.mxu0
    %3067 = vmatprep.subr.mxu0 0.0
    %v3068 = vand.u32 %v92, 4294901760
    %3069 = vmatpush1.msra.mxu0 %v3068
    %3070 = vmatprep.subr.mxu0 0.0
    %v3071 = vand.u32 %v91, 4294901760
    %3072 = vmatpush1.msra.mxu0 %v3071
    %3073 = vmatprep.subr.mxu0 0.0
    %v3074 = vand.u32 %v90, 4294901760
    %3075 = vmatpush1.msra.mxu0 %v3074
    %3076 = vmatprep.subr.mxu0 0.0
    %v3077 = vand.u32 %v89, 4294901760
    %3078 = vmatpush1.msra.mxu0 %v3077
    %3079 = vmatprep.subr.mxu0 0.0
    %v3080 = vand.u32 %v88, 4294901760
    %3081 = vmatpush1.msra.mxu0 %v3080
    %3082 = vmatprep.subr.mxu0 0.0
    %v3083 = vand.u32 %v87, 4294901760
    %3084 = vmatpush1.msra.mxu0 %v3083
    %3085 = vmatprep.subr.mxu0 0.0
    %v3086 = vand.u32 %v86, 4294901760
    %3087 = vmatpush1.msra.mxu0 %v3086
    %3088 = vmatprep.subr.mxu0 0.0
    %v3089 = vand.u32 %v85, 4294901760
    %3090 = vmatpush1.msra.mxu0 %v3089
    %3091 = vmatprep.subr.mxu0 0.0
    %v3092 = vand.u32 %v84, 4294901760
    %3093 = vmatpush1.msra.mxu0 %v3092
    %3094 = vmatprep.subr.mxu0 0.0
    %v3095 = vand.u32 %v83, 4294901760
    %3096 = vmatpush1.msra.mxu0 %v3095
    %3097 = vmatprep.subr.mxu0 0.0
    %v3098 = vand.u32 %v82, 4294901760
    %3099 = vmatpush1.msra.mxu0 %v3098
    %3100 = vmatprep.subr.mxu0 0.0
    %v3101 = vand.u32 %v81, 4294901760
    %3102 = vmatpush1.msra.mxu0 %v3101
    %3103 = vmatprep.subr.mxu0 0.0
    %v3104 = vand.u32 %v80, 4294901760
    %3105 = vmatpush1.msra.mxu0 %v3104
    %3106 = vmatprep.subr.mxu0 0.0
    %v3107 = vand.u32 %v79, 4294901760
    %3108 = vmatpush1.msra.mxu0 %v3107
    %3109 = vmatprep.subr.mxu0 0.0
    %v3110 = vand.u32 %v78, 4294901760
    %3111 = vmatpush1.msra.mxu0 %v3110
    %3112 = vmatprep.subr.mxu0 0.0
    %v3113 = vand.u32 %v77, 4294901760
    %3114 = vmatpush1.msra.mxu0 %v3113
    %3115 = vmatprep.subr.mxu0 0.0
    %3116 = vmatpush2.msra.mxu0 0.0
    %3117 = vmatprep.subr.mxu0 0.0
    %3118 = vmatpush2.msra.mxu0 0.0
    %3119 = vmatprep.subr.mxu0 0.0
    %3120 = vmatpush2.msra.mxu0 0.0
    %3121 = vmatprep.subr.mxu0 0.0
    %3122 = vmatpush2.msra.mxu0 0.0
    %3123 = vmatprep.subr.mxu0 0.0
    %3124 = vmatpush2.msra.mxu0 0.0
    %3125 = vmatprep.subr.mxu0 0.0
    %3126 = vmatpush2.msra.mxu0 0.0
    %3127 = vmatprep.subr.mxu0 0.0
    %3128 = vmatpush2.msra.mxu0 0.0
    %3129 = vmatprep.subr.mxu0 0.0
    %3130 = vmatpush2.msra.mxu0 0.0
    %3131 = vmatprep.subr.mxu0 0.0
    %3132 = vmatpush2.msra.mxu0 0.0
    %3133 = vmatprep.subr.mxu0 0.0
    %3134 = vmatpush2.msra.mxu0 0.0
    %3135 = vmatprep.subr.mxu0 0.0
    %3136 = vmatpush2.msra.mxu0 0.0
    %3137 = vmatprep.subr.mxu0 0.0
    %3138 = vmatpush2.msra.mxu0 0.0
    %3139 = vmatprep.subr.mxu0 0.0
    %3140 = vmatpush2.msra.mxu0 0.0
    %3141 = vmatprep.subr.mxu0 0.0
    %3142 = vmatpush2.msra.mxu0 0.0
    %3143 = vmatprep.subr.mxu0 0.0
    %3144 = vmatpush2.msra.mxu0 0.0
    %3145 = vmatprep.subr.mxu0 0.0
    %3146 = vmatpush2.msra.mxu0 0.0
    %3147 = vmatprep.mubr.f32.mxu0 0.0
    %v3148 = vand.u32 %v2474, 4294901760
    %3149 = vmatmul.mubr.f32.gmra.mxu0 %v3148
    %v3150 = vpop.f32.mrf.mxu0
    %v3151 = vadd.f32 %v3058, %v3150
    %v3152 = vpop.f32.mrf.mxu0
    %3153 = vmatprep.mubr.f32.mxu0 0.0
    %v3154 = vand.u32 %v2475, 4294901760
    %3155 = vmatmul.mubr.f32.gmra.mxu0 %v3154
    %v3156 = vpop.f32.mrf.mxu0
    %v3157 = vadd.f32 %v3064, %v3156
    %v3158 = vpop.f32.mrf.mxu0
    %3159 = vdwg.mxu0
    %3160 = vmatprep.subr.mxu0 0.0
    %3161 = vmatpush1.msra.mxu0 0.0
    %3162 = vmatprep.subr.mxu0 0.0
    %3163 = vmatpush1.msra.mxu0 0.0
    %3164 = vmatprep.subr.mxu0 0.0
    %3165 = vmatpush1.msra.mxu0 0.0
    %3166 = vmatprep.subr.mxu0 0.0
    %3167 = vmatpush1.msra.mxu0 0.0
    %3168 = vmatprep.subr.mxu0 0.0
    %3169 = vmatpush1.msra.mxu0 0.0
    %3170 = vmatprep.subr.mxu0 0.0
    %3171 = vmatpush1.msra.mxu0 0.0
    %3172 = vmatprep.subr.mxu0 0.0
    %3173 = vmatpush1.msra.mxu0 0.0
    %3174 = vmatprep.subr.mxu0 0.0
    %3175 = vmatpush1.msra.mxu0 0.0
    %3176 = vmatprep.subr.mxu0 0.0
    %3177 = vmatpush1.msra.mxu0 0.0
    %3178 = vmatprep.subr.mxu0 0.0
    %3179 = vmatpush1.msra.mxu0 0.0
    %3180 = vmatprep.subr.mxu0 0.0
    %3181 = vmatpush1.msra.mxu0 0.0
    %3182 = vmatprep.subr.mxu0 0.0
    %3183 = vmatpush1.msra.mxu0 0.0
    %3184 = vmatprep.subr.mxu0 0.0
    %3185 = vmatpush1.msra.mxu0 0.0
    %3186 = vmatprep.subr.mxu0 0.0
    %3187 = vmatpush1.msra.mxu0 0.0
    %3188 = vmatprep.subr.mxu0 0.0
    %v3189 = vand.u32 %v3157, 4294901760
    %3190 = vmatpush1.msra.mxu0 %v3189
    %3191 = vmatprep.subr.mxu0 0.0
    %v3192 = vand.u32 %v3151, 4294901760
    %3193 = vmatpush1.msra.mxu0 %v3192
    %3194 = vmatprep.subr.mxu0 0.0
    %3195 = vmatpush2.msra.mxu0 0.0
    %3196 = vmatprep.subr.mxu0 0.0
    %3197 = vmatpush2.msra.mxu0 0.0
    %3198 = vmatprep.subr.mxu0 0.0
    %3199 = vmatpush2.msra.mxu0 0.0
    %3200 = vmatprep.subr.mxu0 0.0
    %3201 = vmatpush2.msra.mxu0 0.0
    %3202 = vmatprep.subr.mxu0 0.0
    %3203 = vmatpush2.msra.mxu0 0.0
    %3204 = vmatprep.subr.mxu0 0.0
    %3205 = vmatpush2.msra.mxu0 0.0
    %3206 = vmatprep.subr.mxu0 0.0
    %3207 = vmatpush2.msra.mxu0 0.0
    %3208 = vmatprep.subr.mxu0 0.0
    %3209 = vmatpush2.msra.mxu0 0.0
    %3210 = vmatprep.subr.mxu0 0.0
    %3211 = vmatpush2.msra.mxu0 0.0
    %3212 = vmatprep.subr.mxu0 0.0
    %3213 = vmatpush2.msra.mxu0 0.0
    %3214 = vmatprep.subr.mxu0 0.0
    %3215 = vmatpush2.msra.mxu0 0.0
    %3216 = vmatprep.subr.mxu0 0.0
    %3217 = vmatpush2.msra.mxu0 0.0
    %3218 = vmatprep.subr.mxu0 0.0
    %3219 = vmatpush2.msra.mxu0 0.0
    %3220 = vmatprep.subr.mxu0 0.0
    %3221 = vmatpush2.msra.mxu0 0.0
    %3222 = vmatprep.subr.mxu0 0.0
    %3223 = vmatpush2.msra.mxu0 0.0
    %3224 = vmatprep.subr.mxu0 0.0
    %3225 = vmatpush2.msra.mxu0 0.0
    %3226 = vmatprep.mubr.f32.mxu0 0.0
    %v3227 = vand.u32 %v781, 4294901760
    %v3228 = vsub.f32 %v781, %v3227
    %v3229 = vand.u32 %v3228, 4294901760
    %v3230 = vsub.f32 %v3228, %v3229
    %v3231 = vand.u32 %v3230, 4294901760
    %3232 = vmatmul.mubr.f32.gmra.mxu0 %v3231
    %v3233 = vpop.f32.mrf.mxu0
    %v3234 = vadd.f32 0.0, %v3233
    %v3235 = vpop.f32.mrf.mxu0
    %3236 = vmatprep.mubr.f32.mxu0 0.0
    %v3237 = vand.u32 %v784, 4294901760
    %v3238 = vsub.f32 %v784, %v3237
    %v3239 = vand.u32 %v3238, 4294901760
    %v3240 = vsub.f32 %v3238, %v3239
    %v3241 = vand.u32 %v3240, 4294901760
    %3242 = vmatmul.mubr.f32.gmra.mxu0 %v3241
    %v3243 = vpop.f32.mrf.mxu0
    %v3244 = vadd.f32 0.0, %v3243
    %v3245 = vpop.f32.mrf.mxu0
    %3246 = vdwg.mxu0
    %3247 = vmatprep.subr.mxu0 0.0
    %3248 = vmatpush1.msra.mxu0 0.0
    %3249 = vmatprep.subr.mxu0 0.0
    %3250 = vmatpush1.msra.mxu0 0.0
    %3251 = vmatprep.subr.mxu0 0.0
    %3252 = vmatpush1.msra.mxu0 0.0
    %3253 = vmatprep.subr.mxu0 0.0
    %3254 = vmatpush1.msra.mxu0 0.0
    %3255 = vmatprep.subr.mxu0 0.0
    %3256 = vmatpush1.msra.mxu0 0.0
    %3257 = vmatprep.subr.mxu0 0.0
    %3258 = vmatpush1.msra.mxu0 0.0
    %3259 = vmatprep.subr.mxu0 0.0
    %3260 = vmatpush1.msra.mxu0 0.0
    %3261 = vmatprep.subr.mxu0 0.0
    %3262 = vmatpush1.msra.mxu0 0.0
    %3263 = vmatprep.subr.mxu0 0.0
    %3264 = vmatpush1.msra.mxu0 0.0
    %3265 = vmatprep.subr.mxu0 0.0
    %3266 = vmatpush1.msra.mxu0 0.0
    %3267 = vmatprep.subr.mxu0 0.0
    %3268 = vmatpush1.msra.mxu0 0.0
    %3269 = vmatprep.subr.mxu0 0.0
    %3270 = vmatpush1.msra.mxu0 0.0
    %3271 = vmatprep.subr.mxu0 0.0
    %3272 = vmatpush1.msra.mxu0 0.0
    %3273 = vmatprep.subr.mxu0 0.0
    %3274 = vmatpush1.msra.mxu0 0.0
    %3275 = vmatprep.subr.mxu0 0.0
    %v3276 = vand.u32 %v3157, 4294901760
    %v3277 = vsub.f32 %v3157, %v3276
    %v3278 = vand.u32 %v3277, 4294901760
    %v3279 = vsub.f32 %v3277, %v3278
    %v3280 = vand.u32 %v3279, 4294901760
    %3281 = vmatpush1.msra.mxu0 %v3280
    %3282 = vmatprep.subr.mxu0 0.0
    %v3283 = vand.u32 %v3151, 4294901760
    %v3284 = vsub.f32 %v3151, %v3283
    %v3285 = vand.u32 %v3284, 4294901760
    %v3286 = vsub.f32 %v3284, %v3285
    %v3287 = vand.u32 %v3286, 4294901760
    %3288 = vmatpush1.msra.mxu0 %v3287
    %3289 = vmatprep.subr.mxu0 0.0
    %3290 = vmatpush2.msra.mxu0 0.0
    %3291 = vmatprep.subr.mxu0 0.0
    %3292 = vmatpush2.msra.mxu0 0.0
    %3293 = vmatprep.subr.mxu0 0.0
    %3294 = vmatpush2.msra.mxu0 0.0
    %3295 = vmatprep.subr.mxu0 0.0
    %3296 = vmatpush2.msra.mxu0 0.0
    %3297 = vmatprep.subr.mxu0 0.0
    %3298 = vmatpush2.msra.mxu0 0.0
    %3299 = vmatprep.subr.mxu0 0.0
    %3300 = vmatpush2.msra.mxu0 0.0
    %3301 = vmatprep.subr.mxu0 0.0
    %3302 = vmatpush2.msra.mxu0 0.0
    %3303 = vmatprep.subr.mxu0 0.0
    %3304 = vmatpush2.msra.mxu0 0.0
    %3305 = vmatprep.subr.mxu0 0.0
    %3306 = vmatpush2.msra.mxu0 0.0
    %3307 = vmatprep.subr.mxu0 0.0
    %3308 = vmatpush2.msra.mxu0 0.0
    %3309 = vmatprep.subr.mxu0 0.0
    %3310 = vmatpush2.msra.mxu0 0.0
    %3311 = vmatprep.subr.mxu0 0.0
    %3312 = vmatpush2.msra.mxu0 0.0
    %3313 = vmatprep.subr.mxu0 0.0
    %3314 = vmatpush2.msra.mxu0 0.0
    %3315 = vmatprep.subr.mxu0 0.0
    %3316 = vmatpush2.msra.mxu0 0.0
    %3317 = vmatprep.subr.mxu0 0.0
    %3318 = vmatpush2.msra.mxu0 0.0
    %3319 = vmatprep.subr.mxu0 0.0
    %3320 = vmatpush2.msra.mxu0 0.0
    %3321 = vmatprep.mubr.f32.mxu0 0.0
    %v3322 = vand.u32 %v781, 4294901760
    %3323 = vmatmul.mubr.f32.gmra.mxu0 %v3322
    %v3324 = vpop.f32.mrf.mxu0
    %v3325 = vadd.f32 %v3234, %v3324
    %v3326 = vpop.f32.mrf.mxu0
    %3327 = vmatprep.mubr.f32.mxu0 0.0
    %v3328 = vand.u32 %v784, 4294901760
    %3329 = vmatmul.mubr.f32.gmra.mxu0 %v3328
    %v3330 = vpop.f32.mrf.mxu0
    %v3331 = vadd.f32 %v3244, %v3330
    %v3332 = vpop.f32.mrf.mxu0
    %3333 = vdwg.mxu0
    %3334 = vmatprep.subr.mxu0 0.0
    %3335 = vmatpush1.msra.mxu0 0.0
    %3336 = vmatprep.subr.mxu0 0.0
    %3337 = vmatpush1.msra.mxu0 0.0
    %3338 = vmatprep.subr.mxu0 0.0
    %3339 = vmatpush1.msra.mxu0 0.0
    %3340 = vmatprep.subr.mxu0 0.0
    %3341 = vmatpush1.msra.mxu0 0.0
    %3342 = vmatprep.subr.mxu0 0.0
    %3343 = vmatpush1.msra.mxu0 0.0
    %3344 = vmatprep.subr.mxu0 0.0
    %3345 = vmatpush1.msra.mxu0 0.0
    %3346 = vmatprep.subr.mxu0 0.0
    %3347 = vmatpush1.msra.mxu0 0.0
    %3348 = vmatprep.subr.mxu0 0.0
    %3349 = vmatpush1.msra.mxu0 0.0
    %3350 = vmatprep.subr.mxu0 0.0
    %3351 = vmatpush1.msra.mxu0 0.0
    %3352 = vmatprep.subr.mxu0 0.0
    %3353 = vmatpush1.msra.mxu0 0.0
    %3354 = vmatprep.subr.mxu0 0.0
    %3355 = vmatpush1.msra.mxu0 0.0
    %3356 = vmatprep.subr.mxu0 0.0
    %3357 = vmatpush1.msra.mxu0 0.0
    %3358 = vmatprep.subr.mxu0 0.0
    %3359 = vmatpush1.msra.mxu0 0.0
    %3360 = vmatprep.subr.mxu0 0.0
    %3361 = vmatpush1.msra.mxu0 0.0
    %3362 = vmatprep.subr.mxu0 0.0
    %v3363 = vand.u32 %v3157, 4294901760
    %v3364 = vsub.f32 %v3157, %v3363
    %3365 = vmatpush1.msra.mxu0 %v3364
    %3366 = vmatprep.subr.mxu0 0.0
    %v3367 = vand.u32 %v3151, 4294901760
    %v3368 = vsub.f32 %v3151, %v3367
    %3369 = vmatpush1.msra.mxu0 %v3368
    %3370 = vmatprep.subr.mxu0 0.0
    %3371 = vmatpush2.msra.mxu0 0.0
    %3372 = vmatprep.subr.mxu0 0.0
    %3373 = vmatpush2.msra.mxu0 0.0
    %3374 = vmatprep.subr.mxu0 0.0
    %3375 = vmatpush2.msra.mxu0 0.0
    %3376 = vmatprep.subr.mxu0 0.0
    %3377 = vmatpush2.msra.mxu0 0.0
    %3378 = vmatprep.subr.mxu0 0.0
    %3379 = vmatpush2.msra.mxu0 0.0
    %3380 = vmatprep.subr.mxu0 0.0
    %3381 = vmatpush2.msra.mxu0 0.0
    %3382 = vmatprep.subr.mxu0 0.0
    %3383 = vmatpush2.msra.mxu0 0.0
    %3384 = vmatprep.subr.mxu0 0.0
    %3385 = vmatpush2.msra.mxu0 0.0
    %3386 = vmatprep.subr.mxu0 0.0
    %3387 = vmatpush2.msra.mxu0 0.0
    %3388 = vmatprep.subr.mxu0 0.0
    %3389 = vmatpush2.msra.mxu0 0.0
    %3390 = vmatprep.subr.mxu0 0.0
    %3391 = vmatpush2.msra.mxu0 0.0
    %3392 = vmatprep.subr.mxu0 0.0
    %3393 = vmatpush2.msra.mxu0 0.0
    %3394 = vmatprep.subr.mxu0 0.0
    %3395 = vmatpush2.msra.mxu0 0.0
    %3396 = vmatprep.subr.mxu0 0.0
    %3397 = vmatpush2.msra.mxu0 0.0
    %3398 = vmatprep.subr.mxu0 0.0
    %3399 = vmatpush2.msra.mxu0 0.0
    %3400 = vmatprep.subr.mxu0 0.0
    %3401 = vmatpush2.msra.mxu0 0.0
    %3402 = vmatprep.mubr.f32.mxu0 0.0
    %v3403 = vand.u32 %v781, 4294901760
    %v3404 = vsub.f32 %v781, %v3403
    %3405 = vmatmul.mubr.f32.gmra.mxu0 %v3404
    %v3406 = vpop.f32.mrf.mxu0
    %v3407 = vadd.f32 %v3325, %v3406
    %v3408 = vpop.f32.mrf.mxu0
    %3409 = vmatprep.mubr.f32.mxu0 0.0
    %v3410 = vand.u32 %v784, 4294901760
    %v3411 = vsub.f32 %v784, %v3410
    %3412 = vmatmul.mubr.f32.gmra.mxu0 %v3411
    %v3413 = vpop.f32.mrf.mxu0
    %v3414 = vadd.f32 %v3331, %v3413
    %v3415 = vpop.f32.mrf.mxu0
    %3416 = vdwg.mxu0
    %3417 = vmatprep.subr.mxu0 0.0
    %3418 = vmatpush1.msra.mxu0 0.0
    %3419 = vmatprep.subr.mxu0 0.0
    %3420 = vmatpush1.msra.mxu0 0.0
    %3421 = vmatprep.subr.mxu0 0.0
    %3422 = vmatpush1.msra.mxu0 0.0
    %3423 = vmatprep.subr.mxu0 0.0
    %3424 = vmatpush1.msra.mxu0 0.0
    %3425 = vmatprep.subr.mxu0 0.0
    %3426 = vmatpush1.msra.mxu0 0.0
    %3427 = vmatprep.subr.mxu0 0.0
    %3428 = vmatpush1.msra.mxu0 0.0
    %3429 = vmatprep.subr.mxu0 0.0
    %3430 = vmatpush1.msra.mxu0 0.0
    %3431 = vmatprep.subr.mxu0 0.0
    %3432 = vmatpush1.msra.mxu0 0.0
    %3433 = vmatprep.subr.mxu0 0.0
    %3434 = vmatpush1.msra.mxu0 0.0
    %3435 = vmatprep.subr.mxu0 0.0
    %3436 = vmatpush1.msra.mxu0 0.0
    %3437 = vmatprep.subr.mxu0 0.0
    %3438 = vmatpush1.msra.mxu0 0.0
    %3439 = vmatprep.subr.mxu0 0.0
    %3440 = vmatpush1.msra.mxu0 0.0
    %3441 = vmatprep.subr.mxu0 0.0
    %3442 = vmatpush1.msra.mxu0 0.0
    %3443 = vmatprep.subr.mxu0 0.0
    %3444 = vmatpush1.msra.mxu0 0.0
    %3445 = vmatprep.subr.mxu0 0.0
    %v3446 = vand.u32 %v3157, 4294901760
    %3447 = vmatpush1.msra.mxu0 %v3446
    %3448 = vmatprep.subr.mxu0 0.0
    %v3449 = vand.u32 %v3151, 4294901760
    %3450 = vmatpush1.msra.mxu0 %v3449
    %3451 = vmatprep.subr.mxu0 0.0
    %3452 = vmatpush2.msra.mxu0 0.0
    %3453 = vmatprep.subr.mxu0 0.0
    %3454 = vmatpush2.msra.mxu0 0.0
    %3455 = vmatprep.subr.mxu0 0.0
    %3456 = vmatpush2.msra.mxu0 0.0
    %3457 = vmatprep.subr.mxu0 0.0
    %3458 = vmatpush2.msra.mxu0 0.0
    %3459 = vmatprep.subr.mxu0 0.0
    %3460 = vmatpush2.msra.mxu0 0.0
    %3461 = vmatprep.subr.mxu0 0.0
    %3462 = vmatpush2.msra.mxu0 0.0
    %3463 = vmatprep.subr.mxu0 0.0
    %3464 = vmatpush2.msra.mxu0 0.0
    %3465 = vmatprep.subr.mxu0 0.0
    %3466 = vmatpush2.msra.mxu0 0.0
    %3467 = vmatprep.subr.mxu0 0.0
    %3468 = vmatpush2.msra.mxu0 0.0
    %3469 = vmatprep.subr.mxu0 0.0
    %3470 = vmatpush2.msra.mxu0 0.0
    %3471 = vmatprep.subr.mxu0 0.0
    %3472 = vmatpush2.msra.mxu0 0.0
    %3473 = vmatprep.subr.mxu0 0.0
    %3474 = vmatpush2.msra.mxu0 0.0
    %3475 = vmatprep.subr.mxu0 0.0
    %3476 = vmatpush2.msra.mxu0 0.0
    %3477 = vmatprep.subr.mxu0 0.0
    %3478 = vmatpush2.msra.mxu0 0.0
    %3479 = vmatprep.subr.mxu0 0.0
    %3480 = vmatpush2.msra.mxu0 0.0
    %3481 = vmatprep.subr.mxu0 0.0
    %3482 = vmatpush2.msra.mxu0 0.0
    %3483 = vmatprep.mubr.f32.mxu0 0.0
    %v3484 = vand.u32 %v781, 4294901760
    %v3485 = vsub.f32 %v781, %v3484
    %v3486 = vand.u32 %v3485, 4294901760
    %3487 = vmatmul.mubr.f32.gmra.mxu0 %v3486
    %v3488 = vpop.f32.mrf.mxu0
    %v3489 = vadd.f32 %v3407, %v3488
    %v3490 = vpop.f32.mrf.mxu0
    %3491 = vmatprep.mubr.f32.mxu0 0.0
    %v3492 = vand.u32 %v784, 4294901760
    %v3493 = vsub.f32 %v784, %v3492
    %v3494 = vand.u32 %v3493, 4294901760
    %3495 = vmatmul.mubr.f32.gmra.mxu0 %v3494
    %v3496 = vpop.f32.mrf.mxu0
    %v3497 = vadd.f32 %v3414, %v3496
    %v3498 = vpop.f32.mrf.mxu0
    %3499 = vdwg.mxu0
    %3500 = vmatprep.subr.mxu0 0.0
    %3501 = vmatpush1.msra.mxu0 0.0
    %3502 = vmatprep.subr.mxu0 0.0
    %3503 = vmatpush1.msra.mxu0 0.0
    %3504 = vmatprep.subr.mxu0 0.0
    %3505 = vmatpush1.msra.mxu0 0.0
    %3506 = vmatprep.subr.mxu0 0.0
    %3507 = vmatpush1.msra.mxu0 0.0
    %3508 = vmatprep.subr.mxu0 0.0
    %3509 = vmatpush1.msra.mxu0 0.0
    %3510 = vmatprep.subr.mxu0 0.0
    %3511 = vmatpush1.msra.mxu0 0.0
    %3512 = vmatprep.subr.mxu0 0.0
    %3513 = vmatpush1.msra.mxu0 0.0
    %3514 = vmatprep.subr.mxu0 0.0
    %3515 = vmatpush1.msra.mxu0 0.0
    %3516 = vmatprep.subr.mxu0 0.0
    %3517 = vmatpush1.msra.mxu0 0.0
    %3518 = vmatprep.subr.mxu0 0.0
    %3519 = vmatpush1.msra.mxu0 0.0
    %3520 = vmatprep.subr.mxu0 0.0
    %3521 = vmatpush1.msra.mxu0 0.0
    %3522 = vmatprep.subr.mxu0 0.0
    %3523 = vmatpush1.msra.mxu0 0.0
    %3524 = vmatprep.subr.mxu0 0.0
    %3525 = vmatpush1.msra.mxu0 0.0
    %3526 = vmatprep.subr.mxu0 0.0
    %3527 = vmatpush1.msra.mxu0 0.0
    %3528 = vmatprep.subr.mxu0 0.0
    %v3529 = vand.u32 %v3157, 4294901760
    %v3530 = vsub.f32 %v3157, %v3529
    %v3531 = vand.u32 %v3530, 4294901760
    %3532 = vmatpush1.msra.mxu0 %v3531
    %3533 = vmatprep.subr.mxu0 0.0
    %v3534 = vand.u32 %v3151, 4294901760
    %v3535 = vsub.f32 %v3151, %v3534
    %v3536 = vand.u32 %v3535, 4294901760
    %3537 = vmatpush1.msra.mxu0 %v3536
    %3538 = vmatprep.subr.mxu0 0.0
    %3539 = vmatpush2.msra.mxu0 0.0
    %3540 = vmatprep.subr.mxu0 0.0
    %3541 = vmatpush2.msra.mxu0 0.0
    %3542 = vmatprep.subr.mxu0 0.0
    %3543 = vmatpush2.msra.mxu0 0.0
    %3544 = vmatprep.subr.mxu0 0.0
    %3545 = vmatpush2.msra.mxu0 0.0
    %3546 = vmatprep.subr.mxu0 0.0
    %3547 = vmatpush2.msra.mxu0 0.0
    %3548 = vmatprep.subr.mxu0 0.0
    %3549 = vmatpush2.msra.mxu0 0.0
    %3550 = vmatprep.subr.mxu0 0.0
    %3551 = vmatpush2.msra.mxu0 0.0
    %3552 = vmatprep.subr.mxu0 0.0
    %3553 = vmatpush2.msra.mxu0 0.0
    %3554 = vmatprep.subr.mxu0 0.0
    %3555 = vmatpush2.msra.mxu0 0.0
    %3556 = vmatprep.subr.mxu0 0.0
    %3557 = vmatpush2.msra.mxu0 0.0
    %3558 = vmatprep.subr.mxu0 0.0
    %3559 = vmatpush2.msra.mxu0 0.0
    %3560 = vmatprep.subr.mxu0 0.0
    %3561 = vmatpush2.msra.mxu0 0.0
    %3562 = vmatprep.subr.mxu0 0.0
    %3563 = vmatpush2.msra.mxu0 0.0
    %3564 = vmatprep.subr.mxu0 0.0
    %3565 = vmatpush2.msra.mxu0 0.0
    %3566 = vmatprep.subr.mxu0 0.0
    %3567 = vmatpush2.msra.mxu0 0.0
    %3568 = vmatprep.subr.mxu0 0.0
    %3569 = vmatpush2.msra.mxu0 0.0
    %3570 = vmatprep.mubr.f32.mxu0 0.0
    %v3571 = vand.u32 %v781, 4294901760
    %3572 = vmatmul.mubr.f32.gmra.mxu0 %v3571
    %v3573 = vpop.f32.mrf.mxu0
    %v3574 = vadd.f32 %v3489, %v3573
    %v3575 = vpop.f32.mrf.mxu0
    %3576 = vmatprep.mubr.f32.mxu0 0.0
    %v3577 = vand.u32 %v784, 4294901760
    %3578 = vmatmul.mubr.f32.gmra.mxu0 %v3577
    %v3579 = vpop.f32.mrf.mxu0
    %v3580 = vadd.f32 %v3497, %v3579
    %v3581 = vpop.f32.mrf.mxu0
    %3582 = vdwg.mxu0
    %3583 = vmatprep.subr.mxu0 0.0
    %3584 = vmatpush1.msra.mxu0 0.0
    %3585 = vmatprep.subr.mxu0 0.0
    %3586 = vmatpush1.msra.mxu0 0.0
    %3587 = vmatprep.subr.mxu0 0.0
    %3588 = vmatpush1.msra.mxu0 0.0
    %3589 = vmatprep.subr.mxu0 0.0
    %3590 = vmatpush1.msra.mxu0 0.0
    %3591 = vmatprep.subr.mxu0 0.0
    %3592 = vmatpush1.msra.mxu0 0.0
    %3593 = vmatprep.subr.mxu0 0.0
    %3594 = vmatpush1.msra.mxu0 0.0
    %3595 = vmatprep.subr.mxu0 0.0
    %3596 = vmatpush1.msra.mxu0 0.0
    %3597 = vmatprep.subr.mxu0 0.0
    %3598 = vmatpush1.msra.mxu0 0.0
    %3599 = vmatprep.subr.mxu0 0.0
    %3600 = vmatpush1.msra.mxu0 0.0
    %3601 = vmatprep.subr.mxu0 0.0
    %3602 = vmatpush1.msra.mxu0 0.0
    %3603 = vmatprep.subr.mxu0 0.0
    %3604 = vmatpush1.msra.mxu0 0.0
    %3605 = vmatprep.subr.mxu0 0.0
    %3606 = vmatpush1.msra.mxu0 0.0
    %3607 = vmatprep.subr.mxu0 0.0
    %3608 = vmatpush1.msra.mxu0 0.0
    %3609 = vmatprep.subr.mxu0 0.0
    %3610 = vmatpush1.msra.mxu0 0.0
    %3611 = vmatprep.subr.mxu0 0.0
    %v3612 = vand.u32 %v3157, 4294901760
    %3613 = vmatpush1.msra.mxu0 %v3612
    %3614 = vmatprep.subr.mxu0 0.0
    %v3615 = vand.u32 %v3151, 4294901760
    %3616 = vmatpush1.msra.mxu0 %v3615
    %3617 = vmatprep.subr.mxu0 0.0
    %3618 = vmatpush2.msra.mxu0 0.0
    %3619 = vmatprep.subr.mxu0 0.0
    %3620 = vmatpush2.msra.mxu0 0.0
    %3621 = vmatprep.subr.mxu0 0.0
    %3622 = vmatpush2.msra.mxu0 0.0
    %3623 = vmatprep.subr.mxu0 0.0
    %3624 = vmatpush2.msra.mxu0 0.0
    %3625 = vmatprep.subr.mxu0 0.0
    %3626 = vmatpush2.msra.mxu0 0.0
    %3627 = vmatprep.subr.mxu0 0.0
    %3628 = vmatpush2.msra.mxu0 0.0
    %3629 = vmatprep.subr.mxu0 0.0
    %3630 = vmatpush2.msra.mxu0 0.0
    %3631 = vmatprep.subr.mxu0 0.0
    %3632 = vmatpush2.msra.mxu0 0.0
    %3633 = vmatprep.subr.mxu0 0.0
    %3634 = vmatpush2.msra.mxu0 0.0
    %3635 = vmatprep.subr.mxu0 0.0
    %3636 = vmatpush2.msra.mxu0 0.0
    %3637 = vmatprep.subr.mxu0 0.0
    %3638 = vmatpush2.msra.mxu0 0.0
    %3639 = vmatprep.subr.mxu0 0.0
    %3640 = vmatpush2.msra.mxu0 0.0
    %3641 = vmatprep.subr.mxu0 0.0
    %3642 = vmatpush2.msra.mxu0 0.0
    %3643 = vmatprep.subr.mxu0 0.0
    %3644 = vmatpush2.msra.mxu0 0.0
    %3645 = vmatprep.subr.mxu0 0.0
    %3646 = vmatpush2.msra.mxu0 0.0
    %3647 = vmatprep.subr.mxu0 0.0
    %3648 = vmatpush2.msra.mxu0 0.0
    %3649 = vmatprep.mubr.f32.mxu0 0.0
    %v3650 = vand.u32 %v781, 4294901760
    %3651 = vmatmul.mubr.f32.gmra.mxu0 %v3650
    %v3652 = vpop.f32.mrf.mxu0
    %v3653 = vadd.f32 %v3574, %v3652
    %v3654 = vpop.f32.mrf.mxu0
    %3655 = vmatprep.mubr.f32.mxu0 0.0
    %v3656 = vand.u32 %v784, 4294901760
    %3657 = vmatmul.mubr.f32.gmra.mxu0 %v3656
    %v3658 = vpop.f32.mrf.mxu0
    %v3659 = vadd.f32 %v3580, %v3658
    %v3660 = vpop.f32.mrf.mxu0
    %3661 = vdwg.mxu0
    %v3662 = vmul.f32 %v75, %v75
    %v3663 = vmul.f32 %v76, %v76
    %3664 = vmatprep.subr.mxu0 0.0
    %v3665 = vand.u32 %v92, 4294901760
    %3666 = vmatpush1.msra.mxu0 %v3665
    %3667 = vmatprep.subr.mxu0 0.0
    %v3668 = vand.u32 %v91, 4294901760
    %3669 = vmatpush1.msra.mxu0 %v3668
    %3670 = vmatprep.subr.mxu0 0.0
    %v3671 = vand.u32 %v90, 4294901760
    %3672 = vmatpush1.msra.mxu0 %v3671
    %3673 = vmatprep.subr.mxu0 0.0
    %v3674 = vand.u32 %v89, 4294901760
    %3675 = vmatpush1.msra.mxu0 %v3674
    %3676 = vmatprep.subr.mxu0 0.0
    %v3677 = vand.u32 %v88, 4294901760
    %3678 = vmatpush1.msra.mxu0 %v3677
    %3679 = vmatprep.subr.mxu0 0.0
    %v3680 = vand.u32 %v87, 4294901760
    %3681 = vmatpush1.msra.mxu0 %v3680
    %3682 = vmatprep.subr.mxu0 0.0
    %v3683 = vand.u32 %v86, 4294901760
    %3684 = vmatpush1.msra.mxu0 %v3683
    %3685 = vmatprep.subr.mxu0 0.0
    %v3686 = vand.u32 %v85, 4294901760
    %3687 = vmatpush1.msra.mxu0 %v3686
    %3688 = vmatprep.subr.mxu0 0.0
    %v3689 = vand.u32 %v84, 4294901760
    %3690 = vmatpush1.msra.mxu0 %v3689
    %3691 = vmatprep.subr.mxu0 0.0
    %v3692 = vand.u32 %v83, 4294901760
    %3693 = vmatpush1.msra.mxu0 %v3692
    %3694 = vmatprep.subr.mxu0 0.0
    %v3695 = vand.u32 %v82, 4294901760
    %3696 = vmatpush1.msra.mxu0 %v3695
    %3697 = vmatprep.subr.mxu0 0.0
    %v3698 = vand.u32 %v81, 4294901760
    %3699 = vmatpush1.msra.mxu0 %v3698
    %3700 = vmatprep.subr.mxu0 0.0
    %v3701 = vand.u32 %v80, 4294901760
    %3702 = vmatpush1.msra.mxu0 %v3701
    %3703 = vmatprep.subr.mxu0 0.0
    %v3704 = vand.u32 %v79, 4294901760
    %3705 = vmatpush1.msra.mxu0 %v3704
    %3706 = vmatprep.subr.mxu0 0.0
    %v3707 = vand.u32 %v78, 4294901760
    %3708 = vmatpush1.msra.mxu0 %v3707
    %3709 = vmatprep.subr.mxu0 0.0
    %v3710 = vand.u32 %v77, 4294901760
    %3711 = vmatpush1.msra.mxu0 %v3710
    %3712 = vmatprep.subr.mxu0 0.0
    %3713 = vmatpush2.msra.mxu0 0.0
    %3714 = vmatprep.subr.mxu0 0.0
    %3715 = vmatpush2.msra.mxu0 0.0
    %3716 = vmatprep.subr.mxu0 0.0
    %3717 = vmatpush2.msra.mxu0 0.0
    %3718 = vmatprep.subr.mxu0 0.0
    %3719 = vmatpush2.msra.mxu0 0.0
    %3720 = vmatprep.subr.mxu0 0.0
    %3721 = vmatpush2.msra.mxu0 0.0
    %3722 = vmatprep.subr.mxu0 0.0
    %3723 = vmatpush2.msra.mxu0 0.0
    %3724 = vmatprep.subr.mxu0 0.0
    %3725 = vmatpush2.msra.mxu0 0.0
    %3726 = vmatprep.subr.mxu0 0.0
    %3727 = vmatpush2.msra.mxu0 0.0
    %3728 = vmatprep.subr.mxu0 0.0
    %3729 = vmatpush2.msra.mxu0 0.0
    %3730 = vmatprep.subr.mxu0 0.0
    %3731 = vmatpush2.msra.mxu0 0.0
    %3732 = vmatprep.subr.mxu0 0.0
    %3733 = vmatpush2.msra.mxu0 0.0
    %3734 = vmatprep.subr.mxu0 0.0
    %3735 = vmatpush2.msra.mxu0 0.0
    %3736 = vmatprep.subr.mxu0 0.0
    %3737 = vmatpush2.msra.mxu0 0.0
    %3738 = vmatprep.subr.mxu0 0.0
    %3739 = vmatpush2.msra.mxu0 0.0
    %3740 = vmatprep.subr.mxu0 0.0
    %3741 = vmatpush2.msra.mxu0 0.0
    %3742 = vmatprep.subr.mxu0 0.0
    %3743 = vmatpush2.msra.mxu0 0.0
    %3744 = vmatprep.mubr.f32.mxu0 0.0
    %v3745 = vand.u32 %v3662, 4294901760
    %v3746 = vsub.f32 %v3662, %v3745
    %v3747 = vand.u32 %v3746, 4294901760
    %v3748 = vsub.f32 %v3746, %v3747
    %v3749 = vand.u32 %v3748, 4294901760
    %3750 = vmatmul.mubr.f32.gmra.mxu0 %v3749
    %v3751 = vpop.f32.mrf.mxu0
    %v3752 = vadd.f32 0.0, %v3751
    %v3753 = vpop.f32.mrf.mxu0
    %3754 = vmatprep.mubr.f32.mxu0 0.0
    %v3755 = vand.u32 %v3663, 4294901760
    %v3756 = vsub.f32 %v3663, %v3755
    %v3757 = vand.u32 %v3756, 4294901760
    %v3758 = vsub.f32 %v3756, %v3757
    %v3759 = vand.u32 %v3758, 4294901760
    %3760 = vmatmul.mubr.f32.gmra.mxu0 %v3759
    %v3761 = vpop.f32.mrf.mxu0
    %v3762 = vadd.f32 0.0, %v3761
    %v3763 = vpop.f32.mrf.mxu0
    %3764 = vdwg.mxu0
    %3765 = vmatprep.subr.mxu0 0.0
    %v3766 = vand.u32 %v92, 4294901760
    %v3767 = vsub.f32 %v92, %v3766
    %v3768 = vand.u32 %v3767, 4294901760
    %v3769 = vsub.f32 %v3767, %v3768
    %v3770 = vand.u32 %v3769, 4294901760
    %3771 = vmatpush1.msra.mxu0 %v3770
    %3772 = vmatprep.subr.mxu0 0.0
    %v3773 = vand.u32 %v91, 4294901760
    %v3774 = vsub.f32 %v91, %v3773
    %v3775 = vand.u32 %v3774, 4294901760
    %v3776 = vsub.f32 %v3774, %v3775
    %v3777 = vand.u32 %v3776, 4294901760
    %3778 = vmatpush1.msra.mxu0 %v3777
    %3779 = vmatprep.subr.mxu0 0.0
    %v3780 = vand.u32 %v90, 4294901760
    %v3781 = vsub.f32 %v90, %v3780
    %v3782 = vand.u32 %v3781, 4294901760
    %v3783 = vsub.f32 %v3781, %v3782
    %v3784 = vand.u32 %v3783, 4294901760
    %3785 = vmatpush1.msra.mxu0 %v3784
    %3786 = vmatprep.subr.mxu0 0.0
    %v3787 = vand.u32 %v89, 4294901760
    %v3788 = vsub.f32 %v89, %v3787
    %v3789 = vand.u32 %v3788, 4294901760
    %v3790 = vsub.f32 %v3788, %v3789
    %v3791 = vand.u32 %v3790, 4294901760
    %3792 = vmatpush1.msra.mxu0 %v3791
    %3793 = vmatprep.subr.mxu0 0.0
    %v3794 = vand.u32 %v88, 4294901760
    %v3795 = vsub.f32 %v88, %v3794
    %v3796 = vand.u32 %v3795, 4294901760
    %v3797 = vsub.f32 %v3795, %v3796
    %v3798 = vand.u32 %v3797, 4294901760
    %3799 = vmatpush1.msra.mxu0 %v3798
    %3800 = vmatprep.subr.mxu0 0.0
    %v3801 = vand.u32 %v87, 4294901760
    %v3802 = vsub.f32 %v87, %v3801
    %v3803 = vand.u32 %v3802, 4294901760
    %v3804 = vsub.f32 %v3802, %v3803
    %v3805 = vand.u32 %v3804, 4294901760
    %3806 = vmatpush1.msra.mxu0 %v3805
    %3807 = vmatprep.subr.mxu0 0.0
    %v3808 = vand.u32 %v86, 4294901760
    %v3809 = vsub.f32 %v86, %v3808
    %v3810 = vand.u32 %v3809, 4294901760
    %v3811 = vsub.f32 %v3809, %v3810
    %v3812 = vand.u32 %v3811, 4294901760
    %3813 = vmatpush1.msra.mxu0 %v3812
    %3814 = vmatprep.subr.mxu0 0.0
    %v3815 = vand.u32 %v85, 4294901760
    %v3816 = vsub.f32 %v85, %v3815
    %v3817 = vand.u32 %v3816, 4294901760
    %v3818 = vsub.f32 %v3816, %v3817
    %v3819 = vand.u32 %v3818, 4294901760
    %3820 = vmatpush1.msra.mxu0 %v3819
    %3821 = vmatprep.subr.mxu0 0.0
    %v3822 = vand.u32 %v84, 4294901760
    %v3823 = vsub.f32 %v84, %v3822
    %v3824 = vand.u32 %v3823, 4294901760
    %v3825 = vsub.f32 %v3823, %v3824
    %v3826 = vand.u32 %v3825, 4294901760
    %3827 = vmatpush1.msra.mxu0 %v3826
    %3828 = vmatprep.subr.mxu0 0.0
    %v3829 = vand.u32 %v83, 4294901760
    %v3830 = vsub.f32 %v83, %v3829
    %v3831 = vand.u32 %v3830, 4294901760
    %v3832 = vsub.f32 %v3830, %v3831
    %v3833 = vand.u32 %v3832, 4294901760
    %3834 = vmatpush1.msra.mxu0 %v3833
    %3835 = vmatprep.subr.mxu0 0.0
    %v3836 = vand.u32 %v82, 4294901760
    %v3837 = vsub.f32 %v82, %v3836
    %v3838 = vand.u32 %v3837, 4294901760
    %v3839 = vsub.f32 %v3837, %v3838
    %v3840 = vand.u32 %v3839, 4294901760
    %3841 = vmatpush1.msra.mxu0 %v3840
    %3842 = vmatprep.subr.mxu0 0.0
    %v3843 = vand.u32 %v81, 4294901760
    %v3844 = vsub.f32 %v81, %v3843
    %v3845 = vand.u32 %v3844, 4294901760
    %v3846 = vsub.f32 %v3844, %v3845
    %v3847 = vand.u32 %v3846, 4294901760
    %3848 = vmatpush1.msra.mxu0 %v3847
    %3849 = vmatprep.subr.mxu0 0.0
    %v3850 = vand.u32 %v80, 4294901760
    %v3851 = vsub.f32 %v80, %v3850
    %v3852 = vand.u32 %v3851, 4294901760
    %v3853 = vsub.f32 %v3851, %v3852
    %v3854 = vand.u32 %v3853, 4294901760
    %3855 = vmatpush1.msra.mxu0 %v3854
    %3856 = vmatprep.subr.mxu0 0.0
    %v3857 = vand.u32 %v79, 4294901760
    %v3858 = vsub.f32 %v79, %v3857
    %v3859 = vand.u32 %v3858, 4294901760
    %v3860 = vsub.f32 %v3858, %v3859
    %v3861 = vand.u32 %v3860, 4294901760
    %3862 = vmatpush1.msra.mxu0 %v3861
    %3863 = vmatprep.subr.mxu0 0.0
    %v3864 = vand.u32 %v78, 4294901760
    %v3865 = vsub.f32 %v78, %v3864
    %v3866 = vand.u32 %v3865, 4294901760
    %v3867 = vsub.f32 %v3865, %v3866
    %v3868 = vand.u32 %v3867, 4294901760
    %3869 = vmatpush1.msra.mxu0 %v3868
    %3870 = vmatprep.subr.mxu0 0.0
    %v3871 = vand.u32 %v77, 4294901760
    %v3872 = vsub.f32 %v77, %v3871
    %v3873 = vand.u32 %v3872, 4294901760
    %v3874 = vsub.f32 %v3872, %v3873
    %v3875 = vand.u32 %v3874, 4294901760
    %3876 = vmatpush1.msra.mxu0 %v3875
    %3877 = vmatprep.subr.mxu0 0.0
    %3878 = vmatpush2.msra.mxu0 0.0
    %3879 = vmatprep.subr.mxu0 0.0
    %3880 = vmatpush2.msra.mxu0 0.0
    %3881 = vmatprep.subr.mxu0 0.0
    %3882 = vmatpush2.msra.mxu0 0.0
    %3883 = vmatprep.subr.mxu0 0.0
    %3884 = vmatpush2.msra.mxu0 0.0
    %3885 = vmatprep.subr.mxu0 0.0
    %3886 = vmatpush2.msra.mxu0 0.0
    %3887 = vmatprep.subr.mxu0 0.0
    %3888 = vmatpush2.msra.mxu0 0.0
    %3889 = vmatprep.subr.mxu0 0.0
    %3890 = vmatpush2.msra.mxu0 0.0
    %3891 = vmatprep.subr.mxu0 0.0
    %3892 = vmatpush2.msra.mxu0 0.0
    %3893 = vmatprep.subr.mxu0 0.0
    %3894 = vmatpush2.msra.mxu0 0.0
    %3895 = vmatprep.subr.mxu0 0.0
    %3896 = vmatpush2.msra.mxu0 0.0
    %3897 = vmatprep.subr.mxu0 0.0
    %3898 = vmatpush2.msra.mxu0 0.0
    %3899 = vmatprep.subr.mxu0 0.0
    %3900 = vmatpush2.msra.mxu0 0.0
    %3901 = vmatprep.subr.mxu0 0.0
    %3902 = vmatpush2.msra.mxu0 0.0
    %3903 = vmatprep.subr.mxu0 0.0
    %3904 = vmatpush2.msra.mxu0 0.0
    %3905 = vmatprep.subr.mxu0 0.0
    %3906 = vmatpush2.msra.mxu0 0.0
    %3907 = vmatprep.subr.mxu0 0.0
    %3908 = vmatpush2.msra.mxu0 0.0
    %3909 = vmatprep.mubr.f32.mxu0 0.0
    %v3910 = vand.u32 %v3662, 4294901760
    %3911 = vmatmul.mubr.f32.gmra.mxu0 %v3910
    %v3912 = vpop.f32.mrf.mxu0
    %v3913 = vadd.f32 %v3752, %v3912
    %v3914 = vpop.f32.mrf.mxu0
    %3915 = vmatprep.mubr.f32.mxu0 0.0
    %v3916 = vand.u32 %v3663, 4294901760
    %3917 = vmatmul.mubr.f32.gmra.mxu0 %v3916
    %v3918 = vpop.f32.mrf.mxu0
    %v3919 = vadd.f32 %v3762, %v3918
    %v3920 = vpop.f32.mrf.mxu0
    %3921 = vdwg.mxu0
    %3922 = vmatprep.subr.mxu0 0.0
    %v3923 = vand.u32 %v92, 4294901760
    %v3924 = vsub.f32 %v92, %v3923
    %3925 = vmatpush1.msra.mxu0 %v3924
    %3926 = vmatprep.subr.mxu0 0.0
    %v3927 = vand.u32 %v91, 4294901760
    %v3928 = vsub.f32 %v91, %v3927
    %3929 = vmatpush1.msra.mxu0 %v3928
    %3930 = vmatprep.subr.mxu0 0.0
    %v3931 = vand.u32 %v90, 4294901760
    %v3932 = vsub.f32 %v90, %v3931
    %3933 = vmatpush1.msra.mxu0 %v3932
    %3934 = vmatprep.subr.mxu0 0.0
    %v3935 = vand.u32 %v89, 4294901760
    %v3936 = vsub.f32 %v89, %v3935
    %3937 = vmatpush1.msra.mxu0 %v3936
    %3938 = vmatprep.subr.mxu0 0.0
    %v3939 = vand.u32 %v88, 4294901760
    %v3940 = vsub.f32 %v88, %v3939
    %3941 = vmatpush1.msra.mxu0 %v3940
    %3942 = vmatprep.subr.mxu0 0.0
    %v3943 = vand.u32 %v87, 4294901760
    %v3944 = vsub.f32 %v87, %v3943
    %3945 = vmatpush1.msra.mxu0 %v3944
    %3946 = vmatprep.subr.mxu0 0.0
    %v3947 = vand.u32 %v86, 4294901760
    %v3948 = vsub.f32 %v86, %v3947
    %3949 = vmatpush1.msra.mxu0 %v3948
    %3950 = vmatprep.subr.mxu0 0.0
    %v3951 = vand.u32 %v85, 4294901760
    %v3952 = vsub.f32 %v85, %v3951
    %3953 = vmatpush1.msra.mxu0 %v3952
    %3954 = vmatprep.subr.mxu0 0.0
    %v3955 = vand.u32 %v84, 4294901760
    %v3956 = vsub.f32 %v84, %v3955
    %3957 = vmatpush1.msra.mxu0 %v3956
    %3958 = vmatprep.subr.mxu0 0.0
    %v3959 = vand.u32 %v83, 4294901760
    %v3960 = vsub.f32 %v83, %v3959
    %3961 = vmatpush1.msra.mxu0 %v3960
    %3962 = vmatprep.subr.mxu0 0.0
    %v3963 = vand.u32 %v82, 4294901760
    %v3964 = vsub.f32 %v82, %v3963
    %3965 = vmatpush1.msra.mxu0 %v3964
    %3966 = vmatprep.subr.mxu0 0.0
    %v3967 = vand.u32 %v81, 4294901760
    %v3968 = vsub.f32 %v81, %v3967
    %3969 = vmatpush1.msra.mxu0 %v3968
    %3970 = vmatprep.subr.mxu0 0.0
    %v3971 = vand.u32 %v80, 4294901760
    %v3972 = vsub.f32 %v80, %v3971
    %3973 = vmatpush1.msra.mxu0 %v3972
    %3974 = vmatprep.subr.mxu0 0.0
    %v3975 = vand.u32 %v79, 4294901760
    %v3976 = vsub.f32 %v79, %v3975
    %3977 = vmatpush1.msra.mxu0 %v3976
    %3978 = vmatprep.subr.mxu0 0.0
    %v3979 = vand.u32 %v78, 4294901760
    %v3980 = vsub.f32 %v78, %v3979
    %3981 = vmatpush1.msra.mxu0 %v3980
    %3982 = vmatprep.subr.mxu0 0.0
    %v3983 = vand.u32 %v77, 4294901760
    %v3984 = vsub.f32 %v77, %v3983
    %3985 = vmatpush1.msra.mxu0 %v3984
    %3986 = vmatprep.subr.mxu0 0.0
    %3987 = vmatpush2.msra.mxu0 0.0
    %3988 = vmatprep.subr.mxu0 0.0
    %3989 = vmatpush2.msra.mxu0 0.0
    %3990 = vmatprep.subr.mxu0 0.0
    %3991 = vmatpush2.msra.mxu0 0.0
    %3992 = vmatprep.subr.mxu0 0.0
    %3993 = vmatpush2.msra.mxu0 0.0
    %3994 = vmatprep.subr.mxu0 0.0
    %3995 = vmatpush2.msra.mxu0 0.0
    %3996 = vmatprep.subr.mxu0 0.0
    %3997 = vmatpush2.msra.mxu0 0.0
    %3998 = vmatprep.subr.mxu0 0.0
    %3999 = vmatpush2.msra.mxu0 0.0
    %4000 = vmatprep.subr.mxu0 0.0
    %4001 = vmatpush2.msra.mxu0 0.0
    %4002 = vmatprep.subr.mxu0 0.0
    %4003 = vmatpush2.msra.mxu0 0.0
    %4004 = vmatprep.subr.mxu0 0.0
    %4005 = vmatpush2.msra.mxu0 0.0
    %4006 = vmatprep.subr.mxu0 0.0
    %4007 = vmatpush2.msra.mxu0 0.0
    %4008 = vmatprep.subr.mxu0 0.0
    %4009 = vmatpush2.msra.mxu0 0.0
    %4010 = vmatprep.subr.mxu0 0.0
    %4011 = vmatpush2.msra.mxu0 0.0
    %4012 = vmatprep.subr.mxu0 0.0
    %4013 = vmatpush2.msra.mxu0 0.0
    %4014 = vmatprep.subr.mxu0 0.0
    %4015 = vmatpush2.msra.mxu0 0.0
    %4016 = vmatprep.subr.mxu0 0.0
    %4017 = vmatpush2.msra.mxu0 0.0
    %4018 = vmatprep.mubr.f32.mxu0 0.0
    %v4019 = vand.u32 %v3662, 4294901760
    %v4020 = vsub.f32 %v3662, %v4019
    %4021 = vmatmul.mubr.f32.gmra.mxu0 %v4020
    %v4022 = vpop.f32.mrf.mxu0
    %v4023 = vadd.f32 %v3913, %v4022
    %v4024 = vpop.f32.mrf.mxu0
    %4025 = vmatprep.mubr.f32.mxu0 0.0
    %v4026 = vand.u32 %v3663, 4294901760
    %v4027 = vsub.f32 %v3663, %v4026
    %4028 = vmatmul.mubr.f32.gmra.mxu0 %v4027
    %v4029 = vpop.f32.mrf.mxu0
    %v4030 = vadd.f32 %v3919, %v4029
    %v4031 = vpop.f32.mrf.mxu0
    %4032 = vdwg.mxu0
    %4033 = vmatprep.subr.mxu0 0.0
    %v4034 = vand.u32 %v92, 4294901760
    %4035 = vmatpush1.msra.mxu0 %v4034
    %4036 = vmatprep.subr.mxu0 0.0
    %v4037 = vand.u32 %v91, 4294901760
    %4038 = vmatpush1.msra.mxu0 %v4037
    %4039 = vmatprep.subr.mxu0 0.0
    %v4040 = vand.u32 %v90, 4294901760
    %4041 = vmatpush1.msra.mxu0 %v4040
    %4042 = vmatprep.subr.mxu0 0.0
    %v4043 = vand.u32 %v89, 4294901760
    %4044 = vmatpush1.msra.mxu0 %v4043
    %4045 = vmatprep.subr.mxu0 0.0
    %v4046 = vand.u32 %v88, 4294901760
    %4047 = vmatpush1.msra.mxu0 %v4046
    %4048 = vmatprep.subr.mxu0 0.0
    %v4049 = vand.u32 %v87, 4294901760
    %4050 = vmatpush1.msra.mxu0 %v4049
    %4051 = vmatprep.subr.mxu0 0.0
    %v4052 = vand.u32 %v86, 4294901760
    %4053 = vmatpush1.msra.mxu0 %v4052
    %4054 = vmatprep.subr.mxu0 0.0
    %v4055 = vand.u32 %v85, 4294901760
    %4056 = vmatpush1.msra.mxu0 %v4055
    %4057 = vmatprep.subr.mxu0 0.0
    %v4058 = vand.u32 %v84, 4294901760
    %4059 = vmatpush1.msra.mxu0 %v4058
    %4060 = vmatprep.subr.mxu0 0.0
    %v4061 = vand.u32 %v83, 4294901760
    %4062 = vmatpush1.msra.mxu0 %v4061
    %4063 = vmatprep.subr.mxu0 0.0
    %v4064 = vand.u32 %v82, 4294901760
    %4065 = vmatpush1.msra.mxu0 %v4064
    %4066 = vmatprep.subr.mxu0 0.0
    %v4067 = vand.u32 %v81, 4294901760
    %4068 = vmatpush1.msra.mxu0 %v4067
    %4069 = vmatprep.subr.mxu0 0.0
    %v4070 = vand.u32 %v80, 4294901760
    %4071 = vmatpush1.msra.mxu0 %v4070
    %4072 = vmatprep.subr.mxu0 0.0
    %v4073 = vand.u32 %v79, 4294901760
    %4074 = vmatpush1.msra.mxu0 %v4073
    %4075 = vmatprep.subr.mxu0 0.0
    %v4076 = vand.u32 %v78, 4294901760
    %4077 = vmatpush1.msra.mxu0 %v4076
    %4078 = vmatprep.subr.mxu0 0.0
    %v4079 = vand.u32 %v77, 4294901760
    %4080 = vmatpush1.msra.mxu0 %v4079
    %4081 = vmatprep.subr.mxu0 0.0
    %4082 = vmatpush2.msra.mxu0 0.0
    %4083 = vmatprep.subr.mxu0 0.0
    %4084 = vmatpush2.msra.mxu0 0.0
    %4085 = vmatprep.subr.mxu0 0.0
    %4086 = vmatpush2.msra.mxu0 0.0
    %4087 = vmatprep.subr.mxu0 0.0
    %4088 = vmatpush2.msra.mxu0 0.0
    %4089 = vmatprep.subr.mxu0 0.0
    %4090 = vmatpush2.msra.mxu0 0.0
    %4091 = vmatprep.subr.mxu0 0.0
    %4092 = vmatpush2.msra.mxu0 0.0
    %4093 = vmatprep.subr.mxu0 0.0
    %4094 = vmatpush2.msra.mxu0 0.0
    %4095 = vmatprep.subr.mxu0 0.0
    %4096 = vmatpush2.msra.mxu0 0.0
    %4097 = vmatprep.subr.mxu0 0.0
    %4098 = vmatpush2.msra.mxu0 0.0
    %4099 = vmatprep.subr.mxu0 0.0
    %4100 = vmatpush2.msra.mxu0 0.0
    %4101 = vmatprep.subr.mxu0 0.0
    %4102 = vmatpush2.msra.mxu0 0.0
    %4103 = vmatprep.subr.mxu0 0.0
    %4104 = vmatpush2.msra.mxu0 0.0
    %4105 = vmatprep.subr.mxu0 0.0
    %4106 = vmatpush2.msra.mxu0 0.0
    %4107 = vmatprep.subr.mxu0 0.0
    %4108 = vmatpush2.msra.mxu0 0.0
    %4109 = vmatprep.subr.mxu0 0.0
    %4110 = vmatpush2.msra.mxu0 0.0
    %4111 = vmatprep.subr.mxu0 0.0
    %4112 = vmatpush2.msra.mxu0 0.0
    %4113 = vmatprep.mubr.f32.mxu0 0.0
    %v4114 = vand.u32 %v3662, 4294901760
    %v4115 = vsub.f32 %v3662, %v4114
    %v4116 = vand.u32 %v4115, 4294901760
    %4117 = vmatmul.mubr.f32.gmra.mxu0 %v4116
    %v4118 = vpop.f32.mrf.mxu0
    %v4119 = vadd.f32 %v4023, %v4118
    %v4120 = vpop.f32.mrf.mxu0
    %4121 = vmatprep.mubr.f32.mxu0 0.0
    %v4122 = vand.u32 %v3663, 4294901760
    %v4123 = vsub.f32 %v3663, %v4122
    %v4124 = vand.u32 %v4123, 4294901760
    %4125 = vmatmul.mubr.f32.gmra.mxu0 %v4124
    %v4126 = vpop.f32.mrf.mxu0
    %v4127 = vadd.f32 %v4030, %v4126
    %v4128 = vpop.f32.mrf.mxu0
    %4129 = vdwg.mxu0
    %4130 = vmatprep.subr.mxu0 0.0
    %v4131 = vand.u32 %v92, 4294901760
    %v4132 = vsub.f32 %v92, %v4131
    %v4133 = vand.u32 %v4132, 4294901760
    %4134 = vmatpush1.msra.mxu0 %v4133
    %4135 = vmatprep.subr.mxu0 0.0
    %v4136 = vand.u32 %v91, 4294901760
    %v4137 = vsub.f32 %v91, %v4136
    %v4138 = vand.u32 %v4137, 4294901760
    %4139 = vmatpush1.msra.mxu0 %v4138
    %4140 = vmatprep.subr.mxu0 0.0
    %v4141 = vand.u32 %v90, 4294901760
    %v4142 = vsub.f32 %v90, %v4141
    %v4143 = vand.u32 %v4142, 4294901760
    %4144 = vmatpush1.msra.mxu0 %v4143
    %4145 = vmatprep.subr.mxu0 0.0
    %v4146 = vand.u32 %v89, 4294901760
    %v4147 = vsub.f32 %v89, %v4146
    %v4148 = vand.u32 %v4147, 4294901760
    %4149 = vmatpush1.msra.mxu0 %v4148
    %4150 = vmatprep.subr.mxu0 0.0
    %v4151 = vand.u32 %v88, 4294901760
    %v4152 = vsub.f32 %v88, %v4151
    %v4153 = vand.u32 %v4152, 4294901760
    %4154 = vmatpush1.msra.mxu0 %v4153
    %4155 = vmatprep.subr.mxu0 0.0
    %v4156 = vand.u32 %v87, 4294901760
    %v4157 = vsub.f32 %v87, %v4156
    %v4158 = vand.u32 %v4157, 4294901760
    %4159 = vmatpush1.msra.mxu0 %v4158
    %4160 = vmatprep.subr.mxu0 0.0
    %v4161 = vand.u32 %v86, 4294901760
    %v4162 = vsub.f32 %v86, %v4161
    %v4163 = vand.u32 %v4162, 4294901760
    %4164 = vmatpush1.msra.mxu0 %v4163
    %4165 = vmatprep.subr.mxu0 0.0
    %v4166 = vand.u32 %v85, 4294901760
    %v4167 = vsub.f32 %v85, %v4166
    %v4168 = vand.u32 %v4167, 4294901760
    %4169 = vmatpush1.msra.mxu0 %v4168
    %4170 = vmatprep.subr.mxu0 0.0
    %v4171 = vand.u32 %v84, 4294901760
    %v4172 = vsub.f32 %v84, %v4171
    %v4173 = vand.u32 %v4172, 4294901760
    %4174 = vmatpush1.msra.mxu0 %v4173
    %4175 = vmatprep.subr.mxu0 0.0
    %v4176 = vand.u32 %v83, 4294901760
    %v4177 = vsub.f32 %v83, %v4176
    %v4178 = vand.u32 %v4177, 4294901760
    %4179 = vmatpush1.msra.mxu0 %v4178
    %4180 = vmatprep.subr.mxu0 0.0
    %v4181 = vand.u32 %v82, 4294901760
    %v4182 = vsub.f32 %v82, %v4181
    %v4183 = vand.u32 %v4182, 4294901760
    %4184 = vmatpush1.msra.mxu0 %v4183
    %4185 = vmatprep.subr.mxu0 0.0
    %v4186 = vand.u32 %v81, 4294901760
    %v4187 = vsub.f32 %v81, %v4186
    %v4188 = vand.u32 %v4187, 4294901760
    %4189 = vmatpush1.msra.mxu0 %v4188
    %4190 = vmatprep.subr.mxu0 0.0
    %v4191 = vand.u32 %v80, 4294901760
    %v4192 = vsub.f32 %v80, %v4191
    %v4193 = vand.u32 %v4192, 4294901760
    %4194 = vmatpush1.msra.mxu0 %v4193
    %4195 = vmatprep.subr.mxu0 0.0
    %v4196 = vand.u32 %v79, 4294901760
    %v4197 = vsub.f32 %v79, %v4196
    %v4198 = vand.u32 %v4197, 4294901760
    %4199 = vmatpush1.msra.mxu0 %v4198
    %4200 = vmatprep.subr.mxu0 0.0
    %v4201 = vand.u32 %v78, 4294901760
    %v4202 = vsub.f32 %v78, %v4201
    %v4203 = vand.u32 %v4202, 4294901760
    %4204 = vmatpush1.msra.mxu0 %v4203
    %4205 = vmatprep.subr.mxu0 0.0
    %v4206 = vand.u32 %v77, 4294901760
    %v4207 = vsub.f32 %v77, %v4206
    %v4208 = vand.u32 %v4207, 4294901760
    %4209 = vmatpush1.msra.mxu0 %v4208
    %4210 = vmatprep.subr.mxu0 0.0
    %4211 = vmatpush2.msra.mxu0 0.0
    %4212 = vmatprep.subr.mxu0 0.0
    %4213 = vmatpush2.msra.mxu0 0.0
    %4214 = vmatprep.subr.mxu0 0.0
    %4215 = vmatpush2.msra.mxu0 0.0
    %4216 = vmatprep.subr.mxu0 0.0
    %4217 = vmatpush2.msra.mxu0 0.0
    %4218 = vmatprep.subr.mxu0 0.0
    %4219 = vmatpush2.msra.mxu0 0.0
    %4220 = vmatprep.subr.mxu0 0.0
    %4221 = vmatpush2.msra.mxu0 0.0
    %4222 = vmatprep.subr.mxu0 0.0
    %4223 = vmatpush2.msra.mxu0 0.0
    %4224 = vmatprep.subr.mxu0 0.0
    %4225 = vmatpush2.msra.mxu0 0.0
    %4226 = vmatprep.subr.mxu0 0.0
    %4227 = vmatpush2.msra.mxu0 0.0
    %4228 = vmatprep.subr.mxu0 0.0
    %4229 = vmatpush2.msra.mxu0 0.0
    %4230 = vmatprep.subr.mxu0 0.0
    %4231 = vmatpush2.msra.mxu0 0.0
    %4232 = vmatprep.subr.mxu0 0.0
    %4233 = vmatpush2.msra.mxu0 0.0
    %4234 = vmatprep.subr.mxu0 0.0
    %4235 = vmatpush2.msra.mxu0 0.0
    %4236 = vmatprep.subr.mxu0 0.0
    %4237 = vmatpush2.msra.mxu0 0.0
    %4238 = vmatprep.subr.mxu0 0.0
    %4239 = vmatpush2.msra.mxu0 0.0
    %4240 = vmatprep.subr.mxu0 0.0
    %4241 = vmatpush2.msra.mxu0 0.0
    %4242 = vmatprep.mubr.f32.mxu0 0.0
    %v4243 = vand.u32 %v3662, 4294901760
    %4244 = vmatmul.mubr.f32.gmra.mxu0 %v4243
    %v4245 = vpop.f32.mrf.mxu0
    %v4246 = vadd.f32 %v4119, %v4245
    %v4247 = vpop.f32.mrf.mxu0
    %4248 = vmatprep.mubr.f32.mxu0 0.0
    %v4249 = vand.u32 %v3663, 4294901760
    %4250 = vmatmul.mubr.f32.gmra.mxu0 %v4249
    %v4251 = vpop.f32.mrf.mxu0
    %v4252 = vadd.f32 %v4127, %v4251
    %v4253 = vpop.f32.mrf.mxu0
    %4254 = vdwg.mxu0
    %4255 = vmatprep.subr.mxu0 0.0
    %v4256 = vand.u32 %v92, 4294901760
    %4257 = vmatpush1.msra.mxu0 %v4256
    %4258 = vmatprep.subr.mxu0 0.0
    %v4259 = vand.u32 %v91, 4294901760
    %4260 = vmatpush1.msra.mxu0 %v4259
    %4261 = vmatprep.subr.mxu0 0.0
    %v4262 = vand.u32 %v90, 4294901760
    %4263 = vmatpush1.msra.mxu0 %v4262
    %4264 = vmatprep.subr.mxu0 0.0
    %v4265 = vand.u32 %v89, 4294901760
    %4266 = vmatpush1.msra.mxu0 %v4265
    %4267 = vmatprep.subr.mxu0 0.0
    %v4268 = vand.u32 %v88, 4294901760
    %4269 = vmatpush1.msra.mxu0 %v4268
    %4270 = vmatprep.subr.mxu0 0.0
    %v4271 = vand.u32 %v87, 4294901760
    %4272 = vmatpush1.msra.mxu0 %v4271
    %4273 = vmatprep.subr.mxu0 0.0
    %v4274 = vand.u32 %v86, 4294901760
    %4275 = vmatpush1.msra.mxu0 %v4274
    %4276 = vmatprep.subr.mxu0 0.0
    %v4277 = vand.u32 %v85, 4294901760
    %4278 = vmatpush1.msra.mxu0 %v4277
    %4279 = vmatprep.subr.mxu0 0.0
    %v4280 = vand.u32 %v84, 4294901760
    %4281 = vmatpush1.msra.mxu0 %v4280
    %4282 = vmatprep.subr.mxu0 0.0
    %v4283 = vand.u32 %v83, 4294901760
    %4284 = vmatpush1.msra.mxu0 %v4283
    %4285 = vmatprep.subr.mxu0 0.0
    %v4286 = vand.u32 %v82, 4294901760
    %4287 = vmatpush1.msra.mxu0 %v4286
    %4288 = vmatprep.subr.mxu0 0.0
    %v4289 = vand.u32 %v81, 4294901760
    %4290 = vmatpush1.msra.mxu0 %v4289
    %4291 = vmatprep.subr.mxu0 0.0
    %v4292 = vand.u32 %v80, 4294901760
    %4293 = vmatpush1.msra.mxu0 %v4292
    %4294 = vmatprep.subr.mxu0 0.0
    %v4295 = vand.u32 %v79, 4294901760
    %4296 = vmatpush1.msra.mxu0 %v4295
    %4297 = vmatprep.subr.mxu0 0.0
    %v4298 = vand.u32 %v78, 4294901760
    %4299 = vmatpush1.msra.mxu0 %v4298
    %4300 = vmatprep.subr.mxu0 0.0
    %v4301 = vand.u32 %v77, 4294901760
    %4302 = vmatpush1.msra.mxu0 %v4301
    %4303 = vmatprep.subr.mxu0 0.0
    %4304 = vmatpush2.msra.mxu0 0.0
    %4305 = vmatprep.subr.mxu0 0.0
    %4306 = vmatpush2.msra.mxu0 0.0
    %4307 = vmatprep.subr.mxu0 0.0
    %4308 = vmatpush2.msra.mxu0 0.0
    %4309 = vmatprep.subr.mxu0 0.0
    %4310 = vmatpush2.msra.mxu0 0.0
    %4311 = vmatprep.subr.mxu0 0.0
    %4312 = vmatpush2.msra.mxu0 0.0
    %4313 = vmatprep.subr.mxu0 0.0
    %4314 = vmatpush2.msra.mxu0 0.0
    %4315 = vmatprep.subr.mxu0 0.0
    %4316 = vmatpush2.msra.mxu0 0.0
    %4317 = vmatprep.subr.mxu0 0.0
    %4318 = vmatpush2.msra.mxu0 0.0
    %4319 = vmatprep.subr.mxu0 0.0
    %4320 = vmatpush2.msra.mxu0 0.0
    %4321 = vmatprep.subr.mxu0 0.0
    %4322 = vmatpush2.msra.mxu0 0.0
    %4323 = vmatprep.subr.mxu0 0.0
    %4324 = vmatpush2.msra.mxu0 0.0
    %4325 = vmatprep.subr.mxu0 0.0
    %4326 = vmatpush2.msra.mxu0 0.0
    %4327 = vmatprep.subr.mxu0 0.0
    %4328 = vmatpush2.msra.mxu0 0.0
    %4329 = vmatprep.subr.mxu0 0.0
    %4330 = vmatpush2.msra.mxu0 0.0
    %4331 = vmatprep.subr.mxu0 0.0
    %4332 = vmatpush2.msra.mxu0 0.0
    %4333 = vmatprep.subr.mxu0 0.0
    %4334 = vmatpush2.msra.mxu0 0.0
    %4335 = vmatprep.mubr.f32.mxu0 0.0
    %v4336 = vand.u32 %v3662, 4294901760
    %4337 = vmatmul.mubr.f32.gmra.mxu0 %v4336
    %v4338 = vpop.f32.mrf.mxu0
    %v4339 = vadd.f32 %v4246, %v4338
    %v4340 = vpop.f32.mrf.mxu0
    %4341 = vmatprep.mubr.f32.mxu0 0.0
    %v4342 = vand.u32 %v3663, 4294901760
    %4343 = vmatmul.mubr.f32.gmra.mxu0 %v4342
    %v4344 = vpop.f32.mrf.mxu0
    %v4345 = vadd.f32 %v4252, %v4344
    %v4346 = vpop.f32.mrf.mxu0
    %4347 = vdwg.mxu0
    %4348 = vmatprep.subr.mxu0 0.0
    %4349 = vmatpush1.msra.mxu0 0.0
    %4350 = vmatprep.subr.mxu0 0.0
    %4351 = vmatpush1.msra.mxu0 0.0
    %4352 = vmatprep.subr.mxu0 0.0
    %4353 = vmatpush1.msra.mxu0 0.0
    %4354 = vmatprep.subr.mxu0 0.0
    %4355 = vmatpush1.msra.mxu0 0.0
    %4356 = vmatprep.subr.mxu0 0.0
    %4357 = vmatpush1.msra.mxu0 0.0
    %4358 = vmatprep.subr.mxu0 0.0
    %4359 = vmatpush1.msra.mxu0 0.0
    %4360 = vmatprep.subr.mxu0 0.0
    %4361 = vmatpush1.msra.mxu0 0.0
    %4362 = vmatprep.subr.mxu0 0.0
    %4363 = vmatpush1.msra.mxu0 0.0
    %4364 = vmatprep.subr.mxu0 0.0
    %4365 = vmatpush1.msra.mxu0 0.0
    %4366 = vmatprep.subr.mxu0 0.0
    %4367 = vmatpush1.msra.mxu0 0.0
    %4368 = vmatprep.subr.mxu0 0.0
    %4369 = vmatpush1.msra.mxu0 0.0
    %4370 = vmatprep.subr.mxu0 0.0
    %4371 = vmatpush1.msra.mxu0 0.0
    %4372 = vmatprep.subr.mxu0 0.0
    %4373 = vmatpush1.msra.mxu0 0.0
    %4374 = vmatprep.subr.mxu0 0.0
    %4375 = vmatpush1.msra.mxu0 0.0
    %4376 = vmatprep.subr.mxu0 0.0
    %v4377 = vand.u32 %v4345, 4294901760
    %4378 = vmatpush1.msra.mxu0 %v4377
    %4379 = vmatprep.subr.mxu0 0.0
    %v4380 = vand.u32 %v4339, 4294901760
    %4381 = vmatpush1.msra.mxu0 %v4380
    %4382 = vmatprep.subr.mxu0 0.0
    %4383 = vmatpush2.msra.mxu0 0.0
    %4384 = vmatprep.subr.mxu0 0.0
    %4385 = vmatpush2.msra.mxu0 0.0
    %4386 = vmatprep.subr.mxu0 0.0
    %4387 = vmatpush2.msra.mxu0 0.0
    %4388 = vmatprep.subr.mxu0 0.0
    %4389 = vmatpush2.msra.mxu0 0.0
    %4390 = vmatprep.subr.mxu0 0.0
    %4391 = vmatpush2.msra.mxu0 0.0
    %4392 = vmatprep.subr.mxu0 0.0
    %4393 = vmatpush2.msra.mxu0 0.0
    %4394 = vmatprep.subr.mxu0 0.0
    %4395 = vmatpush2.msra.mxu0 0.0
    %4396 = vmatprep.subr.mxu0 0.0
    %4397 = vmatpush2.msra.mxu0 0.0
    %4398 = vmatprep.subr.mxu0 0.0
    %4399 = vmatpush2.msra.mxu0 0.0
    %4400 = vmatprep.subr.mxu0 0.0
    %4401 = vmatpush2.msra.mxu0 0.0
    %4402 = vmatprep.subr.mxu0 0.0
    %4403 = vmatpush2.msra.mxu0 0.0
    %4404 = vmatprep.subr.mxu0 0.0
    %4405 = vmatpush2.msra.mxu0 0.0
    %4406 = vmatprep.subr.mxu0 0.0
    %4407 = vmatpush2.msra.mxu0 0.0
    %4408 = vmatprep.subr.mxu0 0.0
    %4409 = vmatpush2.msra.mxu0 0.0
    %4410 = vmatprep.subr.mxu0 0.0
    %4411 = vmatpush2.msra.mxu0 0.0
    %4412 = vmatprep.subr.mxu0 0.0
    %4413 = vmatpush2.msra.mxu0 0.0
    %4414 = vmatprep.mubr.f32.mxu0 0.0
    %v4415 = vand.u32 %v781, 4294901760
    %v4416 = vsub.f32 %v781, %v4415
    %v4417 = vand.u32 %v4416, 4294901760
    %v4418 = vsub.f32 %v4416, %v4417
    %v4419 = vand.u32 %v4418, 4294901760
    %4420 = vmatmul.mubr.f32.gmra.mxu0 %v4419
    %v4421 = vpop.f32.mrf.mxu0
    %v4422 = vadd.f32 0.0, %v4421
    %v4423 = vpop.f32.mrf.mxu0
    %4424 = vmatprep.mubr.f32.mxu0 0.0
    %v4425 = vand.u32 %v784, 4294901760
    %v4426 = vsub.f32 %v784, %v4425
    %v4427 = vand.u32 %v4426, 4294901760
    %v4428 = vsub.f32 %v4426, %v4427
    %v4429 = vand.u32 %v4428, 4294901760
    %4430 = vmatmul.mubr.f32.gmra.mxu0 %v4429
    %v4431 = vpop.f32.mrf.mxu0
    %v4432 = vadd.f32 0.0, %v4431
    %v4433 = vpop.f32.mrf.mxu0
    %4434 = vdwg.mxu0
    %4435 = vmatprep.subr.mxu0 0.0
    %4436 = vmatpush1.msra.mxu0 0.0
    %4437 = vmatprep.subr.mxu0 0.0
    %4438 = vmatpush1.msra.mxu0 0.0
    %4439 = vmatprep.subr.mxu0 0.0
    %4440 = vmatpush1.msra.mxu0 0.0
    %4441 = vmatprep.subr.mxu0 0.0
    %4442 = vmatpush1.msra.mxu0 0.0
    %4443 = vmatprep.subr.mxu0 0.0
    %4444 = vmatpush1.msra.mxu0 0.0
    %4445 = vmatprep.subr.mxu0 0.0
    %4446 = vmatpush1.msra.mxu0 0.0
    %4447 = vmatprep.subr.mxu0 0.0
    %4448 = vmatpush1.msra.mxu0 0.0
    %4449 = vmatprep.subr.mxu0 0.0
    %4450 = vmatpush1.msra.mxu0 0.0
    %4451 = vmatprep.subr.mxu0 0.0
    %4452 = vmatpush1.msra.mxu0 0.0
    %4453 = vmatprep.subr.mxu0 0.0
    %4454 = vmatpush1.msra.mxu0 0.0
    %4455 = vmatprep.subr.mxu0 0.0
    %4456 = vmatpush1.msra.mxu0 0.0
    %4457 = vmatprep.subr.mxu0 0.0
    %4458 = vmatpush1.msra.mxu0 0.0
    %4459 = vmatprep.subr.mxu0 0.0
    %4460 = vmatpush1.msra.mxu0 0.0
    %4461 = vmatprep.subr.mxu0 0.0
    %4462 = vmatpush1.msra.mxu0 0.0
    %4463 = vmatprep.subr.mxu0 0.0
    %v4464 = vand.u32 %v4345, 4294901760
    %v4465 = vsub.f32 %v4345, %v4464
    %v4466 = vand.u32 %v4465, 4294901760
    %v4467 = vsub.f32 %v4465, %v4466
    %v4468 = vand.u32 %v4467, 4294901760
    %4469 = vmatpush1.msra.mxu0 %v4468
    %4470 = vmatprep.subr.mxu0 0.0
    %v4471 = vand.u32 %v4339, 4294901760
    %v4472 = vsub.f32 %v4339, %v4471
    %v4473 = vand.u32 %v4472, 4294901760
    %v4474 = vsub.f32 %v4472, %v4473
    %v4475 = vand.u32 %v4474, 4294901760
    %4476 = vmatpush1.msra.mxu0 %v4475
    %4477 = vmatprep.subr.mxu0 0.0
    %4478 = vmatpush2.msra.mxu0 0.0
    %4479 = vmatprep.subr.mxu0 0.0
    %4480 = vmatpush2.msra.mxu0 0.0
    %4481 = vmatprep.subr.mxu0 0.0
    %4482 = vmatpush2.msra.mxu0 0.0
    %4483 = vmatprep.subr.mxu0 0.0
    %4484 = vmatpush2.msra.mxu0 0.0
    %4485 = vmatprep.subr.mxu0 0.0
    %4486 = vmatpush2.msra.mxu0 0.0
    %4487 = vmatprep.subr.mxu0 0.0
    %4488 = vmatpush2.msra.mxu0 0.0
    %4489 = vmatprep.subr.mxu0 0.0
    %4490 = vmatpush2.msra.mxu0 0.0
    %4491 = vmatprep.subr.mxu0 0.0
    %4492 = vmatpush2.msra.mxu0 0.0
    %4493 = vmatprep.subr.mxu0 0.0
    %4494 = vmatpush2.msra.mxu0 0.0
    %4495 = vmatprep.subr.mxu0 0.0
    %4496 = vmatpush2.msra.mxu0 0.0
    %4497 = vmatprep.subr.mxu0 0.0
    %4498 = vmatpush2.msra.mxu0 0.0
    %4499 = vmatprep.subr.mxu0 0.0
    %4500 = vmatpush2.msra.mxu0 0.0
    %4501 = vmatprep.subr.mxu0 0.0
    %4502 = vmatpush2.msra.mxu0 0.0
    %4503 = vmatprep.subr.mxu0 0.0
    %4504 = vmatpush2.msra.mxu0 0.0
    %4505 = vmatprep.subr.mxu0 0.0
    %4506 = vmatpush2.msra.mxu0 0.0
    %4507 = vmatprep.subr.mxu0 0.0
    %4508 = vmatpush2.msra.mxu0 0.0
    %4509 = vmatprep.mubr.f32.mxu0 0.0
    %v4510 = vand.u32 %v781, 4294901760
    %4511 = vmatmul.mubr.f32.gmra.mxu0 %v4510
    %v4512 = vpop.f32.mrf.mxu0
    %v4513 = vadd.f32 %v4422, %v4512
    %v4514 = vpop.f32.mrf.mxu0
    %4515 = vmatprep.mubr.f32.mxu0 0.0
    %v4516 = vand.u32 %v784, 4294901760
    %4517 = vmatmul.mubr.f32.gmra.mxu0 %v4516
    %v4518 = vpop.f32.mrf.mxu0
    %v4519 = vadd.f32 %v4432, %v4518
    %v4520 = vpop.f32.mrf.mxu0
    %4521 = vdwg.mxu0
    %4522 = vmatprep.subr.mxu0 0.0
    %4523 = vmatpush1.msra.mxu0 0.0
    %4524 = vmatprep.subr.mxu0 0.0
    %4525 = vmatpush1.msra.mxu0 0.0
    %4526 = vmatprep.subr.mxu0 0.0
    %4527 = vmatpush1.msra.mxu0 0.0
    %4528 = vmatprep.subr.mxu0 0.0
    %4529 = vmatpush1.msra.mxu0 0.0
    %4530 = vmatprep.subr.mxu0 0.0
    %4531 = vmatpush1.msra.mxu0 0.0
    %4532 = vmatprep.subr.mxu0 0.0
    %4533 = vmatpush1.msra.mxu0 0.0
    %4534 = vmatprep.subr.mxu0 0.0
    %4535 = vmatpush1.msra.mxu0 0.0
    %4536 = vmatprep.subr.mxu0 0.0
    %4537 = vmatpush1.msra.mxu0 0.0
    %4538 = vmatprep.subr.mxu0 0.0
    %4539 = vmatpush1.msra.mxu0 0.0
    %4540 = vmatprep.subr.mxu0 0.0
    %4541 = vmatpush1.msra.mxu0 0.0
    %4542 = vmatprep.subr.mxu0 0.0
    %4543 = vmatpush1.msra.mxu0 0.0
    %4544 = vmatprep.subr.mxu0 0.0
    %4545 = vmatpush1.msra.mxu0 0.0
    %4546 = vmatprep.subr.mxu0 0.0
    %4547 = vmatpush1.msra.mxu0 0.0
    %4548 = vmatprep.subr.mxu0 0.0
    %4549 = vmatpush1.msra.mxu0 0.0
    %4550 = vmatprep.subr.mxu0 0.0
    %v4551 = vand.u32 %v4345, 4294901760
    %v4552 = vsub.f32 %v4345, %v4551
    %4553 = vmatpush1.msra.mxu0 %v4552
    %4554 = vmatprep.subr.mxu0 0.0
    %v4555 = vand.u32 %v4339, 4294901760
    %v4556 = vsub.f32 %v4339, %v4555
    %4557 = vmatpush1.msra.mxu0 %v4556
    %4558 = vmatprep.subr.mxu0 0.0
    %4559 = vmatpush2.msra.mxu0 0.0
    %4560 = vmatprep.subr.mxu0 0.0
    %4561 = vmatpush2.msra.mxu0 0.0
    %4562 = vmatprep.subr.mxu0 0.0
    %4563 = vmatpush2.msra.mxu0 0.0
    %4564 = vmatprep.subr.mxu0 0.0
    %4565 = vmatpush2.msra.mxu0 0.0
    %4566 = vmatprep.subr.mxu0 0.0
    %4567 = vmatpush2.msra.mxu0 0.0
    %4568 = vmatprep.subr.mxu0 0.0
    %4569 = vmatpush2.msra.mxu0 0.0
    %4570 = vmatprep.subr.mxu0 0.0
    %4571 = vmatpush2.msra.mxu0 0.0
    %4572 = vmatprep.subr.mxu0 0.0
    %4573 = vmatpush2.msra.mxu0 0.0
    %4574 = vmatprep.subr.mxu0 0.0
    %4575 = vmatpush2.msra.mxu0 0.0
    %4576 = vmatprep.subr.mxu0 0.0
    %4577 = vmatpush2.msra.mxu0 0.0
    %4578 = vmatprep.subr.mxu0 0.0
    %4579 = vmatpush2.msra.mxu0 0.0
    %4580 = vmatprep.subr.mxu0 0.0
    %4581 = vmatpush2.msra.mxu0 0.0
    %4582 = vmatprep.subr.mxu0 0.0
    %4583 = vmatpush2.msra.mxu0 0.0
    %4584 = vmatprep.subr.mxu0 0.0
    %4585 = vmatpush2.msra.mxu0 0.0
    %4586 = vmatprep.subr.mxu0 0.0
    %4587 = vmatpush2.msra.mxu0 0.0
    %4588 = vmatprep.subr.mxu0 0.0
    %4589 = vmatpush2.msra.mxu0 0.0
    %4590 = vmatprep.mubr.f32.mxu0 0.0
    %v4591 = vand.u32 %v781, 4294901760
    %v4592 = vsub.f32 %v781, %v4591
    %4593 = vmatmul.mubr.f32.gmra.mxu0 %v4592
    %v4594 = vpop.f32.mrf.mxu0
    %v4595 = vadd.f32 %v4513, %v4594
    %v4596 = vpop.f32.mrf.mxu0
    %4597 = vmatprep.mubr.f32.mxu0 0.0
    %v4598 = vand.u32 %v784, 4294901760
    %v4599 = vsub.f32 %v784, %v4598
    %4600 = vmatmul.mubr.f32.gmra.mxu0 %v4599
    %v4601 = vpop.f32.mrf.mxu0
    %v4602 = vadd.f32 %v4519, %v4601
    %v4603 = vpop.f32.mrf.mxu0
    %4604 = vdwg.mxu0
    %4605 = vmatprep.subr.mxu0 0.0
    %4606 = vmatpush1.msra.mxu0 0.0
    %4607 = vmatprep.subr.mxu0 0.0
    %4608 = vmatpush1.msra.mxu0 0.0
    %4609 = vmatprep.subr.mxu0 0.0
    %4610 = vmatpush1.msra.mxu0 0.0
    %4611 = vmatprep.subr.mxu0 0.0
    %4612 = vmatpush1.msra.mxu0 0.0
    %4613 = vmatprep.subr.mxu0 0.0
    %4614 = vmatpush1.msra.mxu0 0.0
    %4615 = vmatprep.subr.mxu0 0.0
    %4616 = vmatpush1.msra.mxu0 0.0
    %4617 = vmatprep.subr.mxu0 0.0
    %4618 = vmatpush1.msra.mxu0 0.0
    %4619 = vmatprep.subr.mxu0 0.0
    %4620 = vmatpush1.msra.mxu0 0.0
    %4621 = vmatprep.subr.mxu0 0.0
    %4622 = vmatpush1.msra.mxu0 0.0
    %4623 = vmatprep.subr.mxu0 0.0
    %4624 = vmatpush1.msra.mxu0 0.0
    %4625 = vmatprep.subr.mxu0 0.0
    %4626 = vmatpush1.msra.mxu0 0.0
    %4627 = vmatprep.subr.mxu0 0.0
    %4628 = vmatpush1.msra.mxu0 0.0
    %4629 = vmatprep.subr.mxu0 0.0
    %4630 = vmatpush1.msra.mxu0 0.0
    %4631 = vmatprep.subr.mxu0 0.0
    %4632 = vmatpush1.msra.mxu0 0.0
    %4633 = vmatprep.subr.mxu0 0.0
    %v4634 = vand.u32 %v4345, 4294901760
    %4635 = vmatpush1.msra.mxu0 %v4634
    %4636 = vmatprep.subr.mxu0 0.0
    %v4637 = vand.u32 %v4339, 4294901760
    %4638 = vmatpush1.msra.mxu0 %v4637
    %4639 = vmatprep.subr.mxu0 0.0
    %4640 = vmatpush2.msra.mxu0 0.0
    %4641 = vmatprep.subr.mxu0 0.0
    %4642 = vmatpush2.msra.mxu0 0.0
    %4643 = vmatprep.subr.mxu0 0.0
    %4644 = vmatpush2.msra.mxu0 0.0
    %4645 = vmatprep.subr.mxu0 0.0
    %4646 = vmatpush2.msra.mxu0 0.0
    %4647 = vmatprep.subr.mxu0 0.0
    %4648 = vmatpush2.msra.mxu0 0.0
    %4649 = vmatprep.subr.mxu0 0.0
    %4650 = vmatpush2.msra.mxu0 0.0
    %4651 = vmatprep.subr.mxu0 0.0
    %4652 = vmatpush2.msra.mxu0 0.0
    %4653 = vmatprep.subr.mxu0 0.0
    %4654 = vmatpush2.msra.mxu0 0.0
    %4655 = vmatprep.subr.mxu0 0.0
    %4656 = vmatpush2.msra.mxu0 0.0
    %4657 = vmatprep.subr.mxu0 0.0
    %4658 = vmatpush2.msra.mxu0 0.0
    %4659 = vmatprep.subr.mxu0 0.0
    %4660 = vmatpush2.msra.mxu0 0.0
    %4661 = vmatprep.subr.mxu0 0.0
    %4662 = vmatpush2.msra.mxu0 0.0
    %4663 = vmatprep.subr.mxu0 0.0
    %4664 = vmatpush2.msra.mxu0 0.0
    %4665 = vmatprep.subr.mxu0 0.0
    %4666 = vmatpush2.msra.mxu0 0.0
    %4667 = vmatprep.subr.mxu0 0.0
    %4668 = vmatpush2.msra.mxu0 0.0
    %4669 = vmatprep.subr.mxu0 0.0
    %4670 = vmatpush2.msra.mxu0 0.0
    %4671 = vmatprep.mubr.f32.mxu0 0.0
    %v4672 = vand.u32 %v781, 4294901760
    %v4673 = vsub.f32 %v781, %v4672
    %v4674 = vand.u32 %v4673, 4294901760
    %4675 = vmatmul.mubr.f32.gmra.mxu0 %v4674
    %v4676 = vpop.f32.mrf.mxu0
    %v4677 = vadd.f32 %v4595, %v4676
    %v4678 = vpop.f32.mrf.mxu0
    %4679 = vmatprep.mubr.f32.mxu0 0.0
    %v4680 = vand.u32 %v784, 4294901760
    %v4681 = vsub.f32 %v784, %v4680
    %v4682 = vand.u32 %v4681, 4294901760
    %4683 = vmatmul.mubr.f32.gmra.mxu0 %v4682
    %v4684 = vpop.f32.mrf.mxu0
    %v4685 = vadd.f32 %v4602, %v4684
    %v4686 = vpop.f32.mrf.mxu0
    %4687 = vdwg.mxu0
    %4688 = vmatprep.subr.mxu0 0.0
    %4689 = vmatpush1.msra.mxu0 0.0
    %4690 = vmatprep.subr.mxu0 0.0
    %4691 = vmatpush1.msra.mxu0 0.0
    %4692 = vmatprep.subr.mxu0 0.0
    %4693 = vmatpush1.msra.mxu0 0.0
    %4694 = vmatprep.subr.mxu0 0.0
    %4695 = vmatpush1.msra.mxu0 0.0
    %4696 = vmatprep.subr.mxu0 0.0
    %4697 = vmatpush1.msra.mxu0 0.0
    %4698 = vmatprep.subr.mxu0 0.0
    %4699 = vmatpush1.msra.mxu0 0.0
    %4700 = vmatprep.subr.mxu0 0.0
    %4701 = vmatpush1.msra.mxu0 0.0
    %4702 = vmatprep.subr.mxu0 0.0
    %4703 = vmatpush1.msra.mxu0 0.0
    %4704 = vmatprep.subr.mxu0 0.0
    %4705 = vmatpush1.msra.mxu0 0.0
    %4706 = vmatprep.subr.mxu0 0.0
    %4707 = vmatpush1.msra.mxu0 0.0
    %4708 = vmatprep.subr.mxu0 0.0
    %4709 = vmatpush1.msra.mxu0 0.0
    %4710 = vmatprep.subr.mxu0 0.0
    %4711 = vmatpush1.msra.mxu0 0.0
    %4712 = vmatprep.subr.mxu0 0.0
    %4713 = vmatpush1.msra.mxu0 0.0
    %4714 = vmatprep.subr.mxu0 0.0
    %4715 = vmatpush1.msra.mxu0 0.0
    %4716 = vmatprep.subr.mxu0 0.0
    %v4717 = vand.u32 %v4345, 4294901760
    %v4718 = vsub.f32 %v4345, %v4717
    %v4719 = vand.u32 %v4718, 4294901760
    %4720 = vmatpush1.msra.mxu0 %v4719
    %4721 = vmatprep.subr.mxu0 0.0
    %v4722 = vand.u32 %v4339, 4294901760
    %v4723 = vsub.f32 %v4339, %v4722
    %v4724 = vand.u32 %v4723, 4294901760
    %4725 = vmatpush1.msra.mxu0 %v4724
    %4726 = vmatprep.subr.mxu0 0.0
    %4727 = vmatpush2.msra.mxu0 0.0
    %4728 = vmatprep.subr.mxu0 0.0
    %4729 = vmatpush2.msra.mxu0 0.0
    %4730 = vmatprep.subr.mxu0 0.0
    %4731 = vmatpush2.msra.mxu0 0.0
    %4732 = vmatprep.subr.mxu0 0.0
    %4733 = vmatpush2.msra.mxu0 0.0
    %4734 = vmatprep.subr.mxu0 0.0
    %4735 = vmatpush2.msra.mxu0 0.0
    %4736 = vmatprep.subr.mxu0 0.0
    %4737 = vmatpush2.msra.mxu0 0.0
    %4738 = vmatprep.subr.mxu0 0.0
    %4739 = vmatpush2.msra.mxu0 0.0
    %4740 = vmatprep.subr.mxu0 0.0
    %4741 = vmatpush2.msra.mxu0 0.0
    %4742 = vmatprep.subr.mxu0 0.0
    %4743 = vmatpush2.msra.mxu0 0.0
    %4744 = vmatprep.subr.mxu0 0.0
    %4745 = vmatpush2.msra.mxu0 0.0
    %4746 = vmatprep.subr.mxu0 0.0
    %4747 = vmatpush2.msra.mxu0 0.0
    %4748 = vmatprep.subr.mxu0 0.0
    %4749 = vmatpush2.msra.mxu0 0.0
    %4750 = vmatprep.subr.mxu0 0.0
    %4751 = vmatpush2.msra.mxu0 0.0
    %4752 = vmatprep.subr.mxu0 0.0
    %4753 = vmatpush2.msra.mxu0 0.0
    %4754 = vmatprep.subr.mxu0 0.0
    %4755 = vmatpush2.msra.mxu0 0.0
    %4756 = vmatprep.subr.mxu0 0.0
    %4757 = vmatpush2.msra.mxu0 0.0
    %4758 = vmatprep.mubr.f32.mxu0 0.0
    %v4759 = vand.u32 %v781, 4294901760
    %4760 = vmatmul.mubr.f32.gmra.mxu0 %v4759
    %v4761 = vpop.f32.mrf.mxu0
    %v4762 = vadd.f32 %v4677, %v4761
    %v4763 = vpop.f32.mrf.mxu0
    %4764 = vmatprep.mubr.f32.mxu0 0.0
    %v4765 = vand.u32 %v784, 4294901760
    %4766 = vmatmul.mubr.f32.gmra.mxu0 %v4765
    %v4767 = vpop.f32.mrf.mxu0
    %v4768 = vadd.f32 %v4685, %v4767
    %v4769 = vpop.f32.mrf.mxu0
    %4770 = vdwg.mxu0
    %4771 = vmatprep.subr.mxu0 0.0
    %4772 = vmatpush1.msra.mxu0 0.0
    %4773 = vmatprep.subr.mxu0 0.0
    %4774 = vmatpush1.msra.mxu0 0.0
    %4775 = vmatprep.subr.mxu0 0.0
    %4776 = vmatpush1.msra.mxu0 0.0
    %4777 = vmatprep.subr.mxu0 0.0
    %4778 = vmatpush1.msra.mxu0 0.0
    %4779 = vmatprep.subr.mxu0 0.0
    %4780 = vmatpush1.msra.mxu0 0.0
    %4781 = vmatprep.subr.mxu0 0.0
    %4782 = vmatpush1.msra.mxu0 0.0
    %4783 = vmatprep.subr.mxu0 0.0
    %4784 = vmatpush1.msra.mxu0 0.0
    %4785 = vmatprep.subr.mxu0 0.0
    %4786 = vmatpush1.msra.mxu0 0.0
    %4787 = vmatprep.subr.mxu0 0.0
    %4788 = vmatpush1.msra.mxu0 0.0
    %4789 = vmatprep.subr.mxu0 0.0
    %4790 = vmatpush1.msra.mxu0 0.0
    %4791 = vmatprep.subr.mxu0 0.0
    %4792 = vmatpush1.msra.mxu0 0.0
    %4793 = vmatprep.subr.mxu0 0.0
    %4794 = vmatpush1.msra.mxu0 0.0
    %4795 = vmatprep.subr.mxu0 0.0
    %4796 = vmatpush1.msra.mxu0 0.0
    %4797 = vmatprep.subr.mxu0 0.0
    %4798 = vmatpush1.msra.mxu0 0.0
    %4799 = vmatprep.subr.mxu0 0.0
    %v4800 = vand.u32 %v4345, 4294901760
    %4801 = vmatpush1.msra.mxu0 %v4800
    %4802 = vmatprep.subr.mxu0 0.0
    %v4803 = vand.u32 %v4339, 4294901760
    %4804 = vmatpush1.msra.mxu0 %v4803
    %4805 = vmatprep.subr.mxu0 0.0
    %4806 = vmatpush2.msra.mxu0 0.0
    %4807 = vmatprep.subr.mxu0 0.0
    %4808 = vmatpush2.msra.mxu0 0.0
    %4809 = vmatprep.subr.mxu0 0.0
    %4810 = vmatpush2.msra.mxu0 0.0
    %4811 = vmatprep.subr.mxu0 0.0
    %4812 = vmatpush2.msra.mxu0 0.0
    %4813 = vmatprep.subr.mxu0 0.0
    %4814 = vmatpush2.msra.mxu0 0.0
    %4815 = vmatprep.subr.mxu0 0.0
    %4816 = vmatpush2.msra.mxu0 0.0
    %4817 = vmatprep.subr.mxu0 0.0
    %4818 = vmatpush2.msra.mxu0 0.0
    %4819 = vmatprep.subr.mxu0 0.0
    %4820 = vmatpush2.msra.mxu0 0.0
    %4821 = vmatprep.subr.mxu0 0.0
    %4822 = vmatpush2.msra.mxu0 0.0
    %4823 = vmatprep.subr.mxu0 0.0
    %4824 = vmatpush2.msra.mxu0 0.0
    %4825 = vmatprep.subr.mxu0 0.0
    %4826 = vmatpush2.msra.mxu0 0.0
    %4827 = vmatprep.subr.mxu0 0.0
    %4828 = vmatpush2.msra.mxu0 0.0
    %4829 = vmatprep.subr.mxu0 0.0
    %4830 = vmatpush2.msra.mxu0 0.0
    %4831 = vmatprep.subr.mxu0 0.0
    %4832 = vmatpush2.msra.mxu0 0.0
    %4833 = vmatprep.subr.mxu0 0.0
    %4834 = vmatpush2.msra.mxu0 0.0
    %4835 = vmatprep.subr.mxu0 0.0
    %4836 = vmatpush2.msra.mxu0 0.0
    %4837 = vmatprep.mubr.f32.mxu0 0.0
    %v4838 = vand.u32 %v781, 4294901760
    %4839 = vmatmul.mubr.f32.gmra.mxu0 %v4838
    %v4840 = vpop.f32.mrf.mxu0
    %v4841 = vadd.f32 %v4762, %v4840
    %v4842 = vpop.f32.mrf.mxu0
    %4843 = vmatprep.mubr.f32.mxu0 0.0
    %v4844 = vand.u32 %v784, 4294901760
    %4845 = vmatmul.mubr.f32.gmra.mxu0 %v4844
    %v4846 = vpop.f32.mrf.mxu0
    %v4847 = vadd.f32 %v4768, %v4846
    %v4848 = vpop.f32.mrf.mxu0
    %4849 = vdwg.mxu0
    %v4850 = vmul.f32 %v73, %v75
    %v4851 = vmul.f32 %v74, %v76
    %4852 = vmatprep.subr.mxu0 0.0
    %v4853 = vand.u32 %v92, 4294901760
    %4854 = vmatpush1.msra.mxu0 %v4853
    %4855 = vmatprep.subr.mxu0 0.0
    %v4856 = vand.u32 %v91, 4294901760
    %4857 = vmatpush1.msra.mxu0 %v4856
    %4858 = vmatprep.subr.mxu0 0.0
    %v4859 = vand.u32 %v90, 4294901760
    %4860 = vmatpush1.msra.mxu0 %v4859
    %4861 = vmatprep.subr.mxu0 0.0
    %v4862 = vand.u32 %v89, 4294901760
    %4863 = vmatpush1.msra.mxu0 %v4862
    %4864 = vmatprep.subr.mxu0 0.0
    %v4865 = vand.u32 %v88, 4294901760
    %4866 = vmatpush1.msra.mxu0 %v4865
    %4867 = vmatprep.subr.mxu0 0.0
    %v4868 = vand.u32 %v87, 4294901760
    %4869 = vmatpush1.msra.mxu0 %v4868
    %4870 = vmatprep.subr.mxu0 0.0
    %v4871 = vand.u32 %v86, 4294901760
    %4872 = vmatpush1.msra.mxu0 %v4871
    %4873 = vmatprep.subr.mxu0 0.0
    %v4874 = vand.u32 %v85, 4294901760
    %4875 = vmatpush1.msra.mxu0 %v4874
    %4876 = vmatprep.subr.mxu0 0.0
    %v4877 = vand.u32 %v84, 4294901760
    %4878 = vmatpush1.msra.mxu0 %v4877
    %4879 = vmatprep.subr.mxu0 0.0
    %v4880 = vand.u32 %v83, 4294901760
    %4881 = vmatpush1.msra.mxu0 %v4880
    %4882 = vmatprep.subr.mxu0 0.0
    %v4883 = vand.u32 %v82, 4294901760
    %4884 = vmatpush1.msra.mxu0 %v4883
    %4885 = vmatprep.subr.mxu0 0.0
    %v4886 = vand.u32 %v81, 4294901760
    %4887 = vmatpush1.msra.mxu0 %v4886
    %4888 = vmatprep.subr.mxu0 0.0
    %v4889 = vand.u32 %v80, 4294901760
    %4890 = vmatpush1.msra.mxu0 %v4889
    %4891 = vmatprep.subr.mxu0 0.0
    %v4892 = vand.u32 %v79, 4294901760
    %4893 = vmatpush1.msra.mxu0 %v4892
    %4894 = vmatprep.subr.mxu0 0.0
    %v4895 = vand.u32 %v78, 4294901760
    %4896 = vmatpush1.msra.mxu0 %v4895
    %4897 = vmatprep.subr.mxu0 0.0
    %v4898 = vand.u32 %v77, 4294901760
    %4899 = vmatpush1.msra.mxu0 %v4898
    %4900 = vmatprep.subr.mxu0 0.0
    %4901 = vmatpush2.msra.mxu0 0.0
    %4902 = vmatprep.subr.mxu0 0.0
    %4903 = vmatpush2.msra.mxu0 0.0
    %4904 = vmatprep.subr.mxu0 0.0
    %4905 = vmatpush2.msra.mxu0 0.0
    %4906 = vmatprep.subr.mxu0 0.0
    %4907 = vmatpush2.msra.mxu0 0.0
    %4908 = vmatprep.subr.mxu0 0.0
    %4909 = vmatpush2.msra.mxu0 0.0
    %4910 = vmatprep.subr.mxu0 0.0
    %4911 = vmatpush2.msra.mxu0 0.0
    %4912 = vmatprep.subr.mxu0 0.0
    %4913 = vmatpush2.msra.mxu0 0.0
    %4914 = vmatprep.subr.mxu0 0.0
    %4915 = vmatpush2.msra.mxu0 0.0
    %4916 = vmatprep.subr.mxu0 0.0
    %4917 = vmatpush2.msra.mxu0 0.0
    %4918 = vmatprep.subr.mxu0 0.0
    %4919 = vmatpush2.msra.mxu0 0.0
    %4920 = vmatprep.subr.mxu0 0.0
    %4921 = vmatpush2.msra.mxu0 0.0
    %4922 = vmatprep.subr.mxu0 0.0
    %4923 = vmatpush2.msra.mxu0 0.0
    %4924 = vmatprep.subr.mxu0 0.0
    %4925 = vmatpush2.msra.mxu0 0.0
    %4926 = vmatprep.subr.mxu0 0.0
    %4927 = vmatpush2.msra.mxu0 0.0
    %4928 = vmatprep.subr.mxu0 0.0
    %4929 = vmatpush2.msra.mxu0 0.0
    %4930 = vmatprep.subr.mxu0 0.0
    %4931 = vmatpush2.msra.mxu0 0.0
    %4932 = vmatprep.mubr.f32.mxu0 0.0
    %v4933 = vand.u32 %v4850, 4294901760
    %v4934 = vsub.f32 %v4850, %v4933
    %v4935 = vand.u32 %v4934, 4294901760
    %v4936 = vsub.f32 %v4934, %v4935
    %v4937 = vand.u32 %v4936, 4294901760
    %4938 = vmatmul.mubr.f32.gmra.mxu0 %v4937
    %v4939 = vpop.f32.mrf.mxu0
    %v4940 = vadd.f32 0.0, %v4939
    %v4941 = vpop.f32.mrf.mxu0
    %4942 = vmatprep.mubr.f32.mxu0 0.0
    %v4943 = vand.u32 %v4851, 4294901760
    %v4944 = vsub.f32 %v4851, %v4943
    %v4945 = vand.u32 %v4944, 4294901760
    %v4946 = vsub.f32 %v4944, %v4945
    %v4947 = vand.u32 %v4946, 4294901760
    %4948 = vmatmul.mubr.f32.gmra.mxu0 %v4947
    %v4949 = vpop.f32.mrf.mxu0
    %v4950 = vadd.f32 0.0, %v4949
    %v4951 = vpop.f32.mrf.mxu0
    %4952 = vdwg.mxu0
    %4953 = vmatprep.subr.mxu0 0.0
    %v4954 = vand.u32 %v92, 4294901760
    %v4955 = vsub.f32 %v92, %v4954
    %v4956 = vand.u32 %v4955, 4294901760
    %v4957 = vsub.f32 %v4955, %v4956
    %v4958 = vand.u32 %v4957, 4294901760
    %4959 = vmatpush1.msra.mxu0 %v4958
    %4960 = vmatprep.subr.mxu0 0.0
    %v4961 = vand.u32 %v91, 4294901760
    %v4962 = vsub.f32 %v91, %v4961
    %v4963 = vand.u32 %v4962, 4294901760
    %v4964 = vsub.f32 %v4962, %v4963
    %v4965 = vand.u32 %v4964, 4294901760
    %4966 = vmatpush1.msra.mxu0 %v4965
    %4967 = vmatprep.subr.mxu0 0.0
    %v4968 = vand.u32 %v90, 4294901760
    %v4969 = vsub.f32 %v90, %v4968
    %v4970 = vand.u32 %v4969, 4294901760
    %v4971 = vsub.f32 %v4969, %v4970
    %v4972 = vand.u32 %v4971, 4294901760
    %4973 = vmatpush1.msra.mxu0 %v4972
    %4974 = vmatprep.subr.mxu0 0.0
    %v4975 = vand.u32 %v89, 4294901760
    %v4976 = vsub.f32 %v89, %v4975
    %v4977 = vand.u32 %v4976, 4294901760
    %v4978 = vsub.f32 %v4976, %v4977
    %v4979 = vand.u32 %v4978, 4294901760
    %4980 = vmatpush1.msra.mxu0 %v4979
    %4981 = vmatprep.subr.mxu0 0.0
    %v4982 = vand.u32 %v88, 4294901760
    %v4983 = vsub.f32 %v88, %v4982
    %v4984 = vand.u32 %v4983, 4294901760
    %v4985 = vsub.f32 %v4983, %v4984
    %v4986 = vand.u32 %v4985, 4294901760
    %4987 = vmatpush1.msra.mxu0 %v4986
    %4988 = vmatprep.subr.mxu0 0.0
    %v4989 = vand.u32 %v87, 4294901760
    %v4990 = vsub.f32 %v87, %v4989
    %v4991 = vand.u32 %v4990, 4294901760
    %v4992 = vsub.f32 %v4990, %v4991
    %v4993 = vand.u32 %v4992, 4294901760
    %4994 = vmatpush1.msra.mxu0 %v4993
    %4995 = vmatprep.subr.mxu0 0.0
    %v4996 = vand.u32 %v86, 4294901760
    %v4997 = vsub.f32 %v86, %v4996
    %v4998 = vand.u32 %v4997, 4294901760
    %v4999 = vsub.f32 %v4997, %v4998
    %v5000 = vand.u32 %v4999, 4294901760
    %5001 = vmatpush1.msra.mxu0 %v5000
    %5002 = vmatprep.subr.mxu0 0.0
    %v5003 = vand.u32 %v85, 4294901760
    %v5004 = vsub.f32 %v85, %v5003
    %v5005 = vand.u32 %v5004, 4294901760
    %v5006 = vsub.f32 %v5004, %v5005
    %v5007 = vand.u32 %v5006, 4294901760
    %5008 = vmatpush1.msra.mxu0 %v5007
    %5009 = vmatprep.subr.mxu0 0.0
    %v5010 = vand.u32 %v84, 4294901760
    %v5011 = vsub.f32 %v84, %v5010
    %v5012 = vand.u32 %v5011, 4294901760
    %v5013 = vsub.f32 %v5011, %v5012
    %v5014 = vand.u32 %v5013, 4294901760
    %5015 = vmatpush1.msra.mxu0 %v5014
    %5016 = vmatprep.subr.mxu0 0.0
    %v5017 = vand.u32 %v83, 4294901760
    %v5018 = vsub.f32 %v83, %v5017
    %v5019 = vand.u32 %v5018, 4294901760
    %v5020 = vsub.f32 %v5018, %v5019
    %v5021 = vand.u32 %v5020, 4294901760
    %5022 = vmatpush1.msra.mxu0 %v5021
    %5023 = vmatprep.subr.mxu0 0.0
    %v5024 = vand.u32 %v82, 4294901760
    %v5025 = vsub.f32 %v82, %v5024
    %v5026 = vand.u32 %v5025, 4294901760
    %v5027 = vsub.f32 %v5025, %v5026
    %v5028 = vand.u32 %v5027, 4294901760
    %5029 = vmatpush1.msra.mxu0 %v5028
    %5030 = vmatprep.subr.mxu0 0.0
    %v5031 = vand.u32 %v81, 4294901760
    %v5032 = vsub.f32 %v81, %v5031
    %v5033 = vand.u32 %v5032, 4294901760
    %v5034 = vsub.f32 %v5032, %v5033
    %v5035 = vand.u32 %v5034, 4294901760
    %5036 = vmatpush1.msra.mxu0 %v5035
    %5037 = vmatprep.subr.mxu0 0.0
    %v5038 = vand.u32 %v80, 4294901760
    %v5039 = vsub.f32 %v80, %v5038
    %v5040 = vand.u32 %v5039, 4294901760
    %v5041 = vsub.f32 %v5039, %v5040
    %v5042 = vand.u32 %v5041, 4294901760
    %5043 = vmatpush1.msra.mxu0 %v5042
    %5044 = vmatprep.subr.mxu0 0.0
    %v5045 = vand.u32 %v79, 4294901760
    %v5046 = vsub.f32 %v79, %v5045
    %v5047 = vand.u32 %v5046, 4294901760
    %v5048 = vsub.f32 %v5046, %v5047
    %v5049 = vand.u32 %v5048, 4294901760
    %5050 = vmatpush1.msra.mxu0 %v5049
    %5051 = vmatprep.subr.mxu0 0.0
    %v5052 = vand.u32 %v78, 4294901760
    %v5053 = vsub.f32 %v78, %v5052
    %v5054 = vand.u32 %v5053, 4294901760
    %v5055 = vsub.f32 %v5053, %v5054
    %v5056 = vand.u32 %v5055, 4294901760
    %5057 = vmatpush1.msra.mxu0 %v5056
    %5058 = vmatprep.subr.mxu0 0.0
    %v5059 = vand.u32 %v77, 4294901760
    %v5060 = vsub.f32 %v77, %v5059
    %v5061 = vand.u32 %v5060, 4294901760
    %v5062 = vsub.f32 %v5060, %v5061
    %v5063 = vand.u32 %v5062, 4294901760
    %5064 = vmatpush1.msra.mxu0 %v5063
    %5065 = vmatprep.subr.mxu0 0.0
    %5066 = vmatpush2.msra.mxu0 0.0
    %5067 = vmatprep.subr.mxu0 0.0
    %5068 = vmatpush2.msra.mxu0 0.0
    %5069 = vmatprep.subr.mxu0 0.0
    %5070 = vmatpush2.msra.mxu0 0.0
    %5071 = vmatprep.subr.mxu0 0.0
    %5072 = vmatpush2.msra.mxu0 0.0
    %5073 = vmatprep.subr.mxu0 0.0
    %5074 = vmatpush2.msra.mxu0 0.0
    %5075 = vmatprep.subr.mxu0 0.0
    %5076 = vmatpush2.msra.mxu0 0.0
    %5077 = vmatprep.subr.mxu0 0.0
    %5078 = vmatpush2.msra.mxu0 0.0
    %5079 = vmatprep.subr.mxu0 0.0
    %5080 = vmatpush2.msra.mxu0 0.0
    %5081 = vmatprep.subr.mxu0 0.0
    %5082 = vmatpush2.msra.mxu0 0.0
    %5083 = vmatprep.subr.mxu0 0.0
    %5084 = vmatpush2.msra.mxu0 0.0
    %5085 = vmatprep.subr.mxu0 0.0
    %5086 = vmatpush2.msra.mxu0 0.0
    %5087 = vmatprep.subr.mxu0 0.0
    %5088 = vmatpush2.msra.mxu0 0.0
    %5089 = vmatprep.subr.mxu0 0.0
    %5090 = vmatpush2.msra.mxu0 0.0
    %5091 = vmatprep.subr.mxu0 0.0
    %5092 = vmatpush2.msra.mxu0 0.0
    %5093 = vmatprep.subr.mxu0 0.0
    %5094 = vmatpush2.msra.mxu0 0.0
    %5095 = vmatprep.subr.mxu0 0.0
    %5096 = vmatpush2.msra.mxu0 0.0
    %5097 = vmatprep.mubr.f32.mxu0 0.0
    %v5098 = vand.u32 %v4850, 4294901760
    %5099 = vmatmul.mubr.f32.gmra.mxu0 %v5098
    %v5100 = vpop.f32.mrf.mxu0
    %v5101 = vadd.f32 %v4940, %v5100
    %v5102 = vpop.f32.mrf.mxu0
    %5103 = vmatprep.mubr.f32.mxu0 0.0
    %v5104 = vand.u32 %v4851, 4294901760
    %5105 = vmatmul.mubr.f32.gmra.mxu0 %v5104
    %v5106 = vpop.f32.mrf.mxu0
    %v5107 = vadd.f32 %v4950, %v5106
    %v5108 = vpop.f32.mrf.mxu0
    %5109 = vdwg.mxu0
    %5110 = vmatprep.subr.mxu0 0.0
    %v5111 = vand.u32 %v92, 4294901760
    %v5112 = vsub.f32 %v92, %v5111
    %5113 = vmatpush1.msra.mxu0 %v5112
    %5114 = vmatprep.subr.mxu0 0.0
    %v5115 = vand.u32 %v91, 4294901760
    %v5116 = vsub.f32 %v91, %v5115
    %5117 = vmatpush1.msra.mxu0 %v5116
    %5118 = vmatprep.subr.mxu0 0.0
    %v5119 = vand.u32 %v90, 4294901760
    %v5120 = vsub.f32 %v90, %v5119
    %5121 = vmatpush1.msra.mxu0 %v5120
    %5122 = vmatprep.subr.mxu0 0.0
    %v5123 = vand.u32 %v89, 4294901760
    %v5124 = vsub.f32 %v89, %v5123
    %5125 = vmatpush1.msra.mxu0 %v5124
    %5126 = vmatprep.subr.mxu0 0.0
    %v5127 = vand.u32 %v88, 4294901760
    %v5128 = vsub.f32 %v88, %v5127
    %5129 = vmatpush1.msra.mxu0 %v5128
    %5130 = vmatprep.subr.mxu0 0.0
    %v5131 = vand.u32 %v87, 4294901760
    %v5132 = vsub.f32 %v87, %v5131
    %5133 = vmatpush1.msra.mxu0 %v5132
    %5134 = vmatprep.subr.mxu0 0.0
    %v5135 = vand.u32 %v86, 4294901760
    %v5136 = vsub.f32 %v86, %v5135
    %5137 = vmatpush1.msra.mxu0 %v5136
    %5138 = vmatprep.subr.mxu0 0.0
    %v5139 = vand.u32 %v85, 4294901760
    %v5140 = vsub.f32 %v85, %v5139
    %5141 = vmatpush1.msra.mxu0 %v5140
    %5142 = vmatprep.subr.mxu0 0.0
    %v5143 = vand.u32 %v84, 4294901760
    %v5144 = vsub.f32 %v84, %v5143
    %5145 = vmatpush1.msra.mxu0 %v5144
    %5146 = vmatprep.subr.mxu0 0.0
    %v5147 = vand.u32 %v83, 4294901760
    %v5148 = vsub.f32 %v83, %v5147
    %5149 = vmatpush1.msra.mxu0 %v5148
    %5150 = vmatprep.subr.mxu0 0.0
    %v5151 = vand.u32 %v82, 4294901760
    %v5152 = vsub.f32 %v82, %v5151
    %5153 = vmatpush1.msra.mxu0 %v5152
    %5154 = vmatprep.subr.mxu0 0.0
    %v5155 = vand.u32 %v81, 4294901760
    %v5156 = vsub.f32 %v81, %v5155
    %5157 = vmatpush1.msra.mxu0 %v5156
    %5158 = vmatprep.subr.mxu0 0.0
    %v5159 = vand.u32 %v80, 4294901760
    %v5160 = vsub.f32 %v80, %v5159
    %5161 = vmatpush1.msra.mxu0 %v5160
    %5162 = vmatprep.subr.mxu0 0.0
    %v5163 = vand.u32 %v79, 4294901760
    %v5164 = vsub.f32 %v79, %v5163
    %5165 = vmatpush1.msra.mxu0 %v5164
    %5166 = vmatprep.subr.mxu0 0.0
    %v5167 = vand.u32 %v78, 4294901760
    %v5168 = vsub.f32 %v78, %v5167
    %5169 = vmatpush1.msra.mxu0 %v5168
    %5170 = vmatprep.subr.mxu0 0.0
    %v5171 = vand.u32 %v77, 4294901760
    %v5172 = vsub.f32 %v77, %v5171
    %5173 = vmatpush1.msra.mxu0 %v5172
    %5174 = vmatprep.subr.mxu0 0.0
    %5175 = vmatpush2.msra.mxu0 0.0
    %5176 = vmatprep.subr.mxu0 0.0
    %5177 = vmatpush2.msra.mxu0 0.0
    %5178 = vmatprep.subr.mxu0 0.0
    %5179 = vmatpush2.msra.mxu0 0.0
    %5180 = vmatprep.subr.mxu0 0.0
    %5181 = vmatpush2.msra.mxu0 0.0
    %5182 = vmatprep.subr.mxu0 0.0
    %5183 = vmatpush2.msra.mxu0 0.0
    %5184 = vmatprep.subr.mxu0 0.0
    %5185 = vmatpush2.msra.mxu0 0.0
    %5186 = vmatprep.subr.mxu0 0.0
    %5187 = vmatpush2.msra.mxu0 0.0
    %5188 = vmatprep.subr.mxu0 0.0
    %5189 = vmatpush2.msra.mxu0 0.0
    %5190 = vmatprep.subr.mxu0 0.0
    %5191 = vmatpush2.msra.mxu0 0.0
    %5192 = vmatprep.subr.mxu0 0.0
    %5193 = vmatpush2.msra.mxu0 0.0
    %5194 = vmatprep.subr.mxu0 0.0
    %5195 = vmatpush2.msra.mxu0 0.0
    %5196 = vmatprep.subr.mxu0 0.0
    %5197 = vmatpush2.msra.mxu0 0.0
    %5198 = vmatprep.subr.mxu0 0.0
    %5199 = vmatpush2.msra.mxu0 0.0
    %5200 = vmatprep.subr.mxu0 0.0
    %5201 = vmatpush2.msra.mxu0 0.0
    %5202 = vmatprep.subr.mxu0 0.0
    %5203 = vmatpush2.msra.mxu0 0.0
    %5204 = vmatprep.subr.mxu0 0.0
    %5205 = vmatpush2.msra.mxu0 0.0
    %5206 = vmatprep.mubr.f32.mxu0 0.0
    %v5207 = vand.u32 %v4850, 4294901760
    %v5208 = vsub.f32 %v4850, %v5207
    %5209 = vmatmul.mubr.f32.gmra.mxu0 %v5208
    %v5210 = vpop.f32.mrf.mxu0
    %v5211 = vadd.f32 %v5101, %v5210
    %v5212 = vpop.f32.mrf.mxu0
    %5213 = vmatprep.mubr.f32.mxu0 0.0
    %v5214 = vand.u32 %v4851, 4294901760
    %v5215 = vsub.f32 %v4851, %v5214
    %5216 = vmatmul.mubr.f32.gmra.mxu0 %v5215
    %v5217 = vpop.f32.mrf.mxu0
    %v5218 = vadd.f32 %v5107, %v5217
    %v5219 = vpop.f32.mrf.mxu0
    %5220 = vdwg.mxu0
    %5221 = vmatprep.subr.mxu0 0.0
    %v5222 = vand.u32 %v92, 4294901760
    %5223 = vmatpush1.msra.mxu0 %v5222
    %5224 = vmatprep.subr.mxu0 0.0
    %v5225 = vand.u32 %v91, 4294901760
    %5226 = vmatpush1.msra.mxu0 %v5225
    %5227 = vmatprep.subr.mxu0 0.0
    %v5228 = vand.u32 %v90, 4294901760
    %5229 = vmatpush1.msra.mxu0 %v5228
    %5230 = vmatprep.subr.mxu0 0.0
    %v5231 = vand.u32 %v89, 4294901760
    %5232 = vmatpush1.msra.mxu0 %v5231
    %5233 = vmatprep.subr.mxu0 0.0
    %v5234 = vand.u32 %v88, 4294901760
    %5235 = vmatpush1.msra.mxu0 %v5234
    %5236 = vmatprep.subr.mxu0 0.0
    %v5237 = vand.u32 %v87, 4294901760
    %5238 = vmatpush1.msra.mxu0 %v5237
    %5239 = vmatprep.subr.mxu0 0.0
    %v5240 = vand.u32 %v86, 4294901760
    %5241 = vmatpush1.msra.mxu0 %v5240
    %5242 = vmatprep.subr.mxu0 0.0
    %v5243 = vand.u32 %v85, 4294901760
    %5244 = vmatpush1.msra.mxu0 %v5243
    %5245 = vmatprep.subr.mxu0 0.0
    %v5246 = vand.u32 %v84, 4294901760
    %5247 = vmatpush1.msra.mxu0 %v5246
    %5248 = vmatprep.subr.mxu0 0.0
    %v5249 = vand.u32 %v83, 4294901760
    %5250 = vmatpush1.msra.mxu0 %v5249
    %5251 = vmatprep.subr.mxu0 0.0
    %v5252 = vand.u32 %v82, 4294901760
    %5253 = vmatpush1.msra.mxu0 %v5252
    %5254 = vmatprep.subr.mxu0 0.0
    %v5255 = vand.u32 %v81, 4294901760
    %5256 = vmatpush1.msra.mxu0 %v5255
    %5257 = vmatprep.subr.mxu0 0.0
    %v5258 = vand.u32 %v80, 4294901760
    %5259 = vmatpush1.msra.mxu0 %v5258
    %5260 = vmatprep.subr.mxu0 0.0
    %v5261 = vand.u32 %v79, 4294901760
    %5262 = vmatpush1.msra.mxu0 %v5261
    %5263 = vmatprep.subr.mxu0 0.0
    %v5264 = vand.u32 %v78, 4294901760
    %5265 = vmatpush1.msra.mxu0 %v5264
    %5266 = vmatprep.subr.mxu0 0.0
    %v5267 = vand.u32 %v77, 4294901760
    %5268 = vmatpush1.msra.mxu0 %v5267
    %5269 = vmatprep.subr.mxu0 0.0
    %5270 = vmatpush2.msra.mxu0 0.0
    %5271 = vmatprep.subr.mxu0 0.0
    %5272 = vmatpush2.msra.mxu0 0.0
    %5273 = vmatprep.subr.mxu0 0.0
    %5274 = vmatpush2.msra.mxu0 0.0
    %5275 = vmatprep.subr.mxu0 0.0
    %5276 = vmatpush2.msra.mxu0 0.0
    %5277 = vmatprep.subr.mxu0 0.0
    %5278 = vmatpush2.msra.mxu0 0.0
    %5279 = vmatprep.subr.mxu0 0.0
    %5280 = vmatpush2.msra.mxu0 0.0
    %5281 = vmatprep.subr.mxu0 0.0
    %5282 = vmatpush2.msra.mxu0 0.0
    %5283 = vmatprep.subr.mxu0 0.0
    %5284 = vmatpush2.msra.mxu0 0.0
    %5285 = vmatprep.subr.mxu0 0.0
    %5286 = vmatpush2.msra.mxu0 0.0
    %5287 = vmatprep.subr.mxu0 0.0
    %5288 = vmatpush2.msra.mxu0 0.0
    %5289 = vmatprep.subr.mxu0 0.0
    %5290 = vmatpush2.msra.mxu0 0.0
    %5291 = vmatprep.subr.mxu0 0.0
    %5292 = vmatpush2.msra.mxu0 0.0
    %5293 = vmatprep.subr.mxu0 0.0
    %5294 = vmatpush2.msra.mxu0 0.0
    %5295 = vmatprep.subr.mxu0 0.0
    %5296 = vmatpush2.msra.mxu0 0.0
    %5297 = vmatprep.subr.mxu0 0.0
    %5298 = vmatpush2.msra.mxu0 0.0
    %5299 = vmatprep.subr.mxu0 0.0
    %5300 = vmatpush2.msra.mxu0 0.0
    %5301 = vmatprep.mubr.f32.mxu0 0.0
    %v5302 = vand.u32 %v4850, 4294901760
    %v5303 = vsub.f32 %v4850, %v5302
    %v5304 = vand.u32 %v5303, 4294901760
    %5305 = vmatmul.mubr.f32.gmra.mxu0 %v5304
    %v5306 = vpop.f32.mrf.mxu0
    %v5307 = vadd.f32 %v5211, %v5306
    %v5308 = vpop.f32.mrf.mxu0
    %5309 = vmatprep.mubr.f32.mxu0 0.0
    %v5310 = vand.u32 %v4851, 4294901760
    %v5311 = vsub.f32 %v4851, %v5310
    %v5312 = vand.u32 %v5311, 4294901760
    %5313 = vmatmul.mubr.f32.gmra.mxu0 %v5312
    %v5314 = vpop.f32.mrf.mxu0
    %v5315 = vadd.f32 %v5218, %v5314
    %v5316 = vpop.f32.mrf.mxu0
    %5317 = vdwg.mxu0
    %5318 = vmatprep.subr.mxu0 0.0
    %v5319 = vand.u32 %v92, 4294901760
    %v5320 = vsub.f32 %v92, %v5319
    %v5321 = vand.u32 %v5320, 4294901760
    %5322 = vmatpush1.msra.mxu0 %v5321
    %5323 = vmatprep.subr.mxu0 0.0
    %v5324 = vand.u32 %v91, 4294901760
    %v5325 = vsub.f32 %v91, %v5324
    %v5326 = vand.u32 %v5325, 4294901760
    %5327 = vmatpush1.msra.mxu0 %v5326
    %5328 = vmatprep.subr.mxu0 0.0
    %v5329 = vand.u32 %v90, 4294901760
    %v5330 = vsub.f32 %v90, %v5329
    %v5331 = vand.u32 %v5330, 4294901760
    %5332 = vmatpush1.msra.mxu0 %v5331
    %5333 = vmatprep.subr.mxu0 0.0
    %v5334 = vand.u32 %v89, 4294901760
    %v5335 = vsub.f32 %v89, %v5334
    %v5336 = vand.u32 %v5335, 4294901760
    %5337 = vmatpush1.msra.mxu0 %v5336
    %5338 = vmatprep.subr.mxu0 0.0
    %v5339 = vand.u32 %v88, 4294901760
    %v5340 = vsub.f32 %v88, %v5339
    %v5341 = vand.u32 %v5340, 4294901760
    %5342 = vmatpush1.msra.mxu0 %v5341
    %5343 = vmatprep.subr.mxu0 0.0
    %v5344 = vand.u32 %v87, 4294901760
    %v5345 = vsub.f32 %v87, %v5344
    %v5346 = vand.u32 %v5345, 4294901760
    %5347 = vmatpush1.msra.mxu0 %v5346
    %5348 = vmatprep.subr.mxu0 0.0
    %v5349 = vand.u32 %v86, 4294901760
    %v5350 = vsub.f32 %v86, %v5349
    %v5351 = vand.u32 %v5350, 4294901760
    %5352 = vmatpush1.msra.mxu0 %v5351
    %5353 = vmatprep.subr.mxu0 0.0
    %v5354 = vand.u32 %v85, 4294901760
    %v5355 = vsub.f32 %v85, %v5354
    %v5356 = vand.u32 %v5355, 4294901760
    %5357 = vmatpush1.msra.mxu0 %v5356
    %5358 = vmatprep.subr.mxu0 0.0
    %v5359 = vand.u32 %v84, 4294901760
    %v5360 = vsub.f32 %v84, %v5359
    %v5361 = vand.u32 %v5360, 4294901760
    %5362 = vmatpush1.msra.mxu0 %v5361
    %5363 = vmatprep.subr.mxu0 0.0
    %v5364 = vand.u32 %v83, 4294901760
    %v5365 = vsub.f32 %v83, %v5364
    %v5366 = vand.u32 %v5365, 4294901760
    %5367 = vmatpush1.msra.mxu0 %v5366
    %5368 = vmatprep.subr.mxu0 0.0
    %v5369 = vand.u32 %v82, 4294901760
    %v5370 = vsub.f32 %v82, %v5369
    %v5371 = vand.u32 %v5370, 4294901760
    %5372 = vmatpush1.msra.mxu0 %v5371
    %5373 = vmatprep.subr.mxu0 0.0
    %v5374 = vand.u32 %v81, 4294901760
    %v5375 = vsub.f32 %v81, %v5374
    %v5376 = vand.u32 %v5375, 4294901760
    %5377 = vmatpush1.msra.mxu0 %v5376
    %5378 = vmatprep.subr.mxu0 0.0
    %v5379 = vand.u32 %v80, 4294901760
    %v5380 = vsub.f32 %v80, %v5379
    %v5381 = vand.u32 %v5380, 4294901760
    %5382 = vmatpush1.msra.mxu0 %v5381
    %5383 = vmatprep.subr.mxu0 0.0
    %v5384 = vand.u32 %v79, 4294901760
    %v5385 = vsub.f32 %v79, %v5384
    %v5386 = vand.u32 %v5385, 4294901760
    %5387 = vmatpush1.msra.mxu0 %v5386
    %5388 = vmatprep.subr.mxu0 0.0
    %v5389 = vand.u32 %v78, 4294901760
    %v5390 = vsub.f32 %v78, %v5389
    %v5391 = vand.u32 %v5390, 4294901760
    %5392 = vmatpush1.msra.mxu0 %v5391
    %5393 = vmatprep.subr.mxu0 0.0
    %v5394 = vand.u32 %v77, 4294901760
    %v5395 = vsub.f32 %v77, %v5394
    %v5396 = vand.u32 %v5395, 4294901760
    %5397 = vmatpush1.msra.mxu0 %v5396
    %5398 = vmatprep.subr.mxu0 0.0
    %5399 = vmatpush2.msra.mxu0 0.0
    %5400 = vmatprep.subr.mxu0 0.0
    %5401 = vmatpush2.msra.mxu0 0.0
    %5402 = vmatprep.subr.mxu0 0.0
    %5403 = vmatpush2.msra.mxu0 0.0
    %5404 = vmatprep.subr.mxu0 0.0
    %5405 = vmatpush2.msra.mxu0 0.0
    %5406 = vmatprep.subr.mxu0 0.0
    %5407 = vmatpush2.msra.mxu0 0.0
    %5408 = vmatprep.subr.mxu0 0.0
    %5409 = vmatpush2.msra.mxu0 0.0
    %5410 = vmatprep.subr.mxu0 0.0
    %5411 = vmatpush2.msra.mxu0 0.0
    %5412 = vmatprep.subr.mxu0 0.0
    %5413 = vmatpush2.msra.mxu0 0.0
    %5414 = vmatprep.subr.mxu0 0.0
    %5415 = vmatpush2.msra.mxu0 0.0
    %5416 = vmatprep.subr.mxu0 0.0
    %5417 = vmatpush2.msra.mxu0 0.0
    %5418 = vmatprep.subr.mxu0 0.0
    %5419 = vmatpush2.msra.mxu0 0.0
    %5420 = vmatprep.subr.mxu0 0.0
    %5421 = vmatpush2.msra.mxu0 0.0
    %5422 = vmatprep.subr.mxu0 0.0
    %5423 = vmatpush2.msra.mxu0 0.0
    %5424 = vmatprep.subr.mxu0 0.0
    %5425 = vmatpush2.msra.mxu0 0.0
    %5426 = vmatprep.subr.mxu0 0.0
    %5427 = vmatpush2.msra.mxu0 0.0
    %5428 = vmatprep.subr.mxu0 0.0
    %5429 = vmatpush2.msra.mxu0 0.0
    %5430 = vmatprep.mubr.f32.mxu0 0.0
    %v5431 = vand.u32 %v4850, 4294901760
    %5432 = vmatmul.mubr.f32.gmra.mxu0 %v5431
    %v5433 = vpop.f32.mrf.mxu0
    %v5434 = vadd.f32 %v5307, %v5433
    %v5435 = vpop.f32.mrf.mxu0
    %5436 = vmatprep.mubr.f32.mxu0 0.0
    %v5437 = vand.u32 %v4851, 4294901760
    %5438 = vmatmul.mubr.f32.gmra.mxu0 %v5437
    %v5439 = vpop.f32.mrf.mxu0
    %v5440 = vadd.f32 %v5315, %v5439
    %v5441 = vpop.f32.mrf.mxu0
    %5442 = vdwg.mxu0
    %5443 = vmatprep.subr.mxu0 0.0
    %v5444 = vand.u32 %v92, 4294901760
    %5445 = vmatpush1.msra.mxu0 %v5444
    %5446 = vmatprep.subr.mxu0 0.0
    %v5447 = vand.u32 %v91, 4294901760
    %5448 = vmatpush1.msra.mxu0 %v5447
    %5449 = vmatprep.subr.mxu0 0.0
    %v5450 = vand.u32 %v90, 4294901760
    %5451 = vmatpush1.msra.mxu0 %v5450
    %5452 = vmatprep.subr.mxu0 0.0
    %v5453 = vand.u32 %v89, 4294901760
    %5454 = vmatpush1.msra.mxu0 %v5453
    %5455 = vmatprep.subr.mxu0 0.0
    %v5456 = vand.u32 %v88, 4294901760
    %5457 = vmatpush1.msra.mxu0 %v5456
    %5458 = vmatprep.subr.mxu0 0.0
    %v5459 = vand.u32 %v87, 4294901760
    %5460 = vmatpush1.msra.mxu0 %v5459
    %5461 = vmatprep.subr.mxu0 0.0
    %v5462 = vand.u32 %v86, 4294901760
    %5463 = vmatpush1.msra.mxu0 %v5462
    %5464 = vmatprep.subr.mxu0 0.0
    %v5465 = vand.u32 %v85, 4294901760
    %5466 = vmatpush1.msra.mxu0 %v5465
    %5467 = vmatprep.subr.mxu0 0.0
    %v5468 = vand.u32 %v84, 4294901760
    %5469 = vmatpush1.msra.mxu0 %v5468
    %5470 = vmatprep.subr.mxu0 0.0
    %v5471 = vand.u32 %v83, 4294901760
    %5472 = vmatpush1.msra.mxu0 %v5471
    %5473 = vmatprep.subr.mxu0 0.0
    %v5474 = vand.u32 %v82, 4294901760
    %5475 = vmatpush1.msra.mxu0 %v5474
    %5476 = vmatprep.subr.mxu0 0.0
    %v5477 = vand.u32 %v81, 4294901760
    %5478 = vmatpush1.msra.mxu0 %v5477
    %5479 = vmatprep.subr.mxu0 0.0
    %v5480 = vand.u32 %v80, 4294901760
    %5481 = vmatpush1.msra.mxu0 %v5480
    %5482 = vmatprep.subr.mxu0 0.0
    %v5483 = vand.u32 %v79, 4294901760
    %5484 = vmatpush1.msra.mxu0 %v5483
    %5485 = vmatprep.subr.mxu0 0.0
    %v5486 = vand.u32 %v78, 4294901760
    %5487 = vmatpush1.msra.mxu0 %v5486
    %5488 = vmatprep.subr.mxu0 0.0
    %v5489 = vand.u32 %v77, 4294901760
    %5490 = vmatpush1.msra.mxu0 %v5489
    %5491 = vmatprep.subr.mxu0 0.0
    %5492 = vmatpush2.msra.mxu0 0.0
    %5493 = vmatprep.subr.mxu0 0.0
    %5494 = vmatpush2.msra.mxu0 0.0
    %5495 = vmatprep.subr.mxu0 0.0
    %5496 = vmatpush2.msra.mxu0 0.0
    %5497 = vmatprep.subr.mxu0 0.0
    %5498 = vmatpush2.msra.mxu0 0.0
    %5499 = vmatprep.subr.mxu0 0.0
    %5500 = vmatpush2.msra.mxu0 0.0
    %5501 = vmatprep.subr.mxu0 0.0
    %5502 = vmatpush2.msra.mxu0 0.0
    %5503 = vmatprep.subr.mxu0 0.0
    %5504 = vmatpush2.msra.mxu0 0.0
    %5505 = vmatprep.subr.mxu0 0.0
    %5506 = vmatpush2.msra.mxu0 0.0
    %5507 = vmatprep.subr.mxu0 0.0
    %5508 = vmatpush2.msra.mxu0 0.0
    %5509 = vmatprep.subr.mxu0 0.0
    %5510 = vmatpush2.msra.mxu0 0.0
    %5511 = vmatprep.subr.mxu0 0.0
    %5512 = vmatpush2.msra.mxu0 0.0
    %5513 = vmatprep.subr.mxu0 0.0
    %5514 = vmatpush2.msra.mxu0 0.0
    %5515 = vmatprep.subr.mxu0 0.0
    %5516 = vmatpush2.msra.mxu0 0.0
    %5517 = vmatprep.subr.mxu0 0.0
    %5518 = vmatpush2.msra.mxu0 0.0
    %5519 = vmatprep.subr.mxu0 0.0
    %5520 = vmatpush2.msra.mxu0 0.0
    %5521 = vmatprep.subr.mxu0 0.0
    %5522 = vmatpush2.msra.mxu0 0.0
    %5523 = vmatprep.mubr.f32.mxu0 0.0
    %v5524 = vand.u32 %v4850, 4294901760
    %5525 = vmatmul.mubr.f32.gmra.mxu0 %v5524
    %v5526 = vpop.f32.mrf.mxu0
    %v5527 = vadd.f32 %v5434, %v5526
    %v5528 = vpop.f32.mrf.mxu0
    %5529 = vmatprep.mubr.f32.mxu0 0.0
    %v5530 = vand.u32 %v4851, 4294901760
    %5531 = vmatmul.mubr.f32.gmra.mxu0 %v5530
    %v5532 = vpop.f32.mrf.mxu0
    %v5533 = vadd.f32 %v5440, %v5532
    %v5534 = vpop.f32.mrf.mxu0
    %5535 = vdwg.mxu0
    %5536 = vmatprep.subr.mxu0 0.0
    %5537 = vmatpush1.msra.mxu0 0.0
    %5538 = vmatprep.subr.mxu0 0.0
    %5539 = vmatpush1.msra.mxu0 0.0
    %5540 = vmatprep.subr.mxu0 0.0
    %5541 = vmatpush1.msra.mxu0 0.0
    %5542 = vmatprep.subr.mxu0 0.0
    %5543 = vmatpush1.msra.mxu0 0.0
    %5544 = vmatprep.subr.mxu0 0.0
    %5545 = vmatpush1.msra.mxu0 0.0
    %5546 = vmatprep.subr.mxu0 0.0
    %5547 = vmatpush1.msra.mxu0 0.0
    %5548 = vmatprep.subr.mxu0 0.0
    %5549 = vmatpush1.msra.mxu0 0.0
    %5550 = vmatprep.subr.mxu0 0.0
    %5551 = vmatpush1.msra.mxu0 0.0
    %5552 = vmatprep.subr.mxu0 0.0
    %5553 = vmatpush1.msra.mxu0 0.0
    %5554 = vmatprep.subr.mxu0 0.0
    %5555 = vmatpush1.msra.mxu0 0.0
    %5556 = vmatprep.subr.mxu0 0.0
    %5557 = vmatpush1.msra.mxu0 0.0
    %5558 = vmatprep.subr.mxu0 0.0
    %5559 = vmatpush1.msra.mxu0 0.0
    %5560 = vmatprep.subr.mxu0 0.0
    %5561 = vmatpush1.msra.mxu0 0.0
    %5562 = vmatprep.subr.mxu0 0.0
    %5563 = vmatpush1.msra.mxu0 0.0
    %5564 = vmatprep.subr.mxu0 0.0
    %v5565 = vand.u32 %v5533, 4294901760
    %5566 = vmatpush1.msra.mxu0 %v5565
    %5567 = vmatprep.subr.mxu0 0.0
    %v5568 = vand.u32 %v5527, 4294901760
    %5569 = vmatpush1.msra.mxu0 %v5568
    %5570 = vmatprep.subr.mxu0 0.0
    %5571 = vmatpush2.msra.mxu0 0.0
    %5572 = vmatprep.subr.mxu0 0.0
    %5573 = vmatpush2.msra.mxu0 0.0
    %5574 = vmatprep.subr.mxu0 0.0
    %5575 = vmatpush2.msra.mxu0 0.0
    %5576 = vmatprep.subr.mxu0 0.0
    %5577 = vmatpush2.msra.mxu0 0.0
    %5578 = vmatprep.subr.mxu0 0.0
    %5579 = vmatpush2.msra.mxu0 0.0
    %5580 = vmatprep.subr.mxu0 0.0
    %5581 = vmatpush2.msra.mxu0 0.0
    %5582 = vmatprep.subr.mxu0 0.0
    %5583 = vmatpush2.msra.mxu0 0.0
    %5584 = vmatprep.subr.mxu0 0.0
    %5585 = vmatpush2.msra.mxu0 0.0
    %5586 = vmatprep.subr.mxu0 0.0
    %5587 = vmatpush2.msra.mxu0 0.0
    %5588 = vmatprep.subr.mxu0 0.0
    %5589 = vmatpush2.msra.mxu0 0.0
    %5590 = vmatprep.subr.mxu0 0.0
    %5591 = vmatpush2.msra.mxu0 0.0
    %5592 = vmatprep.subr.mxu0 0.0
    %5593 = vmatpush2.msra.mxu0 0.0
    %5594 = vmatprep.subr.mxu0 0.0
    %5595 = vmatpush2.msra.mxu0 0.0
    %5596 = vmatprep.subr.mxu0 0.0
    %5597 = vmatpush2.msra.mxu0 0.0
    %5598 = vmatprep.subr.mxu0 0.0
    %5599 = vmatpush2.msra.mxu0 0.0
    %5600 = vmatprep.subr.mxu0 0.0
    %5601 = vmatpush2.msra.mxu0 0.0
    %5602 = vmatprep.mubr.f32.mxu0 0.0
    %v5603 = vand.u32 %v781, 4294901760
    %v5604 = vsub.f32 %v781, %v5603
    %v5605 = vand.u32 %v5604, 4294901760
    %v5606 = vsub.f32 %v5604, %v5605
    %v5607 = vand.u32 %v5606, 4294901760
    %5608 = vmatmul.mubr.f32.gmra.mxu0 %v5607
    %v5609 = vpop.f32.mrf.mxu0
    %v5610 = vadd.f32 0.0, %v5609
    %v5611 = vpop.f32.mrf.mxu0
    %5612 = vmatprep.mubr.f32.mxu0 0.0
    %v5613 = vand.u32 %v784, 4294901760
    %v5614 = vsub.f32 %v784, %v5613
    %v5615 = vand.u32 %v5614, 4294901760
    %v5616 = vsub.f32 %v5614, %v5615
    %v5617 = vand.u32 %v5616, 4294901760
    %5618 = vmatmul.mubr.f32.gmra.mxu0 %v5617
    %v5619 = vpop.f32.mrf.mxu0
    %v5620 = vadd.f32 0.0, %v5619
    %v5621 = vpop.f32.mrf.mxu0
    %5622 = vdwg.mxu0
    %5623 = vmatprep.subr.mxu0 0.0
    %5624 = vmatpush1.msra.mxu0 0.0
    %5625 = vmatprep.subr.mxu0 0.0
    %5626 = vmatpush1.msra.mxu0 0.0
    %5627 = vmatprep.subr.mxu0 0.0
    %5628 = vmatpush1.msra.mxu0 0.0
    %5629 = vmatprep.subr.mxu0 0.0
    %5630 = vmatpush1.msra.mxu0 0.0
    %5631 = vmatprep.subr.mxu0 0.0
    %5632 = vmatpush1.msra.mxu0 0.0
    %5633 = vmatprep.subr.mxu0 0.0
    %5634 = vmatpush1.msra.mxu0 0.0
    %5635 = vmatprep.subr.mxu0 0.0
    %5636 = vmatpush1.msra.mxu0 0.0
    %5637 = vmatprep.subr.mxu0 0.0
    %5638 = vmatpush1.msra.mxu0 0.0
    %5639 = vmatprep.subr.mxu0 0.0
    %5640 = vmatpush1.msra.mxu0 0.0
    %5641 = vmatprep.subr.mxu0 0.0
    %5642 = vmatpush1.msra.mxu0 0.0
    %5643 = vmatprep.subr.mxu0 0.0
    %5644 = vmatpush1.msra.mxu0 0.0
    %5645 = vmatprep.subr.mxu0 0.0
    %5646 = vmatpush1.msra.mxu0 0.0
    %5647 = vmatprep.subr.mxu0 0.0
    %5648 = vmatpush1.msra.mxu0 0.0
    %5649 = vmatprep.subr.mxu0 0.0
    %5650 = vmatpush1.msra.mxu0 0.0
    %5651 = vmatprep.subr.mxu0 0.0
    %v5652 = vand.u32 %v5533, 4294901760
    %v5653 = vsub.f32 %v5533, %v5652
    %v5654 = vand.u32 %v5653, 4294901760
    %v5655 = vsub.f32 %v5653, %v5654
    %v5656 = vand.u32 %v5655, 4294901760
    %5657 = vmatpush1.msra.mxu0 %v5656
    %5658 = vmatprep.subr.mxu0 0.0
    %v5659 = vand.u32 %v5527, 4294901760
    %v5660 = vsub.f32 %v5527, %v5659
    %v5661 = vand.u32 %v5660, 4294901760
    %v5662 = vsub.f32 %v5660, %v5661
    %v5663 = vand.u32 %v5662, 4294901760
    %5664 = vmatpush1.msra.mxu0 %v5663
    %5665 = vmatprep.subr.mxu0 0.0
    %5666 = vmatpush2.msra.mxu0 0.0
    %5667 = vmatprep.subr.mxu0 0.0
    %5668 = vmatpush2.msra.mxu0 0.0
    %5669 = vmatprep.subr.mxu0 0.0
    %5670 = vmatpush2.msra.mxu0 0.0
    %5671 = vmatprep.subr.mxu0 0.0
    %5672 = vmatpush2.msra.mxu0 0.0
    %5673 = vmatprep.subr.mxu0 0.0
    %5674 = vmatpush2.msra.mxu0 0.0
    %5675 = vmatprep.subr.mxu0 0.0
    %5676 = vmatpush2.msra.mxu0 0.0
    %5677 = vmatprep.subr.mxu0 0.0
    %5678 = vmatpush2.msra.mxu0 0.0
    %5679 = vmatprep.subr.mxu0 0.0
    %5680 = vmatpush2.msra.mxu0 0.0
    %5681 = vmatprep.subr.mxu0 0.0
    %5682 = vmatpush2.msra.mxu0 0.0
    %5683 = vmatprep.subr.mxu0 0.0
    %5684 = vmatpush2.msra.mxu0 0.0
    %5685 = vmatprep.subr.mxu0 0.0
    %5686 = vmatpush2.msra.mxu0 0.0
    %5687 = vmatprep.subr.mxu0 0.0
    %5688 = vmatpush2.msra.mxu0 0.0
    %5689 = vmatprep.subr.mxu0 0.0
    %5690 = vmatpush2.msra.mxu0 0.0
    %5691 = vmatprep.subr.mxu0 0.0
    %5692 = vmatpush2.msra.mxu0 0.0
    %5693 = vmatprep.subr.mxu0 0.0
    %5694 = vmatpush2.msra.mxu0 0.0
    %5695 = vmatprep.subr.mxu0 0.0
    %5696 = vmatpush2.msra.mxu0 0.0
    %5697 = vmatprep.mubr.f32.mxu0 0.0
    %v5698 = vand.u32 %v781, 4294901760
    %5699 = vmatmul.mubr.f32.gmra.mxu0 %v5698
    %v5700 = vpop.f32.mrf.mxu0
    %v5701 = vadd.f32 %v5610, %v5700
    %v5702 = vpop.f32.mrf.mxu0
    %5703 = vmatprep.mubr.f32.mxu0 0.0
    %v5704 = vand.u32 %v784, 4294901760
    %5705 = vmatmul.mubr.f32.gmra.mxu0 %v5704
    %v5706 = vpop.f32.mrf.mxu0
    %v5707 = vadd.f32 %v5620, %v5706
    %v5708 = vpop.f32.mrf.mxu0
    %5709 = vdwg.mxu0
    %5710 = vmatprep.subr.mxu0 0.0
    %5711 = vmatpush1.msra.mxu0 0.0
    %5712 = vmatprep.subr.mxu0 0.0
    %5713 = vmatpush1.msra.mxu0 0.0
    %5714 = vmatprep.subr.mxu0 0.0
    %5715 = vmatpush1.msra.mxu0 0.0
    %5716 = vmatprep.subr.mxu0 0.0
    %5717 = vmatpush1.msra.mxu0 0.0
    %5718 = vmatprep.subr.mxu0 0.0
    %5719 = vmatpush1.msra.mxu0 0.0
    %5720 = vmatprep.subr.mxu0 0.0
    %5721 = vmatpush1.msra.mxu0 0.0
    %5722 = vmatprep.subr.mxu0 0.0
    %5723 = vmatpush1.msra.mxu0 0.0
    %5724 = vmatprep.subr.mxu0 0.0
    %5725 = vmatpush1.msra.mxu0 0.0
    %5726 = vmatprep.subr.mxu0 0.0
    %5727 = vmatpush1.msra.mxu0 0.0
    %5728 = vmatprep.subr.mxu0 0.0
    %5729 = vmatpush1.msra.mxu0 0.0
    %5730 = vmatprep.subr.mxu0 0.0
    %5731 = vmatpush1.msra.mxu0 0.0
    %5732 = vmatprep.subr.mxu0 0.0
    %5733 = vmatpush1.msra.mxu0 0.0
    %5734 = vmatprep.subr.mxu0 0.0
    %5735 = vmatpush1.msra.mxu0 0.0
    %5736 = vmatprep.subr.mxu0 0.0
    %5737 = vmatpush1.msra.mxu0 0.0
    %5738 = vmatprep.subr.mxu0 0.0
    %v5739 = vand.u32 %v5533, 4294901760
    %v5740 = vsub.f32 %v5533, %v5739
    %5741 = vmatpush1.msra.mxu0 %v5740
    %5742 = vmatprep.subr.mxu0 0.0
    %v5743 = vand.u32 %v5527, 4294901760
    %v5744 = vsub.f32 %v5527, %v5743
    %5745 = vmatpush1.msra.mxu0 %v5744
    %5746 = vmatprep.subr.mxu0 0.0
    %5747 = vmatpush2.msra.mxu0 0.0
    %5748 = vmatprep.subr.mxu0 0.0
    %5749 = vmatpush2.msra.mxu0 0.0
    %5750 = vmatprep.subr.mxu0 0.0
    %5751 = vmatpush2.msra.mxu0 0.0
    %5752 = vmatprep.subr.mxu0 0.0
    %5753 = vmatpush2.msra.mxu0 0.0
    %5754 = vmatprep.subr.mxu0 0.0
    %5755 = vmatpush2.msra.mxu0 0.0
    %5756 = vmatprep.subr.mxu0 0.0
    %5757 = vmatpush2.msra.mxu0 0.0
    %5758 = vmatprep.subr.mxu0 0.0
    %5759 = vmatpush2.msra.mxu0 0.0
    %5760 = vmatprep.subr.mxu0 0.0
    %5761 = vmatpush2.msra.mxu0 0.0
    %5762 = vmatprep.subr.mxu0 0.0
    %5763 = vmatpush2.msra.mxu0 0.0
    %5764 = vmatprep.subr.mxu0 0.0
    %5765 = vmatpush2.msra.mxu0 0.0
    %5766 = vmatprep.subr.mxu0 0.0
    %5767 = vmatpush2.msra.mxu0 0.0
    %5768 = vmatprep.subr.mxu0 0.0
    %5769 = vmatpush2.msra.mxu0 0.0
    %5770 = vmatprep.subr.mxu0 0.0
    %5771 = vmatpush2.msra.mxu0 0.0
    %5772 = vmatprep.subr.mxu0 0.0
    %5773 = vmatpush2.msra.mxu0 0.0
    %5774 = vmatprep.subr.mxu0 0.0
    %5775 = vmatpush2.msra.mxu0 0.0
    %5776 = vmatprep.subr.mxu0 0.0
    %5777 = vmatpush2.msra.mxu0 0.0
    %5778 = vmatprep.mubr.f32.mxu0 0.0
    %v5779 = vand.u32 %v781, 4294901760
    %v5780 = vsub.f32 %v781, %v5779
    %5781 = vmatmul.mubr.f32.gmra.mxu0 %v5780
    %v5782 = vpop.f32.mrf.mxu0
    %v5783 = vadd.f32 %v5701, %v5782
    %v5784 = vpop.f32.mrf.mxu0
    %5785 = vmatprep.mubr.f32.mxu0 0.0
    %v5786 = vand.u32 %v784, 4294901760
    %v5787 = vsub.f32 %v784, %v5786
    %5788 = vmatmul.mubr.f32.gmra.mxu0 %v5787
    %v5789 = vpop.f32.mrf.mxu0
    %v5790 = vadd.f32 %v5707, %v5789
    %v5791 = vpop.f32.mrf.mxu0
    %5792 = vdwg.mxu0
    %5793 = vmatprep.subr.mxu0 0.0
    %5794 = vmatpush1.msra.mxu0 0.0
    %5795 = vmatprep.subr.mxu0 0.0
    %5796 = vmatpush1.msra.mxu0 0.0
    %5797 = vmatprep.subr.mxu0 0.0
    %5798 = vmatpush1.msra.mxu0 0.0
    %5799 = vmatprep.subr.mxu0 0.0
    %5800 = vmatpush1.msra.mxu0 0.0
    %5801 = vmatprep.subr.mxu0 0.0
    %5802 = vmatpush1.msra.mxu0 0.0
    %5803 = vmatprep.subr.mxu0 0.0
    %5804 = vmatpush1.msra.mxu0 0.0
    %5805 = vmatprep.subr.mxu0 0.0
    %5806 = vmatpush1.msra.mxu0 0.0
    %5807 = vmatprep.subr.mxu0 0.0
    %5808 = vmatpush1.msra.mxu0 0.0
    %5809 = vmatprep.subr.mxu0 0.0
    %5810 = vmatpush1.msra.mxu0 0.0
    %5811 = vmatprep.subr.mxu0 0.0
    %5812 = vmatpush1.msra.mxu0 0.0
    %5813 = vmatprep.subr.mxu0 0.0
    %5814 = vmatpush1.msra.mxu0 0.0
    %5815 = vmatprep.subr.mxu0 0.0
    %5816 = vmatpush1.msra.mxu0 0.0
    %5817 = vmatprep.subr.mxu0 0.0
    %5818 = vmatpush1.msra.mxu0 0.0
    %5819 = vmatprep.subr.mxu0 0.0
    %5820 = vmatpush1.msra.mxu0 0.0
    %5821 = vmatprep.subr.mxu0 0.0
    %v5822 = vand.u32 %v5533, 4294901760
    %5823 = vmatpush1.msra.mxu0 %v5822
    %5824 = vmatprep.subr.mxu0 0.0
    %v5825 = vand.u32 %v5527, 4294901760
    %5826 = vmatpush1.msra.mxu0 %v5825
    %5827 = vmatprep.subr.mxu0 0.0
    %5828 = vmatpush2.msra.mxu0 0.0
    %5829 = vmatprep.subr.mxu0 0.0
    %5830 = vmatpush2.msra.mxu0 0.0
    %5831 = vmatprep.subr.mxu0 0.0
    %5832 = vmatpush2.msra.mxu0 0.0
    %5833 = vmatprep.subr.mxu0 0.0
    %5834 = vmatpush2.msra.mxu0 0.0
    %5835 = vmatprep.subr.mxu0 0.0
    %5836 = vmatpush2.msra.mxu0 0.0
    %5837 = vmatprep.subr.mxu0 0.0
    %5838 = vmatpush2.msra.mxu0 0.0
    %5839 = vmatprep.subr.mxu0 0.0
    %5840 = vmatpush2.msra.mxu0 0.0
    %5841 = vmatprep.subr.mxu0 0.0
    %5842 = vmatpush2.msra.mxu0 0.0
    %5843 = vmatprep.subr.mxu0 0.0
    %5844 = vmatpush2.msra.mxu0 0.0
    %5845 = vmatprep.subr.mxu0 0.0
    %5846 = vmatpush2.msra.mxu0 0.0
    %5847 = vmatprep.subr.mxu0 0.0
    %5848 = vmatpush2.msra.mxu0 0.0
    %5849 = vmatprep.subr.mxu0 0.0
    %5850 = vmatpush2.msra.mxu0 0.0
    %5851 = vmatprep.subr.mxu0 0.0
    %5852 = vmatpush2.msra.mxu0 0.0
    %5853 = vmatprep.subr.mxu0 0.0
    %5854 = vmatpush2.msra.mxu0 0.0
    %5855 = vmatprep.subr.mxu0 0.0
    %5856 = vmatpush2.msra.mxu0 0.0
    %5857 = vmatprep.subr.mxu0 0.0
    %5858 = vmatpush2.msra.mxu0 0.0
    %5859 = vmatprep.mubr.f32.mxu0 0.0
    %v5860 = vand.u32 %v781, 4294901760
    %v5861 = vsub.f32 %v781, %v5860
    %v5862 = vand.u32 %v5861, 4294901760
    %5863 = vmatmul.mubr.f32.gmra.mxu0 %v5862
    %v5864 = vpop.f32.mrf.mxu0
    %v5865 = vadd.f32 %v5783, %v5864
    %v5866 = vpop.f32.mrf.mxu0
    %5867 = vmatprep.mubr.f32.mxu0 0.0
    %v5868 = vand.u32 %v784, 4294901760
    %v5869 = vsub.f32 %v784, %v5868
    %v5870 = vand.u32 %v5869, 4294901760
    %5871 = vmatmul.mubr.f32.gmra.mxu0 %v5870
    %v5872 = vpop.f32.mrf.mxu0
    %v5873 = vadd.f32 %v5790, %v5872
    %v5874 = vpop.f32.mrf.mxu0
    %5875 = vdwg.mxu0
    %5876 = vmatprep.subr.mxu0 0.0
    %5877 = vmatpush1.msra.mxu0 0.0
    %5878 = vmatprep.subr.mxu0 0.0
    %5879 = vmatpush1.msra.mxu0 0.0
    %5880 = vmatprep.subr.mxu0 0.0
    %5881 = vmatpush1.msra.mxu0 0.0
    %5882 = vmatprep.subr.mxu0 0.0
    %5883 = vmatpush1.msra.mxu0 0.0
    %5884 = vmatprep.subr.mxu0 0.0
    %5885 = vmatpush1.msra.mxu0 0.0
    %5886 = vmatprep.subr.mxu0 0.0
    %5887 = vmatpush1.msra.mxu0 0.0
    %5888 = vmatprep.subr.mxu0 0.0
    %5889 = vmatpush1.msra.mxu0 0.0
    %5890 = vmatprep.subr.mxu0 0.0
    %5891 = vmatpush1.msra.mxu0 0.0
    %5892 = vmatprep.subr.mxu0 0.0
    %5893 = vmatpush1.msra.mxu0 0.0
    %5894 = vmatprep.subr.mxu0 0.0
    %5895 = vmatpush1.msra.mxu0 0.0
    %5896 = vmatprep.subr.mxu0 0.0
    %5897 = vmatpush1.msra.mxu0 0.0
    %5898 = vmatprep.subr.mxu0 0.0
    %5899 = vmatpush1.msra.mxu0 0.0
    %5900 = vmatprep.subr.mxu0 0.0
    %5901 = vmatpush1.msra.mxu0 0.0
    %5902 = vmatprep.subr.mxu0 0.0
    %5903 = vmatpush1.msra.mxu0 0.0
    %5904 = vmatprep.subr.mxu0 0.0
    %v5905 = vand.u32 %v5533, 4294901760
    %v5906 = vsub.f32 %v5533, %v5905
    %v5907 = vand.u32 %v5906, 4294901760
    %5908 = vmatpush1.msra.mxu0 %v5907
    %5909 = vmatprep.subr.mxu0 0.0
    %v5910 = vand.u32 %v5527, 4294901760
    %v5911 = vsub.f32 %v5527, %v5910
    %v5912 = vand.u32 %v5911, 4294901760
    %5913 = vmatpush1.msra.mxu0 %v5912
    %5914 = vmatprep.subr.mxu0 0.0
    %5915 = vmatpush2.msra.mxu0 0.0
    %5916 = vmatprep.subr.mxu0 0.0
    %5917 = vmatpush2.msra.mxu0 0.0
    %5918 = vmatprep.subr.mxu0 0.0
    %5919 = vmatpush2.msra.mxu0 0.0
    %5920 = vmatprep.subr.mxu0 0.0
    %5921 = vmatpush2.msra.mxu0 0.0
    %5922 = vmatprep.subr.mxu0 0.0
    %5923 = vmatpush2.msra.mxu0 0.0
    %5924 = vmatprep.subr.mxu0 0.0
    %5925 = vmatpush2.msra.mxu0 0.0
    %5926 = vmatprep.subr.mxu0 0.0
    %5927 = vmatpush2.msra.mxu0 0.0
    %5928 = vmatprep.subr.mxu0 0.0
    %5929 = vmatpush2.msra.mxu0 0.0
    %5930 = vmatprep.subr.mxu0 0.0
    %5931 = vmatpush2.msra.mxu0 0.0
    %5932 = vmatprep.subr.mxu0 0.0
    %5933 = vmatpush2.msra.mxu0 0.0
    %5934 = vmatprep.subr.mxu0 0.0
    %5935 = vmatpush2.msra.mxu0 0.0
    %5936 = vmatprep.subr.mxu0 0.0
    %5937 = vmatpush2.msra.mxu0 0.0
    %5938 = vmatprep.subr.mxu0 0.0
    %5939 = vmatpush2.msra.mxu0 0.0
    %5940 = vmatprep.subr.mxu0 0.0
    %5941 = vmatpush2.msra.mxu0 0.0
    %5942 = vmatprep.subr.mxu0 0.0
    %5943 = vmatpush2.msra.mxu0 0.0
    %5944 = vmatprep.subr.mxu0 0.0
    %5945 = vmatpush2.msra.mxu0 0.0
    %5946 = vmatprep.mubr.f32.mxu0 0.0
    %v5947 = vand.u32 %v781, 4294901760
    %5948 = vmatmul.mubr.f32.gmra.mxu0 %v5947
    %v5949 = vpop.f32.mrf.mxu0
    %v5950 = vadd.f32 %v5865, %v5949
    %v5951 = vpop.f32.mrf.mxu0
    %5952 = vmatprep.mubr.f32.mxu0 0.0
    %v5953 = vand.u32 %v784, 4294901760
    %5954 = vmatmul.mubr.f32.gmra.mxu0 %v5953
    %v5955 = vpop.f32.mrf.mxu0
    %v5956 = vadd.f32 %v5873, %v5955
    %v5957 = vpop.f32.mrf.mxu0
    %5958 = vdwg.mxu0
    %5959 = vmatprep.subr.mxu0 0.0
    %5960 = vmatpush1.msra.mxu0 0.0
    %5961 = vmatprep.subr.mxu0 0.0
    %5962 = vmatpush1.msra.mxu0 0.0
    %5963 = vmatprep.subr.mxu0 0.0
    %5964 = vmatpush1.msra.mxu0 0.0
    %5965 = vmatprep.subr.mxu0 0.0
    %5966 = vmatpush1.msra.mxu0 0.0
    %5967 = vmatprep.subr.mxu0 0.0
    %5968 = vmatpush1.msra.mxu0 0.0
    %5969 = vmatprep.subr.mxu0 0.0
    %5970 = vmatpush1.msra.mxu0 0.0
    %5971 = vmatprep.subr.mxu0 0.0
    %5972 = vmatpush1.msra.mxu0 0.0
    %5973 = vmatprep.subr.mxu0 0.0
    %5974 = vmatpush1.msra.mxu0 0.0
    %5975 = vmatprep.subr.mxu0 0.0
    %5976 = vmatpush1.msra.mxu0 0.0
    %5977 = vmatprep.subr.mxu0 0.0
    %5978 = vmatpush1.msra.mxu0 0.0
    %5979 = vmatprep.subr.mxu0 0.0
    %5980 = vmatpush1.msra.mxu0 0.0
    %5981 = vmatprep.subr.mxu0 0.0
    %5982 = vmatpush1.msra.mxu0 0.0
    %5983 = vmatprep.subr.mxu0 0.0
    %5984 = vmatpush1.msra.mxu0 0.0
    %5985 = vmatprep.subr.mxu0 0.0
    %5986 = vmatpush1.msra.mxu0 0.0
    %5987 = vmatprep.subr.mxu0 0.0
    %v5988 = vand.u32 %v5533, 4294901760
    %5989 = vmatpush1.msra.mxu0 %v5988
    %5990 = vmatprep.subr.mxu0 0.0
    %v5991 = vand.u32 %v5527, 4294901760
    %5992 = vmatpush1.msra.mxu0 %v5991
    %5993 = vmatprep.subr.mxu0 0.0
    %5994 = vmatpush2.msra.mxu0 0.0
    %5995 = vmatprep.subr.mxu0 0.0
    %5996 = vmatpush2.msra.mxu0 0.0
    %5997 = vmatprep.subr.mxu0 0.0
    %5998 = vmatpush2.msra.mxu0 0.0
    %5999 = vmatprep.subr.mxu0 0.0
    %6000 = vmatpush2.msra.mxu0 0.0
    %6001 = vmatprep.subr.mxu0 0.0
    %6002 = vmatpush2.msra.mxu0 0.0
    %6003 = vmatprep.subr.mxu0 0.0
    %6004 = vmatpush2.msra.mxu0 0.0
    %6005 = vmatprep.subr.mxu0 0.0
    %6006 = vmatpush2.msra.mxu0 0.0
    %6007 = vmatprep.subr.mxu0 0.0
    %6008 = vmatpush2.msra.mxu0 0.0
    %6009 = vmatprep.subr.mxu0 0.0
    %6010 = vmatpush2.msra.mxu0 0.0
    %6011 = vmatprep.subr.mxu0 0.0
    %6012 = vmatpush2.msra.mxu0 0.0
    %6013 = vmatprep.subr.mxu0 0.0
    %6014 = vmatpush2.msra.mxu0 0.0
    %6015 = vmatprep.subr.mxu0 0.0
    %6016 = vmatpush2.msra.mxu0 0.0
    %6017 = vmatprep.subr.mxu0 0.0
    %6018 = vmatpush2.msra.mxu0 0.0
    %6019 = vmatprep.subr.mxu0 0.0
    %6020 = vmatpush2.msra.mxu0 0.0
    %6021 = vmatprep.subr.mxu0 0.0
    %6022 = vmatpush2.msra.mxu0 0.0
    %6023 = vmatprep.subr.mxu0 0.0
    %6024 = vmatpush2.msra.mxu0 0.0
    %6025 = vmatprep.mubr.f32.mxu0 0.0
    %v6026 = vand.u32 %v781, 4294901760
    %6027 = vmatmul.mubr.f32.gmra.mxu0 %v6026
    %v6028 = vpop.f32.mrf.mxu0
    %v6029 = vadd.f32 %v5950, %v6028
    %v6030 = vpop.f32.mrf.mxu0
    %6031 = vmatprep.mubr.f32.mxu0 0.0
    %v6032 = vand.u32 %v784, 4294901760
    %6033 = vmatmul.mubr.f32.gmra.mxu0 %v6032
    %v6034 = vpop.f32.mrf.mxu0
    %v6035 = vadd.f32 %v5956, %v6034
    %v6036 = vpop.f32.mrf.mxu0
    %6037 = vdwg.mxu0
    %v6038 = vmul.f32 %v1279, %v1279
    %v6039 = vmul.f32 %v1285, %v1285
    %v6040 = vmul.f32 %v2465, %v2465
    %v6041 = vmul.f32 %v2471, %v2471
    %v6042 = vmul.f32 %v1279, %v2465
    %v6043 = vmul.f32 %v1285, %v2471
    %v6044 = vsub.f32 %v3653, %v6038
    %v6045 = vsub.f32 %v3659, %v6039
    %v6046 = vsub.f32 %v4841, %v6040
    %v6047 = vsub.f32 %v4847, %v6041
    %v6048 = vsub.f32 %v6029, %v6042
    %v6049 = vsub.f32 %v6035, %v6043
    %v6050 = vmul.f32 %v6042, 2.0
    %v6051 = vmul.f32 %v6043, 2.0
    %v6052 = vadd.f32 %v6050, 0.0001
    %v6053 = vadd.f32 %v6051, 0.0001
    %v6054 = vmul.f32 %v6048, 2.0
    %v6055 = vmul.f32 %v6049, 2.0
    %v6056 = vadd.f32 %v6054, 0.0009
    %v6057 = vadd.f32 %v6055, 0.0009
    %v6058 = vmul.f32 %v6052, %v6056
    %v6059 = vmul.f32 %v6053, %v6057
    %v6060 = vadd.f32 %v6038, %v6040
    %v6061 = vadd.f32 %v6039, %v6041
    %v6062 = vadd.f32 %v6060, 0.0001
    %v6063 = vadd.f32 %v6061, 0.0001
    %v6064 = vadd.f32 %v6044, %v6046
    %v6065 = vadd.f32 %v6045, %v6047
    %v6066 = vadd.f32 %v6064, 0.0009
    %v6067 = vadd.f32 %v6065, 0.0009
    %v6068 = vmul.f32 %v6062, %v6066
    %v6069 = vmul.f32 %v6063, %v6067
    %v6070 = vrcp.pop %v6068
    %v6071 = vmul.f32 %v6058, %v6070
    %v6072 = vrcp.pop %v6069
    %v6073 = vmul.f32 %v6059, %v6072
    %v6074 = vadd.f32 %v6071, %v6073
    %6075 = vadd.xlane.f32.xlu0 %v6074
    %v6076 = vpop.xlane.xlu0 %6075
    %v6077 = vrot.slane %v6076, 4
    %v6078 = vadd.f32 %v6076, %v6077
    %v6079 = vrot.slane %v6078, 2
    %v6080 = vadd.f32 %v6078, %v6079
    %v6081 = vrot.slane %v6080, 1
    %v6082 = vadd.f32 %v6080, %v6081
    %s6083 = vtos %v6082
    %s6084 = scalar_lea.smem [#allocation10], 0
    %6085 = sst [smem:[%s6084]] %s6083
    // Predicated region
    $region34: #{tpu_custom_call.1} parent=1 // pred_check
      _
    $region35: #{tpu_custom_call.1} parent=1 // pred_check_branch
      %6087 = sbr.rel (0) target = $region37
    $region36: #{tpu_custom_call.1} parent=1 // pred_region
      %s6089 = ssub.s32 16, 16
      %6090 = vsyncadd [#allocation4], %s6089
      %6093 = dma.smem_to_hbm [#allocation10], 16, %s4, [#allocation4]
    $region37: #{tpu_custom_call.1} parent=1 // pred_fallthru
      _
    // Predicated region
    $region38: #{tpu_custom_call.1} parent=1 // pred_check
      _
    $region39: #{tpu_custom_call.1} parent=1 // pred_check_branch
      %6095 = sbr.rel (0) target = $region41
    $region40: #{tpu_custom_call.1} parent=1 // pred_region
      %6096 = dma.done [#allocation4], 16
    $region41: #{tpu_custom_call.1} parent=1 // pred_fallthru
      _
    %6097 = sfence
    %6098 = vsyncpa [#allocation3], 1
    %6099 = vsyncpa [#allocation6], 1
    %6100 = vsyncpa [#allocation9], 1
    %6101 = vsyncpa [#allocation4], 1

</llo_original>
